<compile_context>
chip_gen: v6e
topology: v6e:2x2x1
jax: 0.10.0
libtpu: 0.0.40
codegen_flags: <defaults>
</compile_context>

<pallas_src>
import numpy as np
import jax
import jax.numpy as jnp
from jax.experimental import pallas as pl
from jax.experimental.pallas import tpu as pltpu

LATENT_DIM = 32
IMG_SHAPE = (1, 8, 8)                  # (C, H, W) -> prod = 64
OUT_DIM = int(np.prod(IMG_SHAPE))      # 64
BN_EPS = 0.8                           # nn.BatchNorm1d(out_feat, 0.8) -> eps = 0.8
LEAKY_SLOPE = 0.2

# Layer widths.
D1, D2, D3, D4 = 128, 256, 512, 1024

# w4 is streamed in column chunks so layer-4 compute overlaps its DMA.
N_W4_CHUNKS = 4
W4_CHUNK = D4 // N_W4_CHUNKS           # 256 (lane-aligned)

# ---------- packed per-feature-parameter layout (single small VMEM input) ----
_PACK_FIELDS = (("b1", D1), ("g2", D2), ("be2", D2), ("g3", D3), ("be3", D3),
                ("g4", D4), ("be4", D4), ("b5", OUT_DIM))
PACK_SIZES = dict(_PACK_FIELDS)
PACK_OFFSETS = {}
_off = 0
for _name, _n in _PACK_FIELDS:
    PACK_OFFSETS[_name] = _off         # all offsets are multiples of 128
    _off += _n
PACK_TOTAL = _off                      # 3776
PACK_PADDED = ((PACK_TOTAL + 127) // 128) * 128   # 3840


def _leaky(x):
    return jnp.where(x > 0, x, LEAKY_SLOPE * x)


def _batchnorm_train(x, gamma, beta):
    """Training-mode BatchNorm1d, two-pass (biased) batch statistics."""
    mean = jnp.mean(x, axis=0, keepdims=True)
    d = x - mean
    var = jnp.mean(d * d, axis=0, keepdims=True)
    return d * jax.lax.rsqrt(var + BN_EPS) * gamma + beta


def generator_kernel(z_ref, w1_ref, pk_ref,
                     w2_hbm, w3_hbm, w4_hbm, w5_hbm,
                     out_ref,
                     w2_vmem, w3_vmem, w4_vmem, w5_vmem, dma_sem):
    # --- Kick off every weight DMA immediately (issue order == need order) so
    # the ~2.9 MB weight stream overlaps with all compute. ---------------------
    cp2 = pltpu.make_async_copy(w2_hbm, w2_vmem, dma_sem.at[0])
    cp3 = pltpu.make_async_copy(w3_hbm, w3_vmem, dma_sem.at[1])
    cp4 = [pltpu.make_async_copy(
               w4_hbm.at[:, c * W4_CHUNK:(c + 1) * W4_CHUNK],
               w4_vmem.at[:, c * W4_CHUNK:(c + 1) * W4_CHUNK],
               dma_sem.at[2 + c])
           for c in range(N_W4_CHUNKS)]
    cp5 = pltpu.make_async_copy(w5_hbm, w5_vmem, dma_sem.at[2 + N_W4_CHUNKS])
    cp2.start()
    cp3.start()
    for cp in cp4:
        cp.start()
    cp5.start()

    # --- Static (free) slices of the packed per-feature parameter vector. ----
    def pk(name):
        off = PACK_OFFSETS[name]
        return pk_ref[:, off:off + PACK_SIZES[name]]

    x = z_ref[...].astype(jnp.float32)

    # block(latent_dim, 128, normalize=False): Linear + LeakyReLU
    h = jnp.dot(x, w1_ref[...], preferred_element_type=jnp.float32) + pk("b1")
    h = _leaky(h)

    # block(128, 256): Linear (bias cancelled by train-mode BN) + BN + LeakyReLU
    cp2.wait()
    h = jnp.dot(h, w2_vmem[...], preferred_element_type=jnp.float32)
    h = _leaky(_batchnorm_train(h, pk("g2"), pk("be2")))

    # block(256, 512)
    cp3.wait()
    h = jnp.dot(h, w3_vmem[...], preferred_element_type=jnp.float32)
    h = _leaky(_batchnorm_train(h, pk("g3"), pk("be3")))

    # block(512, 1024): w4 arrives in column chunks; do each partial matmul as
    # its slice lands so the remaining transfer hides the compute.
    parts = []
    for c in range(N_W4_CHUNKS):
        cp4[c].wait()
        parts.append(jnp.dot(h, w4_vmem[:, c * W4_CHUNK:(c + 1) * W4_CHUNK],
                             preferred_element_type=jnp.float32))
    h = jnp.concatenate(parts, axis=1)
    h = _leaky(_batchnorm_train(h, pk("g4"), pk("be4")))

    # Linear(1024, prod(img_shape)) + Tanh
    cp5.wait()
    h = jnp.dot(h, w5_vmem[...], preferred_element_type=jnp.float32) + pk("b5")
    out_ref[...] = jnp.tanh(h)


def prepare_kernel_params(params):
    """One-time host-side prep.

    Packs the 8 tiny per-feature vectors into one lane-padded (1, 3840) array
    so the kernel preamble issues a single small auto-DMA instead of nine.
    Linear biases b2/b3/b4 are intentionally dropped: a constant per-feature
    bias is exactly removed by the train-mode BatchNorm mean subtraction that
    follows those layers.
    NOTE: casting w2..w5 to bf16 here would halve the HBM-bound weight stream
    (~1.5-1.9x kernel speedup) but exceeds the 5e-5 verification tolerance, so
    it is left as a conditional optimization.
    """
    (w1, b1, w2, _b2, g2, be2, w3, _b3, g3, be3,
     w4, _b4, g4, be4, w5, b5) = params
    small = dict(b1=b1, g2=g2, be2=be2, g3=g3, be3=be3, g4=g4, be4=be4, b5=b5)
    packed = jnp.concatenate(
        [small[name].reshape(1, -1).astype(jnp.float32) for name, _ in _PACK_FIELDS],
        axis=1)
    packed = jnp.pad(packed, ((0, 0), (0, PACK_PADDED - PACK_TOTAL)))
    return dict(w1=w1, packed=packed, w2=w2, w3=w3, w4=w4, w5=w5)


def generator_forward(z, kparams):
    """Runs the fused MLP generator as a single Pallas kernel."""
    B = z.shape[0]

    vmem = pl.BlockSpec(memory_space=pltpu.MemorySpace.VMEM)
    # pl.ANY leaves the big weights in place (HBM for pallas_call operands);
    # they are streamed into VMEM scratch with explicit async copies above.
    hbm = pl.BlockSpec(memory_space=pl.ANY)

    w_elems = (LATENT_DIM * D1 + D1 * D2 + D2 * D3 + D3 * D4 + D4 * OUT_DIM)
    flops = 2 * B * w_elems
    bytes_accessed = 4 * (w_elems + PACK_PADDED + B * LATENT_DIM + B * OUT_DIM)
    transcendentals = 3 * (D2 + D3 + D4) + B * OUT_DIM   # rsqrt + tanh

    flat = pl.pallas_call(
        generator_kernel,
        out_shape=jax.ShapeDtypeStruct((B, OUT_DIM), jnp.float32),
        in_specs=[vmem, vmem, vmem,      # z, w1, packed small params
                  hbm, hbm, hbm, hbm],   # w2, w3, w4, w5 (manual DMA)
        out_specs=vmem,
        scratch_shapes=[
            pltpu.VMEM((D1, D2), jnp.float32),       # w2 staging
            pltpu.VMEM((D2, D3), jnp.float32),       # w3 staging
            pltpu.VMEM((D3, D4), jnp.float32),       # w4 staging (chunked fill)
            pltpu.VMEM((D4, OUT_DIM), jnp.float32),  # w5 staging
            pltpu.SemaphoreType.DMA((2 + N_W4_CHUNKS + 1,)),
        ],
        compiler_params=pltpu.CompilerParams(vmem_limit_bytes=32 * 1024 * 1024),
        cost_estimate=pl.CostEstimate(flops=flops,
                                      transcendentals=transcendentals,
                                      bytes_accessed=bytes_accessed),
    )(z, kparams["w1"], kparams["packed"],
      kparams["w2"], kparams["w3"], kparams["w4"], kparams["w5"])
    return flat.reshape(B, *IMG_SHAPE)


def init_params(key):
    """Deterministic PyTorch-style init: U(-1/sqrt(fan_in), 1/sqrt(fan_in))."""
    dims = [LATENT_DIM, D1, D2, D3, D4, OUT_DIM]
    params = []
    for i in range(5):
        fan_in, fan_out = dims[i], dims[i + 1]
        key, kw, kb = jax.random.split(key, 3)
        bound = 1.0 / float(np.sqrt(fan_in))
        w = jax.random.uniform(kw, (fan_in, fan_out), jnp.float32, -bound, bound)
        b = jax.random.uniform(kb, (1, fan_out), jnp.float32, -bound, bound)
        params += [w, b]
        if i in (1, 2, 3):  # layers followed by BatchNorm1d (gamma=1, beta=0)
            params += [jnp.ones((1, fan_out), jnp.float32),
                       jnp.zeros((1, fan_out), jnp.float32)]
    return tuple(params)


def reference_forward(z, params):
    """Pure-JAX reference mirroring the PyTorch forward exactly
    (train-mode BN, two-pass variance, Linear biases applied everywhere)."""
    (w1, b1, w2, b2, g2, be2, w3, b3, g3, be3,
     w4, b4, g4, be4, w5, b5) = params

    def bn(x, g, b):
        m = x.mean(0, keepdims=True)
        v = ((x - m) ** 2).mean(0, keepdims=True)
        return (x - m) / jnp.sqrt(v + BN_EPS) * g + b

    h = _leaky(z @ w1 + b1)
    h = _leaky(bn(h @ w2 + b2, g2, be2))
    h = _leaky(bn(h @ w3 + b3, g3, be3))
    h = _leaky(bn(h @ w4 + b4, g4, be4))
    out = jnp.tanh(h @ w5 + b5)
    return out.reshape(z.shape[0], *IMG_SHAPE)


if __name__ == "__main__":
    key = jax.random.PRNGKey(0)
    key, pkey, zkey = jax.random.split(key, 3)
    params = init_params(pkey)
    kparams = prepare_kernel_params(params)

    B = 8
    z = jax.random.normal(zkey, (B, LATENT_DIM), dtype=jnp.float32)

    out = generator_forward(z, kparams)
    out = jax.block_until_ready(out)

    ref = reference_forward(z, params)
    assert out.shape == (B,) + IMG_SHAPE, out.shape
    np.testing.assert_allclose(np.asarray(out), np.asarray(ref),
                               rtol=5e-5, atol=5e-5)
    print("KERNEL_OK")
</pallas_src>

<mosaic_0001>
module attributes {stable_mosaic.version = 11 : i64} {
  func.func @generator_kernel(%arg0: memref<8x32xf32, #tpu.memory_space<vmem>>, %arg1: memref<32x128xf32, #tpu.memory_space<vmem>>, %arg2: memref<1x3840xf32, #tpu.memory_space<vmem>>, %arg3: memref<128x256xf32, #tpu.memory_space<any>>, %arg4: memref<256x512xf32, #tpu.memory_space<any>>, %arg5: memref<512x1024xf32, #tpu.memory_space<any>>, %arg6: memref<1024x64xf32, #tpu.memory_space<any>>, %arg7: memref<8x64xf32, #tpu.memory_space<vmem>>, %arg8: memref<128x256xf32, #tpu.memory_space<vmem>>, %arg9: memref<256x512xf32, #tpu.memory_space<vmem>>, %arg10: memref<512x1024xf32, #tpu.memory_space<vmem>>, %arg11: memref<1024x64xf32, #tpu.memory_space<vmem>>, %arg12: memref<7x!tpu.dma_semaphore, #tpu.memory_space<semaphore_mem>>) attributes {dimension_semantics = [], scalar_prefetch = 0 : i64, scratch_operands = 5 : i64, tpu.core_type = #tpu.core_type<tc>} {
    %c0_i32 = arith.constant 0 : i32
    %0 = tpu.memref_slice %arg12[%c0_i32] : memref<7x!tpu.dma_semaphore, #tpu.memory_space<semaphore_mem>> -> memref<1x!tpu.dma_semaphore, #tpu.memory_space<semaphore_mem>>
    %1 = tpu.memref_squeeze %0 : memref<1x!tpu.dma_semaphore, #tpu.memory_space<semaphore_mem>> -> memref<!tpu.dma_semaphore, #tpu.memory_space<semaphore_mem>>
    tpu.enqueue_dma source(%arg3 : memref<128x256xf32, #tpu.memory_space<any>>) target(%arg8 : memref<128x256xf32, #tpu.memory_space<vmem>>) target_semaphore(%1 : memref<!tpu.dma_semaphore, #tpu.memory_space<semaphore_mem>>)
    %c1_i32 = arith.constant 1 : i32
    %2 = tpu.memref_slice %arg12[%c1_i32] : memref<7x!tpu.dma_semaphore, #tpu.memory_space<semaphore_mem>> -> memref<1x!tpu.dma_semaphore, #tpu.memory_space<semaphore_mem>>
    %3 = tpu.memref_squeeze %2 : memref<1x!tpu.dma_semaphore, #tpu.memory_space<semaphore_mem>> -> memref<!tpu.dma_semaphore, #tpu.memory_space<semaphore_mem>>
    tpu.enqueue_dma source(%arg4 : memref<256x512xf32, #tpu.memory_space<any>>) target(%arg9 : memref<256x512xf32, #tpu.memory_space<vmem>>) target_semaphore(%3 : memref<!tpu.dma_semaphore, #tpu.memory_space<semaphore_mem>>)
    %c2_i32 = arith.constant 2 : i32
    %c0_i32_0 = arith.constant 0 : i32
    %c0_i32_1 = arith.constant 0 : i32
    %4 = tpu.memref_slice %arg5[%c0_i32_0, %c0_i32_1] : memref<512x1024xf32, #tpu.memory_space<any>> -> memref<512x256xf32, #tpu.memory_space<any>>
    %c0_i32_2 = arith.constant 0 : i32
    %c0_i32_3 = arith.constant 0 : i32
    %5 = tpu.memref_slice %arg10[%c0_i32_2, %c0_i32_3] : memref<512x1024xf32, #tpu.memory_space<vmem>> -> memref<512x256xf32, #tpu.memory_space<vmem>>
    %6 = tpu.memref_slice %arg12[%c2_i32] : memref<7x!tpu.dma_semaphore, #tpu.memory_space<semaphore_mem>> -> memref<1x!tpu.dma_semaphore, #tpu.memory_space<semaphore_mem>>
    %7 = tpu.memref_squeeze %6 : memref<1x!tpu.dma_semaphore, #tpu.memory_space<semaphore_mem>> -> memref<!tpu.dma_semaphore, #tpu.memory_space<semaphore_mem>>
    tpu.enqueue_dma source(%4 : memref<512x256xf32, #tpu.memory_space<any>>) target(%5 : memref<512x256xf32, #tpu.memory_space<vmem>>) target_semaphore(%7 : memref<!tpu.dma_semaphore, #tpu.memory_space<semaphore_mem>>)
    %c3_i32 = arith.constant 3 : i32
    %c0_i32_4 = arith.constant 0 : i32
    %c256_i32 = arith.constant 256 : i32
    %8 = tpu.memref_slice %arg5[%c0_i32_4, %c256_i32] : memref<512x1024xf32, #tpu.memory_space<any>> -> memref<512x256xf32, #tpu.memory_space<any>>
    %c0_i32_5 = arith.constant 0 : i32
    %c256_i32_6 = arith.constant 256 : i32
    %9 = tpu.memref_slice %arg10[%c0_i32_5, %c256_i32_6] : memref<512x1024xf32, #tpu.memory_space<vmem>> -> memref<512x256xf32, #tpu.memory_space<vmem>>
    %10 = tpu.memref_slice %arg12[%c3_i32] : memref<7x!tpu.dma_semaphore, #tpu.memory_space<semaphore_mem>> -> memref<1x!tpu.dma_semaphore, #tpu.memory_space<semaphore_mem>>
    %11 = tpu.memref_squeeze %10 : memref<1x!tpu.dma_semaphore, #tpu.memory_space<semaphore_mem>> -> memref<!tpu.dma_semaphore, #tpu.memory_space<semaphore_mem>>
    tpu.enqueue_dma source(%8 : memref<512x256xf32, #tpu.memory_space<any>>) target(%9 : memref<512x256xf32, #tpu.memory_space<vmem>>) target_semaphore(%11 : memref<!tpu.dma_semaphore, #tpu.memory_space<semaphore_mem>>)
    %c4_i32 = arith.constant 4 : i32
    %c0_i32_7 = arith.constant 0 : i32
    %c512_i32 = arith.constant 512 : i32
    %12 = tpu.memref_slice %arg5[%c0_i32_7, %c512_i32] : memref<512x1024xf32, #tpu.memory_space<any>> -> memref<512x256xf32, #tpu.memory_space<any>>
    %c0_i32_8 = arith.constant 0 : i32
    %c512_i32_9 = arith.constant 512 : i32
    %13 = tpu.memref_slice %arg10[%c0_i32_8, %c512_i32_9] : memref<512x1024xf32, #tpu.memory_space<vmem>> -> memref<512x256xf32, #tpu.memory_space<vmem>>
    %14 = tpu.memref_slice %arg12[%c4_i32] : memref<7x!tpu.dma_semaphore, #tpu.memory_space<semaphore_mem>> -> memref<1x!tpu.dma_semaphore, #tpu.memory_space<semaphore_mem>>
    %15 = tpu.memref_squeeze %14 : memref<1x!tpu.dma_semaphore, #tpu.memory_space<semaphore_mem>> -> memref<!tpu.dma_semaphore, #tpu.memory_space<semaphore_mem>>
    tpu.enqueue_dma source(%12 : memref<512x256xf32, #tpu.memory_space<any>>) target(%13 : memref<512x256xf32, #tpu.memory_space<vmem>>) target_semaphore(%15 : memref<!tpu.dma_semaphore, #tpu.memory_space<semaphore_mem>>)
    %c5_i32 = arith.constant 5 : i32
    %c0_i32_10 = arith.constant 0 : i32
    %c768_i32 = arith.constant 768 : i32
    %16 = tpu.memref_slice %arg5[%c0_i32_10, %c768_i32] : memref<512x1024xf32, #tpu.memory_space<any>> -> memref<512x256xf32, #tpu.memory_space<any>>
    %c0_i32_11 = arith.constant 0 : i32
    %c768_i32_12 = arith.constant 768 : i32
    %17 = tpu.memref_slice %arg10[%c0_i32_11, %c768_i32_12] : memref<512x1024xf32, #tpu.memory_space<vmem>> -> memref<512x256xf32, #tpu.memory_space<vmem>>
    %18 = tpu.memref_slice %arg12[%c5_i32] : memref<7x!tpu.dma_semaphore, #tpu.memory_space<semaphore_mem>> -> memref<1x!tpu.dma_semaphore, #tpu.memory_space<semaphore_mem>>
    %19 = tpu.memref_squeeze %18 : memref<1x!tpu.dma_semaphore, #tpu.memory_space<semaphore_mem>> -> memref<!tpu.dma_semaphore, #tpu.memory_space<semaphore_mem>>
    tpu.enqueue_dma source(%16 : memref<512x256xf32, #tpu.memory_space<any>>) target(%17 : memref<512x256xf32, #tpu.memory_space<vmem>>) target_semaphore(%19 : memref<!tpu.dma_semaphore, #tpu.memory_space<semaphore_mem>>)
    %c6_i32 = arith.constant 6 : i32
    %20 = tpu.memref_slice %arg12[%c6_i32] : memref<7x!tpu.dma_semaphore, #tpu.memory_space<semaphore_mem>> -> memref<1x!tpu.dma_semaphore, #tpu.memory_space<semaphore_mem>>
    %21 = tpu.memref_squeeze %20 : memref<1x!tpu.dma_semaphore, #tpu.memory_space<semaphore_mem>> -> memref<!tpu.dma_semaphore, #tpu.memory_space<semaphore_mem>>
    tpu.enqueue_dma source(%arg6 : memref<1024x64xf32, #tpu.memory_space<any>>) target(%arg11 : memref<1024x64xf32, #tpu.memory_space<vmem>>) target_semaphore(%21 : memref<!tpu.dma_semaphore, #tpu.memory_space<semaphore_mem>>)
    %c0 = arith.constant 0 : index
    %c0_13 = arith.constant 0 : index
    %22 = vector.load %arg0[%c0, %c0_13] : memref<8x32xf32, #tpu.memory_space<vmem>>, vector<8x32xf32>
    %c0_14 = arith.constant 0 : index
    %c0_15 = arith.constant 0 : index
    %23 = vector.load %arg1[%c0_14, %c0_15] : memref<32x128xf32, #tpu.memory_space<vmem>>, vector<32x128xf32>
    %cst = arith.constant dense<0.000000e+00> : vector<8x128xf32>
    %24 = tpu.matmul %22, %23, %cst {dimension_numbers = #tpu.dot_dimension_numbers<[1], [0], [0], [1], [0, 0, 1, 1], [], []>} : vector<8x32xf32>, vector<32x128xf32>, vector<8x128xf32> -> vector<8x128xf32>
    %c0_16 = arith.constant 0 : index
    %c0_17 = arith.constant 0 : index
    %25 = vector.load %arg2[%c0_16, %c0_17] : memref<1x3840xf32, #tpu.memory_space<vmem>>, vector<1x128xf32>
    %26 = vector.broadcast %25 : vector<1x128xf32> to vector<8x128xf32>
    %27 = arith.addf %24, %26 : vector<8x128xf32>
    %cst_18 = arith.constant 0.000000e+00 : f32
    %28 = vector.broadcast %cst_18 : f32 to vector<8x128xf32>
    %29 = arith.cmpf ogt, %27, %28 : vector<8x128xf32>
    %cst_19 = arith.constant 2.000000e-01 : f32
    %30 = vector.broadcast %cst_19 : f32 to vector<8x128xf32>
    %31 = arith.mulf %30, %27 : vector<8x128xf32>
    %32 = arith.select %29, %27, %31 : vector<8x128xi1>, vector<8x128xf32>
    %c0_i32_20 = arith.constant 0 : i32
    %33 = tpu.memref_slice %arg12[%c0_i32_20] : memref<7x!tpu.dma_semaphore, #tpu.memory_space<semaphore_mem>> -> memref<1x!tpu.dma_semaphore, #tpu.memory_space<semaphore_mem>>
    %34 = tpu.memref_squeeze %33 : memref<1x!tpu.dma_semaphore, #tpu.memory_space<semaphore_mem>> -> memref<!tpu.dma_semaphore, #tpu.memory_space<semaphore_mem>>
    tpu.wait_dma2 semaphore(%34 : memref<!tpu.dma_semaphore, #tpu.memory_space<semaphore_mem>>) src(%arg3 : memref<128x256xf32, #tpu.memory_space<any>>) dst(%arg8 : memref<128x256xf32, #tpu.memory_space<vmem>>)
    %c0_21 = arith.constant 0 : index
    %c0_22 = arith.constant 0 : index
    %35 = vector.load %arg8[%c0_21, %c0_22] : memref<128x256xf32, #tpu.memory_space<vmem>>, vector<128x256xf32>
    %cst_23 = arith.constant dense<0.000000e+00> : vector<8x256xf32>
    %36 = tpu.matmul %32, %35, %cst_23 {dimension_numbers = #tpu.dot_dimension_numbers<[1], [0], [0], [1], [0, 0, 1, 1], [], []>} : vector<8x128xf32>, vector<128x256xf32>, vector<8x256xf32> -> vector<8x256xf32>
    %c0_24 = arith.constant 0 : index
    %c128 = arith.constant 128 : index
    %37 = vector.load %arg2[%c0_24, %c128] : memref<1x3840xf32, #tpu.memory_space<vmem>>, vector<1x256xf32>
    %c0_25 = arith.constant 0 : index
    %c384 = arith.constant 384 : index
    %38 = vector.load %arg2[%c0_25, %c384] : memref<1x3840xf32, #tpu.memory_space<vmem>>, vector<1x256xf32>
    %cst_26 = arith.constant dense<0.000000e+00> : vector<256xf32>
    %39 = vector.multi_reduction <add>, %36, %cst_26 [0] : vector<8x256xf32> to vector<256xf32>
    %40 = vector.shape_cast %39 : vector<256xf32> to vector<1x256xf32>
    %cst_27 = arith.constant 8.000000e+00 : f32
    %41 = vector.broadcast %cst_27 : f32 to vector<1x256xf32>
    %42 = arith.divf %40, %41 : vector<1x256xf32>
    %43 = vector.broadcast %42 : vector<1x256xf32> to vector<8x256xf32>
    %44 = arith.subf %36, %43 : vector<8x256xf32>
    %45 = arith.mulf %44, %44 : vector<8x256xf32>
    %cst_28 = arith.constant dense<0.000000e+00> : vector<256xf32>
    %46 = vector.multi_reduction <add>, %45, %cst_28 [0] : vector<8x256xf32> to vector<256xf32>
    %47 = vector.shape_cast %46 : vector<256xf32> to vector<1x256xf32>
    %cst_29 = arith.constant 8.000000e+00 : f32
    %48 = vector.broadcast %cst_29 : f32 to vector<1x256xf32>
    %49 = arith.divf %47, %48 : vector<1x256xf32>
    %cst_30 = arith.constant 8.000000e-01 : f32
    %50 = vector.broadcast %cst_30 : f32 to vector<1x256xf32>
    %51 = arith.addf %49, %50 : vector<1x256xf32>
    %52 = math.rsqrt %51 : vector<1x256xf32>
    %53 = vector.broadcast %52 : vector<1x256xf32> to vector<8x256xf32>
    %54 = arith.mulf %44, %53 : vector<8x256xf32>
    %55 = vector.broadcast %37 : vector<1x256xf32> to vector<8x256xf32>
    %56 = arith.mulf %54, %55 : vector<8x256xf32>
    %57 = vector.broadcast %38 : vector<1x256xf32> to vector<8x256xf32>
    %58 = arith.addf %56, %57 : vector<8x256xf32>
    %cst_31 = arith.constant 0.000000e+00 : f32
    %59 = vector.broadcast %cst_31 : f32 to vector<8x256xf32>
    %60 = arith.cmpf ogt, %58, %59 : vector<8x256xf32>
    %cst_32 = arith.constant 2.000000e-01 : f32
    %61 = vector.broadcast %cst_32 : f32 to vector<8x256xf32>
    %62 = arith.mulf %61, %58 : vector<8x256xf32>
    %63 = arith.select %60, %58, %62 : vector<8x256xi1>, vector<8x256xf32>
    %c1_i32_33 = arith.constant 1 : i32
    %64 = tpu.memref_slice %arg12[%c1_i32_33] : memref<7x!tpu.dma_semaphore, #tpu.memory_space<semaphore_mem>> -> memref<1x!tpu.dma_semaphore, #tpu.memory_space<semaphore_mem>>
    %65 = tpu.memref_squeeze %64 : memref<1x!tpu.dma_semaphore, #tpu.memory_space<semaphore_mem>> -> memref<!tpu.dma_semaphore, #tpu.memory_space<semaphore_mem>>
    tpu.wait_dma2 semaphore(%65 : memref<!tpu.dma_semaphore, #tpu.memory_space<semaphore_mem>>) src(%arg4 : memref<256x512xf32, #tpu.memory_space<any>>) dst(%arg9 : memref<256x512xf32, #tpu.memory_space<vmem>>)
    %c0_34 = arith.constant 0 : index
    %c0_35 = arith.constant 0 : index
    %66 = vector.load %arg9[%c0_34, %c0_35] : memref<256x512xf32, #tpu.memory_space<vmem>>, vector<256x512xf32>
    %cst_36 = arith.constant dense<0.000000e+00> : vector<8x512xf32>
    %67 = tpu.matmul %63, %66, %cst_36 {dimension_numbers = #tpu.dot_dimension_numbers<[1], [0], [0], [1], [0, 0, 1, 1], [], []>} : vector<8x256xf32>, vector<256x512xf32>, vector<8x512xf32> -> vector<8x512xf32>
    %c0_37 = arith.constant 0 : index
    %c640 = arith.constant 640 : index
    %68 = vector.load %arg2[%c0_37, %c640] : memref<1x3840xf32, #tpu.memory_space<vmem>>, vector<1x512xf32>
    %c0_38 = arith.constant 0 : index
    %c1152 = arith.constant 1152 : index
    %69 = vector.load %arg2[%c0_38, %c1152] : memref<1x3840xf32, #tpu.memory_space<vmem>>, vector<1x512xf32>
    %cst_39 = arith.constant dense<0.000000e+00> : vector<512xf32>
    %70 = vector.multi_reduction <add>, %67, %cst_39 [0] : vector<8x512xf32> to vector<512xf32>
    %71 = vector.shape_cast %70 : vector<512xf32> to vector<1x512xf32>
    %cst_40 = arith.constant 8.000000e+00 : f32
    %72 = vector.broadcast %cst_40 : f32 to vector<1x512xf32>
    %73 = arith.divf %71, %72 : vector<1x512xf32>
    %74 = vector.broadcast %73 : vector<1x512xf32> to vector<8x512xf32>
    %75 = arith.subf %67, %74 : vector<8x512xf32>
    %76 = arith.mulf %75, %75 : vector<8x512xf32>
    %cst_41 = arith.constant dense<0.000000e+00> : vector<512xf32>
    %77 = vector.multi_reduction <add>, %76, %cst_41 [0] : vector<8x512xf32> to vector<512xf32>
    %78 = vector.shape_cast %77 : vector<512xf32> to vector<1x512xf32>
    %cst_42 = arith.constant 8.000000e+00 : f32
    %79 = vector.broadcast %cst_42 : f32 to vector<1x512xf32>
    %80 = arith.divf %78, %79 : vector<1x512xf32>
    %cst_43 = arith.constant 8.000000e-01 : f32
    %81 = vector.broadcast %cst_43 : f32 to vector<1x512xf32>
    %82 = arith.addf %80, %81 : vector<1x512xf32>
    %83 = math.rsqrt %82 : vector<1x512xf32>
    %84 = vector.broadcast %83 : vector<1x512xf32> to vector<8x512xf32>
    %85 = arith.mulf %75, %84 : vector<8x512xf32>
    %86 = vector.broadcast %68 : vector<1x512xf32> to vector<8x512xf32>
    %87 = arith.mulf %85, %86 : vector<8x512xf32>
    %88 = vector.broadcast %69 : vector<1x512xf32> to vector<8x512xf32>
    %89 = arith.addf %87, %88 : vector<8x512xf32>
    %cst_44 = arith.constant 0.000000e+00 : f32
    %90 = vector.broadcast %cst_44 : f32 to vector<8x512xf32>
    %91 = arith.cmpf ogt, %89, %90 : vector<8x512xf32>
    %cst_45 = arith.constant 2.000000e-01 : f32
    %92 = vector.broadcast %cst_45 : f32 to vector<8x512xf32>
    %93 = arith.mulf %92, %89 : vector<8x512xf32>
    %94 = arith.select %91, %89, %93 : vector<8x512xi1>, vector<8x512xf32>
    %c2_i32_46 = arith.constant 2 : i32
    %c0_i32_47 = arith.constant 0 : i32
    %c0_i32_48 = arith.constant 0 : i32
    %95 = tpu.memref_slice %arg5[%c0_i32_47, %c0_i32_48] : memref<512x1024xf32, #tpu.memory_space<any>> -> memref<512x256xf32, #tpu.memory_space<any>>
    %c0_i32_49 = arith.constant 0 : i32
    %c0_i32_50 = arith.constant 0 : i32
    %96 = tpu.memref_slice %arg10[%c0_i32_49, %c0_i32_50] : memref<512x1024xf32, #tpu.memory_space<vmem>> -> memref<512x256xf32, #tpu.memory_space<vmem>>
    %97 = tpu.memref_slice %arg12[%c2_i32_46] : memref<7x!tpu.dma_semaphore, #tpu.memory_space<semaphore_mem>> -> memref<1x!tpu.dma_semaphore, #tpu.memory_space<semaphore_mem>>
    %98 = tpu.memref_squeeze %97 : memref<1x!tpu.dma_semaphore, #tpu.memory_space<semaphore_mem>> -> memref<!tpu.dma_semaphore, #tpu.memory_space<semaphore_mem>>
    tpu.wait_dma2 semaphore(%98 : memref<!tpu.dma_semaphore, #tpu.memory_space<semaphore_mem>>) src(%95 : memref<512x256xf32, #tpu.memory_space<any>>) dst(%96 : memref<512x256xf32, #tpu.memory_space<vmem>>)
    %c0_51 = arith.constant 0 : index
    %c0_52 = arith.constant 0 : index
    %99 = vector.load %arg10[%c0_51, %c0_52] : memref<512x1024xf32, #tpu.memory_space<vmem>>, vector<512x256xf32>
    %cst_53 = arith.constant dense<0.000000e+00> : vector<8x256xf32>
    %100 = tpu.matmul %94, %99, %cst_53 {dimension_numbers = #tpu.dot_dimension_numbers<[1], [0], [0], [1], [0, 0, 1, 1], [], []>} : vector<8x512xf32>, vector<512x256xf32>, vector<8x256xf32> -> vector<8x256xf32>
    %c3_i32_54 = arith.constant 3 : i32
    %c0_i32_55 = arith.constant 0 : i32
    %c256_i32_56 = arith.constant 256 : i32
    %101 = tpu.memref_slice %arg5[%c0_i32_55, %c256_i32_56] : memref<512x1024xf32, #tpu.memory_space<any>> -> memref<512x256xf32, #tpu.memory_space<any>>
    %c0_i32_57 = arith.constant 0 : i32
    %c256_i32_58 = arith.constant 256 : i32
    %102 = tpu.memref_slice %arg10[%c0_i32_57, %c256_i32_58] : memref<512x1024xf32, #tpu.memory_space<vmem>> -> memref<512x256xf32, #tpu.memory_space<vmem>>
    %103 = tpu.memref_slice %arg12[%c3_i32_54] : memref<7x!tpu.dma_semaphore, #tpu.memory_space<semaphore_mem>> -> memref<1x!tpu.dma_semaphore, #tpu.memory_space<semaphore_mem>>
    %104 = tpu.memref_squeeze %103 : memref<1x!tpu.dma_semaphore, #tpu.memory_space<semaphore_mem>> -> memref<!tpu.dma_semaphore, #tpu.memory_space<semaphore_mem>>
    tpu.wait_dma2 semaphore(%104 : memref<!tpu.dma_semaphore, #tpu.memory_space<semaphore_mem>>) src(%101 : memref<512x256xf32, #tpu.memory_space<any>>) dst(%102 : memref<512x256xf32, #tpu.memory_space<vmem>>)
    %c0_59 = arith.constant 0 : index
    %c256 = arith.constant 256 : index
    %105 = vector.load %arg10[%c0_59, %c256] : memref<512x1024xf32, #tpu.memory_space<vmem>>, vector<512x256xf32>
    %cst_60 = arith.constant dense<0.000000e+00> : vector<8x256xf32>
    %106 = tpu.matmul %94, %105, %cst_60 {dimension_numbers = #tpu.dot_dimension_numbers<[1], [0], [0], [1], [0, 0, 1, 1], [], []>} : vector<8x512xf32>, vector<512x256xf32>, vector<8x256xf32> -> vector<8x256xf32>
    %c4_i32_61 = arith.constant 4 : i32
    %c0_i32_62 = arith.constant 0 : i32
    %c512_i32_63 = arith.constant 512 : i32
    %107 = tpu.memref_slice %arg5[%c0_i32_62, %c512_i32_63] : memref<512x1024xf32, #tpu.memory_space<any>> -> memref<512x256xf32, #tpu.memory_space<any>>
    %c0_i32_64 = arith.constant 0 : i32
    %c512_i32_65 = arith.constant 512 : i32
    %108 = tpu.memref_slice %arg10[%c0_i32_64, %c512_i32_65] : memref<512x1024xf32, #tpu.memory_space<vmem>> -> memref<512x256xf32, #tpu.memory_space<vmem>>
    %109 = tpu.memref_slice %arg12[%c4_i32_61] : memref<7x!tpu.dma_semaphore, #tpu.memory_space<semaphore_mem>> -> memref<1x!tpu.dma_semaphore, #tpu.memory_space<semaphore_mem>>
    %110 = tpu.memref_squeeze %109 : memref<1x!tpu.dma_semaphore, #tpu.memory_space<semaphore_mem>> -> memref<!tpu.dma_semaphore, #tpu.memory_space<semaphore_mem>>
    tpu.wait_dma2 semaphore(%110 : memref<!tpu.dma_semaphore, #tpu.memory_space<semaphore_mem>>) src(%107 : memref<512x256xf32, #tpu.memory_space<any>>) dst(%108 : memref<512x256xf32, #tpu.memory_space<vmem>>)
    %c0_66 = arith.constant 0 : index
    %c512 = arith.constant 512 : index
    %111 = vector.load %arg10[%c0_66, %c512] : memref<512x1024xf32, #tpu.memory_space<vmem>>, vector<512x256xf32>
    %cst_67 = arith.constant dense<0.000000e+00> : vector<8x256xf32>
    %112 = tpu.matmul %94, %111, %cst_67 {dimension_numbers = #tpu.dot_dimension_numbers<[1], [0], [0], [1], [0, 0, 1, 1], [], []>} : vector<8x512xf32>, vector<512x256xf32>, vector<8x256xf32> -> vector<8x256xf32>
    %c5_i32_68 = arith.constant 5 : i32
    %c0_i32_69 = arith.constant 0 : i32
    %c768_i32_70 = arith.constant 768 : i32
    %113 = tpu.memref_slice %arg5[%c0_i32_69, %c768_i32_70] : memref<512x1024xf32, #tpu.memory_space<any>> -> memref<512x256xf32, #tpu.memory_space<any>>
    %c0_i32_71 = arith.constant 0 : i32
    %c768_i32_72 = arith.constant 768 : i32
    %114 = tpu.memref_slice %arg10[%c0_i32_71, %c768_i32_72] : memref<512x1024xf32, #tpu.memory_space<vmem>> -> memref<512x256xf32, #tpu.memory_space<vmem>>
    %115 = tpu.memref_slice %arg12[%c5_i32_68] : memref<7x!tpu.dma_semaphore, #tpu.memory_space<semaphore_mem>> -> memref<1x!tpu.dma_semaphore, #tpu.memory_space<semaphore_mem>>
    %116 = tpu.memref_squeeze %115 : memref<1x!tpu.dma_semaphore, #tpu.memory_space<semaphore_mem>> -> memref<!tpu.dma_semaphore, #tpu.memory_space<semaphore_mem>>
    tpu.wait_dma2 semaphore(%116 : memref<!tpu.dma_semaphore, #tpu.memory_space<semaphore_mem>>) src(%113 : memref<512x256xf32, #tpu.memory_space<any>>) dst(%114 : memref<512x256xf32, #tpu.memory_space<vmem>>)
    %c0_73 = arith.constant 0 : index
    %c768 = arith.constant 768 : index
    %117 = vector.load %arg10[%c0_73, %c768] : memref<512x1024xf32, #tpu.memory_space<vmem>>, vector<512x256xf32>
    %cst_74 = arith.constant dense<0.000000e+00> : vector<8x256xf32>
    %118 = tpu.matmul %94, %117, %cst_74 {dimension_numbers = #tpu.dot_dimension_numbers<[1], [0], [0], [1], [0, 0, 1, 1], [], []>} : vector<8x512xf32>, vector<512x256xf32>, vector<8x256xf32> -> vector<8x256xf32>
    %119 = tpu.concatenate %100, %106, %112, %118 in 1 : vector<8x256xf32>, vector<8x256xf32>, vector<8x256xf32>, vector<8x256xf32> -> vector<8x1024xf32>
    %c0_75 = arith.constant 0 : index
    %c1664 = arith.constant 1664 : index
    %120 = vector.load %arg2[%c0_75, %c1664] : memref<1x3840xf32, #tpu.memory_space<vmem>>, vector<1x1024xf32>
    %c0_76 = arith.constant 0 : index
    %c2688 = arith.constant 2688 : index
    %121 = vector.load %arg2[%c0_76, %c2688] : memref<1x3840xf32, #tpu.memory_space<vmem>>, vector<1x1024xf32>
    %cst_77 = arith.constant dense<0.000000e+00> : vector<1024xf32>
    %122 = vector.multi_reduction <add>, %119, %cst_77 [0] : vector<8x1024xf32> to vector<1024xf32>
    %123 = vector.shape_cast %122 : vector<1024xf32> to vector<1x1024xf32>
    %cst_78 = arith.constant 8.000000e+00 : f32
    %124 = vector.broadcast %cst_78 : f32 to vector<1x1024xf32>
    %125 = arith.divf %123, %124 : vector<1x1024xf32>
    %126 = vector.broadcast %125 : vector<1x1024xf32> to vector<8x1024xf32>
    %127 = arith.subf %119, %126 : vector<8x1024xf32>
    %128 = arith.mulf %127, %127 : vector<8x1024xf32>
    %cst_79 = arith.constant dense<0.000000e+00> : vector<1024xf32>
    %129 = vector.multi_reduction <add>, %128, %cst_79 [0] : vector<8x1024xf32> to vector<1024xf32>
    %130 = vector.shape_cast %129 : vector<1024xf32> to vector<1x1024xf32>
    %cst_80 = arith.constant 8.000000e+00 : f32
    %131 = vector.broadcast %cst_80 : f32 to vector<1x1024xf32>
    %132 = arith.divf %130, %131 : vector<1x1024xf32>
    %cst_81 = arith.constant 8.000000e-01 : f32
    %133 = vector.broadcast %cst_81 : f32 to vector<1x1024xf32>
    %134 = arith.addf %132, %133 : vector<1x1024xf32>
    %135 = math.rsqrt %134 : vector<1x1024xf32>
    %136 = vector.broadcast %135 : vector<1x1024xf32> to vector<8x1024xf32>
    %137 = arith.mulf %127, %136 : vector<8x1024xf32>
    %138 = vector.broadcast %120 : vector<1x1024xf32> to vector<8x1024xf32>
    %139 = arith.mulf %137, %138 : vector<8x1024xf32>
    %140 = vector.broadcast %121 : vector<1x1024xf32> to vector<8x1024xf32>
    %141 = arith.addf %139, %140 : vector<8x1024xf32>
    %cst_82 = arith.constant 0.000000e+00 : f32
    %142 = vector.broadcast %cst_82 : f32 to vector<8x1024xf32>
    %143 = arith.cmpf ogt, %141, %142 : vector<8x1024xf32>
    %cst_83 = arith.constant 2.000000e-01 : f32
    %144 = vector.broadcast %cst_83 : f32 to vector<8x1024xf32>
    %145 = arith.mulf %144, %141 : vector<8x1024xf32>
    %146 = arith.select %143, %141, %145 : vector<8x1024xi1>, vector<8x1024xf32>
    %c6_i32_84 = arith.constant 6 : i32
    %147 = tpu.memref_slice %arg12[%c6_i32_84] : memref<7x!tpu.dma_semaphore, #tpu.memory_space<semaphore_mem>> -> memref<1x!tpu.dma_semaphore, #tpu.memory_space<semaphore_mem>>
    %148 = tpu.memref_squeeze %147 : memref<1x!tpu.dma_semaphore, #tpu.memory_space<semaphore_mem>> -> memref<!tpu.dma_semaphore, #tpu.memory_space<semaphore_mem>>
    tpu.wait_dma2 semaphore(%148 : memref<!tpu.dma_semaphore, #tpu.memory_space<semaphore_mem>>) src(%arg6 : memref<1024x64xf32, #tpu.memory_space<any>>) dst(%arg11 : memref<1024x64xf32, #tpu.memory_space<vmem>>)
    %c0_85 = arith.constant 0 : index
    %c0_86 = arith.constant 0 : index
    %149 = vector.load %arg11[%c0_85, %c0_86] : memref<1024x64xf32, #tpu.memory_space<vmem>>, vector<1024x64xf32>
    %cst_87 = arith.constant dense<0.000000e+00> : vector<8x64xf32>
    %150 = tpu.matmul %146, %149, %cst_87 {dimension_numbers = #tpu.dot_dimension_numbers<[1], [0], [0], [1], [0, 0, 1, 1], [], []>} : vector<8x1024xf32>, vector<1024x64xf32>, vector<8x64xf32> -> vector<8x64xf32>
    %c0_88 = arith.constant 0 : index
    %c3712 = arith.constant 3712 : index
    %151 = vector.load %arg2[%c0_88, %c3712] : memref<1x3840xf32, #tpu.memory_space<vmem>>, vector<1x64xf32>
    %152 = vector.broadcast %151 : vector<1x64xf32> to vector<8x64xf32>
    %153 = arith.addf %150, %152 : vector<8x64xf32>
    %154 = math.tanh %153 : vector<8x64xf32>
    %c0_89 = arith.constant 0 : index
    %c0_90 = arith.constant 0 : index
    %155 = vector.load %arg7[%c0_89, %c0_90] : memref<8x64xf32, #tpu.memory_space<vmem>>, vector<8x64xf32>
    tpu.vector_store %arg7[%c0_89, %c0_90], %154 {strides = array<i32>} : memref<8x64xf32, #tpu.memory_space<vmem>>, vector<8x64xf32>,
    return
  }
}

</mosaic_0001>

<llo_original>
// kernel: tpu_custom_call.1
$region0: #{tpu_custom_call.1}
  #allocation0 [shape = 'u32[]', space=smem, size = 0x4, offset = 0x4, fixed_abs, tag = 'smem constant byte address 0x4 - core index']
  #allocation1 [shape = 'u32[144,128]{1,0:T(1,128)}', space=vmem, size = 0x12000, scoped, tag = 'internal scratch']
  #allocation2 [shape = 'f32[128,256]{1,0:T(8,128)}', space=vmem, size = 0x20000, scoped, tag = 'scratch operand']
  #allocation3 [shape = 'f32[256,512]{1,0:T(8,128)}', space=vmem, size = 0x80000, scoped, tag = 'scratch operand']
  #allocation4 [shape = 'f32[512,1024]{1,0:T(8,128)}', space=vmem, size = 0x200000, scoped, tag = 'scratch operand']
  #allocation5 [shape = 'f32[1024,64]{1,0:T(8,128)}', space=vmem, size = 0x80000, scoped, tag = 'scratch operand']
  #allocation6 [shape = 's32[7]{0}', space=sflag, size = 0x1c, scoped, tag = 'scratch operand']
  #allocation14 [shape = 's32[]', space=sflag, size = 0x4, offset = 0, fixed_abs, tag = 'sflag constant byte address 0x0 - dummy sync flag']
  #allocation15 [shape = 's32[]', space=sflag, size = 0x4, offset = 0, fixed_abs, tag = 'sflag constant byte address 0x0 - dummy sync flag']
  #allocation16 [shape = 'u32[]', space=smem, size = 0x4, offset = 0x44, fixed_abs, tag = 'smem constant byte address 0x44 - assertion arg 0']
  #allocation17 [shape = 'u32[]', space=smem, size = 0x4, offset = 0x48, fixed_abs, tag = 'smem constant byte address 0x48 - assertion arg 1']
  #allocation18 [shape = 's32[]', space=sflag, size = 0x4, offset = 0, fixed_abs, tag = 'sflag constant byte address 0x0 - dummy sync flag']
  #allocation19 [shape = 's32[]', space=sflag, size = 0x4, offset = 0, fixed_abs, tag = 'sflag constant byte address 0x0 - dummy sync flag']
  #allocation20 [shape = 's32[]', space=sflag, size = 0x4, offset = 0, fixed_abs, tag = 'sflag constant byte address 0x0 - dummy sync flag']
  #allocation21 [shape = 's32[]', space=sflag, size = 0x4, offset = 0, fixed_abs, tag = 'sflag constant byte address 0x0 - dummy sync flag']
  #allocation22 [shape = 's32[]', space=sflag, size = 0x4, offset = 0, fixed_abs, tag = 'sflag constant byte address 0x0 - dummy sync flag']
  #allocation23 [shape = 's32[]', space=sflag, size = 0x4, offset = 0, fixed_abs, tag = 'sflag constant byte address 0x0 - dummy sync flag']
  #allocation24 [shape = 's32[]', space=sflag, size = 0x4, offset = 0, fixed_abs, tag = 'sflag constant byte address 0x0 - dummy sync flag']
  %s0 = inlined_call_operand.hbm [shape: f32[8,32], index: 0, kind: input, shape index: {}]
  %s1 = inlined_call_operand.hbm [shape: f32[32,128], index: 1, kind: input, shape index: {}]
  %s2 = inlined_call_operand.hbm [shape: f32[1,3840], index: 2, kind: input, shape index: {}]
  %s3 = inlined_call_operand.hbm [shape: f32[128,256], index: 3, kind: input, shape index: {}]
  %s4 = inlined_call_operand.hbm [shape: f32[256,512], index: 4, kind: input, shape index: {}]
  %s5 = inlined_call_operand.hbm [shape: f32[512,1024], index: 5, kind: input, shape index: {}]
  %s6 = inlined_call_operand.vmem [shape: f32[1024,64], index: 6, kind: input, shape index: {}]
  %s7 = inlined_call_operand.hbm [shape: f32[8,64], index: 7, kind: output, shape index: {}]
  %s8 = sld [smem:[#allocation0]]
  $region76: #{tpu_custom_call.1} parent=0
    _
  %s10 = ssub.s32 1, %s8
  %s11 = scalar_select 0, %s10, %s8
  $region1: #{tpu_custom_call.1} parent=0
    #allocation7 [shape = 'u8[4096]{0}', space=vmem, size = 0x1000, scoped, tag = 'input window, operand 0, single buffered']
    #allocation8 [shape = 's32[1]{0}', space=sflag, size = 0x4, scoped, tag = 'scoped memory for tpu_custom_call.1']
    #allocation9 [shape = 's32[1]{0}', space=sflag, size = 0x4, scoped, tag = 'scoped memory for tpu_custom_call.1']
    #allocation10 [shape = 'u8[16384]{0}', space=vmem, size = 0x4000, scoped, tag = 'input window, operand 1, single buffered']
    #allocation11 [shape = 's32[1]{0}', space=sflag, size = 0x4, scoped, tag = 'scoped memory for tpu_custom_call.1']
    #allocation12 [shape = 'u8[15360]{0}', space=vmem, size = 0x3c00, scoped, tag = 'input window, operand 2, single buffered']
    #allocation13 [shape = 'u8[4096]{0}', space=vmem, size = 0x1000, scoped, tag = 'output window, operand 0, single buffered']
    %12 = vsyncpa [#allocation8], 0
    %13 = vsyncpa [#allocation11], 0
    %14 = vsyncpa [#allocation9], 0
    // Predicated region
    $region2: #{tpu_custom_call.1} parent=1 // pred_check
      _
    $region3: #{tpu_custom_call.1} parent=1 // pred_check_branch
      %16 = sbr.rel (0) target = $region5
    $region4: #{tpu_custom_call.1} parent=1 // pred_region
      %s18 = ssub.s32 128, 128
      %19 = vsyncadd [#allocation8], %s18
      %s21 = sshll.u32 [#allocation7], 4
      %s22 = int_to_ptr.vmem [resolvable:$true] %s21
      %24 = dma.hbm_to_vmem [thread:$0]  %s0, 128, %s22, [#allocation8]
    $region5: #{tpu_custom_call.1} parent=1 // pred_fallthru
      _
    // Predicated region
    $region6: #{tpu_custom_call.1} parent=1 // pred_check
      _
    $region7: #{tpu_custom_call.1} parent=1 // pred_check_branch
      %26 = sbr.rel (0) target = $region9
    $region8: #{tpu_custom_call.1} parent=1 // pred_region
      %s28 = ssub.s32 512, 512
      %29 = vsyncadd [#allocation11], %s28
      %s30 = sshll.u32 [#allocation10], 4
      %s31 = int_to_ptr.vmem [resolvable:$true] %s30
      %36 = dma.hbm_to_vmem [thread:$0]  %s1, 512, %s31, [#allocation11], 128, 128, 8
    $region9: #{tpu_custom_call.1} parent=1 // pred_fallthru
      _
    // Predicated region
    $region10: #{tpu_custom_call.1} parent=1 // pred_check
      _
    $region11: #{tpu_custom_call.1} parent=1 // pred_check_branch
      %38 = sbr.rel (0) target = $region13
    $region12: #{tpu_custom_call.1} parent=1 // pred_region
      %s40 = ssub.s32 480, 480
      %41 = vsyncadd [#allocation11], %s40
      %s43 = sshll.u32 [#allocation12], 4
      %s44 = int_to_ptr.vmem [resolvable:$true] %s43
      %46 = dma.hbm_to_vmem [thread:$0]  %s2, 480, %s44, [#allocation11]
    $region13: #{tpu_custom_call.1} parent=1 // pred_fallthru
      _
    // Predicated region
    $region14: #{tpu_custom_call.1} parent=1 // pred_check
      _
    $region15: #{tpu_custom_call.1} parent=1 // pred_check_branch
      %48 = sbr.rel (0) target = $region17
    $region16: #{tpu_custom_call.1} parent=1 // pred_region
      %49 = dma.done [#allocation8], 128
    $region17: #{tpu_custom_call.1} parent=1 // pred_fallthru
      _
    // Predicated region
    $region18: #{tpu_custom_call.1} parent=1 // pred_check
      _
    $region19: #{tpu_custom_call.1} parent=1 // pred_check_branch
      %51 = sbr.rel (0) target = $region21
    $region20: #{tpu_custom_call.1} parent=1 // pred_region
      %52 = dma.done [#allocation11], 512
    $region21: #{tpu_custom_call.1} parent=1 // pred_fallthru
      _
    // Predicated region
    $region22: #{tpu_custom_call.1} parent=1 // pred_check
      _
    $region23: #{tpu_custom_call.1} parent=1 // pred_check_branch
      %54 = sbr.rel (0) target = $region25
    $region24: #{tpu_custom_call.1} parent=1 // pred_region
      %55 = dma.done [#allocation11], 480
    $region25: #{tpu_custom_call.1} parent=1 // pred_fallthru
      _
    // Predicated region
    $region26: #{tpu_custom_call.1} parent=1 // pred_check
      _
    $region27: #{tpu_custom_call.1} parent=1 // pred_check_branch
      %57 = sbr.rel target = $region29
    $region28: #{tpu_custom_call.1} parent=1 // pred_region
      %58 = sst [smem:[#allocation16]] [#allocation15]
      %59 = sst [smem:[#allocation17]] [#allocation14]
    $region29: #{tpu_custom_call.1} parent=1 // pred_fallthru
      _
    %61 = shalt.err (0)
    %s63 = sshll.u32 [#allocation2], 4
    %s64 = int_to_ptr.vmem [resolvable:$true] %s63
    %66 = dma.hbm_to_vmem [thread:$0]  %s3, 4096, %s64, [#allocation6]
    %s67 = scalar_lea.sflag [#allocation6], 1
    // Predicated region
    $region30: #{tpu_custom_call.1} parent=1 // pred_check
      _
    $region31: #{tpu_custom_call.1} parent=1 // pred_check_branch
      %69 = sbr.rel target = $region33
    $region32: #{tpu_custom_call.1} parent=1 // pred_region
      %70 = sst [smem:[#allocation16]] [#allocation19]
      %71 = sst [smem:[#allocation17]] [#allocation18]
    $region33: #{tpu_custom_call.1} parent=1 // pred_fallthru
      _
    %73 = shalt.err (0)
    %s75 = sshll.u32 [#allocation3], 4
    %s76 = int_to_ptr.vmem [resolvable:$true] %s75
    %78 = dma.hbm_to_vmem [thread:$0]  %s4, 16384, %s76, %s67
    %s79 = scalar_lea.sflag [#allocation6], 2
    %s81 = sshll.u32 [#allocation4], 4
    %s82 = int_to_ptr.vmem [resolvable:$true] %s81
    %84 = dma.hbm_to_vmem [thread:$0]  %s5, 16384, %s82, %s79, 1024, 1024, 16
    %s85 = scalar_lea.hbm %s5, 256
    %s86 = scalar_lea.vmem [#allocation4], 16
    %s87 = scalar_lea.sflag [#allocation6], 3
    %s89 = sshll.u32 %s86, 4
    %s90 = int_to_ptr.vmem [resolvable:$true] %s89
    %92 = dma.hbm_to_vmem [thread:$0]  %s85, 16384, %s90, %s87, 1024, 1024, 16
    %s93 = scalar_lea.hbm %s5, 512
    %s94 = scalar_lea.vmem [#allocation4], 32
    %s95 = scalar_lea.sflag [#allocation6], 4
    %s97 = sshll.u32 %s94, 4
    %s98 = int_to_ptr.vmem [resolvable:$true] %s97
    %100 = dma.hbm_to_vmem [thread:$0]  %s93, 16384, %s98, %s95, 1024, 1024, 16
    %s101 = scalar_lea.hbm %s5, 768
    %s102 = scalar_lea.vmem [#allocation4], 48
    %s103 = scalar_lea.sflag [#allocation6], 5
    %s105 = sshll.u32 %s102, 4
    %s106 = int_to_ptr.vmem [resolvable:$true] %s105
    %108 = dma.hbm_to_vmem [thread:$0]  %s101, 16384, %s106, %s103, 1024, 1024, 16
    %s109 = scalar_lea.sflag [#allocation6], 6
    %p111 = scmp.lt.u32.totalorder 1024, 8
    %p112 = pneg %p111
    // Predicated region
    $region34: #{tpu_custom_call.1} parent=1 // pred_check
      _
    $region35: #{tpu_custom_call.1} parent=1 // pred_check_branch
      %114 = sbr.rel (%p111) target = $region37
    $region36: #{tpu_custom_call.1} parent=1 // pred_region
      %s130 = sand.u32 1024, 7
      %p131 = scmp.eq.s32.totalorder %s130, 0
      // Predicated region
      $region49: #{tpu_custom_call.1} parent=36 // pred_check
        %p132 = pneg %p131
      $region50: #{tpu_custom_call.1} parent=36 // pred_check_branch
        %134 = sbr.rel (%p132) target = $region52
      $region51: #{tpu_custom_call.1} parent=36 // pred_region
        loop: start=0, step=1, limit=1
        $region53: #{tpu_custom_call.1} parent=51 // loop_pre_header
          _
        $region54: #{tpu_custom_call.1} parent=51 // loop_header
          %s136 = sphi 0, %s140
          %p137 = scmp.ge.s32.totalorder %s136, 1
          %s141 = sphi %s6, %s6
          %s142 = sphi [#allocation5], [#allocation5]
        $region55: #{tpu_custom_call.1} parent=51 // loop_header_branch
          %139 = sbr.rel (%p137) target = $region59
        $region56: #{tpu_custom_call.1} parent=51 // loop_body
          %v143 = vld [vmem:[%s141] sm:$0xff]
          %144 = vst [vmem:[%s142] sm:$0xff] %v143
          %v145 = vld [vmem:[%s141 + $0x8] sm:$0xff]
          %146 = vst [vmem:[%s142 + $0x8] sm:$0xff] %v145
          %v147 = vld [vmem:[%s141 + $0x10] sm:$0xff]
          %148 = vst [vmem:[%s142 + $0x10] sm:$0xff] %v147
          %v149 = vld [vmem:[%s141 + $0x18] sm:$0xff]
          %150 = vst [vmem:[%s142 + $0x18] sm:$0xff] %v149
          %v151 = vld [vmem:[%s141 + $0x20] sm:$0xff]
          %152 = vst [vmem:[%s142 + $0x20] sm:$0xff] %v151
          %v153 = vld [vmem:[%s141 + $0x28] sm:$0xff]
          %154 = vst [vmem:[%s142 + $0x28] sm:$0xff] %v153
          %v155 = vld [vmem:[%s141 + $0x30] sm:$0xff]
          %156 = vst [vmem:[%s142 + $0x30] sm:$0xff] %v155
          %v157 = vld [vmem:[%s141 + $0x38] sm:$0xff]
          %158 = vst [vmem:[%s142 + $0x38] sm:$0xff] %v157
          %v159 = vld [vmem:[%s141 + $0x40] sm:$0xff]
          %160 = vst [vmem:[%s142 + $0x40] sm:$0xff] %v159
          %v161 = vld [vmem:[%s141 + $0x48] sm:$0xff]
          %162 = vst [vmem:[%s142 + $0x48] sm:$0xff] %v161
          %v163 = vld [vmem:[%s141 + $0x50] sm:$0xff]
          %164 = vst [vmem:[%s142 + $0x50] sm:$0xff] %v163
          %v165 = vld [vmem:[%s141 + $0x58] sm:$0xff]
          %166 = vst [vmem:[%s142 + $0x58] sm:$0xff] %v165
          %v167 = vld [vmem:[%s141 + $0x60] sm:$0xff]
          %168 = vst [vmem:[%s142 + $0x60] sm:$0xff] %v167
          %v169 = vld [vmem:[%s141 + $0x68] sm:$0xff]
          %170 = vst [vmem:[%s142 + $0x68] sm:$0xff] %v169
          %v171 = vld [vmem:[%s141 + $0x70] sm:$0xff]
          %172 = vst [vmem:[%s142 + $0x70] sm:$0xff] %v171
          %v173 = vld [vmem:[%s141 + $0x78] sm:$0xff]
          %174 = vst [vmem:[%s142 + $0x78] sm:$0xff] %v173
          %v175 = vld [vmem:[%s141 + $0x80] sm:$0xff]
          %176 = vst [vmem:[%s142 + $0x80] sm:$0xff] %v175
          %v177 = vld [vmem:[%s141 + $0x88] sm:$0xff]
          %178 = vst [vmem:[%s142 + $0x88] sm:$0xff] %v177
          %v179 = vld [vmem:[%s141 + $0x90] sm:$0xff]
          %180 = vst [vmem:[%s142 + $0x90] sm:$0xff] %v179
          %v181 = vld [vmem:[%s141 + $0x98] sm:$0xff]
          %182 = vst [vmem:[%s142 + $0x98] sm:$0xff] %v181
          %v183 = vld [vmem:[%s141 + $0xa0] sm:$0xff]
          %184 = vst [vmem:[%s142 + $0xa0] sm:$0xff] %v183
          %v185 = vld [vmem:[%s141 + $0xa8] sm:$0xff]
          %186 = vst [vmem:[%s142 + $0xa8] sm:$0xff] %v185
          %v187 = vld [vmem:[%s141 + $0xb0] sm:$0xff]
          %188 = vst [vmem:[%s142 + $0xb0] sm:$0xff] %v187
          %v189 = vld [vmem:[%s141 + $0xb8] sm:$0xff]
          %190 = vst [vmem:[%s142 + $0xb8] sm:$0xff] %v189
          %v191 = vld [vmem:[%s141 + $0xc0] sm:$0xff]
          %192 = vst [vmem:[%s142 + $0xc0] sm:$0xff] %v191
          %v193 = vld [vmem:[%s141 + $0xc8] sm:$0xff]
          %194 = vst [vmem:[%s142 + $0xc8] sm:$0xff] %v193
          %v195 = vld [vmem:[%s141 + $0xd0] sm:$0xff]
          %196 = vst [vmem:[%s142 + $0xd0] sm:$0xff] %v195
          %v197 = vld [vmem:[%s141 + $0xd8] sm:$0xff]
          %198 = vst [vmem:[%s142 + $0xd8] sm:$0xff] %v197
          %v199 = vld [vmem:[%s141 + $0xe0] sm:$0xff]
          %200 = vst [vmem:[%s142 + $0xe0] sm:$0xff] %v199
          %v201 = vld [vmem:[%s141 + $0xe8] sm:$0xff]
          %202 = vst [vmem:[%s142 + $0xe8] sm:$0xff] %v201
          %v203 = vld [vmem:[%s141 + $0xf0] sm:$0xff]
          %204 = vst [vmem:[%s142 + $0xf0] sm:$0xff] %v203
          %v205 = vld [vmem:[%s141 + $0xf8] sm:$0xff]
          %206 = vst [vmem:[%s142 + $0xf8] sm:$0xff] %v205
          %v207 = vld [vmem:[%s141 + $0x100] sm:$0xff]
          %208 = vst [vmem:[%s142 + $0x100] sm:$0xff] %v207
          %v209 = vld [vmem:[%s141 + $0x108] sm:$0xff]
          %210 = vst [vmem:[%s142 + $0x108] sm:$0xff] %v209
          %v211 = vld [vmem:[%s141 + $0x110] sm:$0xff]
          %212 = vst [vmem:[%s142 + $0x110] sm:$0xff] %v211
          %v213 = vld [vmem:[%s141 + $0x118] sm:$0xff]
          %214 = vst [vmem:[%s142 + $0x118] sm:$0xff] %v213
          %v215 = vld [vmem:[%s141 + $0x120] sm:$0xff]
          %216 = vst [vmem:[%s142 + $0x120] sm:$0xff] %v215
          %v217 = vld [vmem:[%s141 + $0x128] sm:$0xff]
          %218 = vst [vmem:[%s142 + $0x128] sm:$0xff] %v217
          %v219 = vld [vmem:[%s141 + $0x130] sm:$0xff]
          %220 = vst [vmem:[%s142 + $0x130] sm:$0xff] %v219
          %v221 = vld [vmem:[%s141 + $0x138] sm:$0xff]
          %222 = vst [vmem:[%s142 + $0x138] sm:$0xff] %v221
          %v223 = vld [vmem:[%s141 + $0x140] sm:$0xff]
          %224 = vst [vmem:[%s142 + $0x140] sm:$0xff] %v223
          %v225 = vld [vmem:[%s141 + $0x148] sm:$0xff]
          %226 = vst [vmem:[%s142 + $0x148] sm:$0xff] %v225
          %v227 = vld [vmem:[%s141 + $0x150] sm:$0xff]
          %228 = vst [vmem:[%s142 + $0x150] sm:$0xff] %v227
          %v229 = vld [vmem:[%s141 + $0x158] sm:$0xff]
          %230 = vst [vmem:[%s142 + $0x158] sm:$0xff] %v229
          %v231 = vld [vmem:[%s141 + $0x160] sm:$0xff]
          %232 = vst [vmem:[%s142 + $0x160] sm:$0xff] %v231
          %v233 = vld [vmem:[%s141 + $0x168] sm:$0xff]
          %234 = vst [vmem:[%s142 + $0x168] sm:$0xff] %v233
          %v235 = vld [vmem:[%s141 + $0x170] sm:$0xff]
          %236 = vst [vmem:[%s142 + $0x170] sm:$0xff] %v235
          %v237 = vld [vmem:[%s141 + $0x178] sm:$0xff]
          %238 = vst [vmem:[%s142 + $0x178] sm:$0xff] %v237
          %v239 = vld [vmem:[%s141 + $0x180] sm:$0xff]
          %240 = vst [vmem:[%s142 + $0x180] sm:$0xff] %v239
          %v241 = vld [vmem:[%s141 + $0x188] sm:$0xff]
          %242 = vst [vmem:[%s142 + $0x188] sm:$0xff] %v241
          %v243 = vld [vmem:[%s141 + $0x190] sm:$0xff]
          %244 = vst [vmem:[%s142 + $0x190] sm:$0xff] %v243
          %v245 = vld [vmem:[%s141 + $0x198] sm:$0xff]
          %246 = vst [vmem:[%s142 + $0x198] sm:$0xff] %v245
          %v247 = vld [vmem:[%s141 + $0x1a0] sm:$0xff]
          %248 = vst [vmem:[%s142 + $0x1a0] sm:$0xff] %v247
          %v249 = vld [vmem:[%s141 + $0x1a8] sm:$0xff]
          %250 = vst [vmem:[%s142 + $0x1a8] sm:$0xff] %v249
          %v251 = vld [vmem:[%s141 + $0x1b0] sm:$0xff]
          %252 = vst [vmem:[%s142 + $0x1b0] sm:$0xff] %v251
          %v253 = vld [vmem:[%s141 + $0x1b8] sm:$0xff]
          %254 = vst [vmem:[%s142 + $0x1b8] sm:$0xff] %v253
          %v255 = vld [vmem:[%s141 + $0x1c0] sm:$0xff]
          %256 = vst [vmem:[%s142 + $0x1c0] sm:$0xff] %v255
          %v257 = vld [vmem:[%s141 + $0x1c8] sm:$0xff]
          %258 = vst [vmem:[%s142 + $0x1c8] sm:$0xff] %v257
          %v259 = vld [vmem:[%s141 + $0x1d0] sm:$0xff]
          %260 = vst [vmem:[%s142 + $0x1d0] sm:$0xff] %v259
          %v261 = vld [vmem:[%s141 + $0x1d8] sm:$0xff]
          %262 = vst [vmem:[%s142 + $0x1d8] sm:$0xff] %v261
          %v263 = vld [vmem:[%s141 + $0x1e0] sm:$0xff]
          %264 = vst [vmem:[%s142 + $0x1e0] sm:$0xff] %v263
          %v265 = vld [vmem:[%s141 + $0x1e8] sm:$0xff]
          %266 = vst [vmem:[%s142 + $0x1e8] sm:$0xff] %v265
          %v267 = vld [vmem:[%s141 + $0x1f0] sm:$0xff]
          %268 = vst [vmem:[%s142 + $0x1f0] sm:$0xff] %v267
          %v269 = vld [vmem:[%s141 + $0x1f8] sm:$0xff]
          %270 = vst [vmem:[%s142 + $0x1f8] sm:$0xff] %v269
          %v271 = vld [vmem:[%s141 + $0x200] sm:$0xff]
          %272 = vst [vmem:[%s142 + $0x200] sm:$0xff] %v271
          %v273 = vld [vmem:[%s141 + $0x208] sm:$0xff]
          %274 = vst [vmem:[%s142 + $0x208] sm:$0xff] %v273
          %v275 = vld [vmem:[%s141 + $0x210] sm:$0xff]
          %276 = vst [vmem:[%s142 + $0x210] sm:$0xff] %v275
          %v277 = vld [vmem:[%s141 + $0x218] sm:$0xff]
          %278 = vst [vmem:[%s142 + $0x218] sm:$0xff] %v277
          %v279 = vld [vmem:[%s141 + $0x220] sm:$0xff]
          %280 = vst [vmem:[%s142 + $0x220] sm:$0xff] %v279
          %v281 = vld [vmem:[%s141 + $0x228] sm:$0xff]
          %282 = vst [vmem:[%s142 + $0x228] sm:$0xff] %v281
          %v283 = vld [vmem:[%s141 + $0x230] sm:$0xff]
          %284 = vst [vmem:[%s142 + $0x230] sm:$0xff] %v283
          %v285 = vld [vmem:[%s141 + $0x238] sm:$0xff]
          %286 = vst [vmem:[%s142 + $0x238] sm:$0xff] %v285
          %v287 = vld [vmem:[%s141 + $0x240] sm:$0xff]
          %288 = vst [vmem:[%s142 + $0x240] sm:$0xff] %v287
          %v289 = vld [vmem:[%s141 + $0x248] sm:$0xff]
          %290 = vst [vmem:[%s142 + $0x248] sm:$0xff] %v289
          %v291 = vld [vmem:[%s141 + $0x250] sm:$0xff]
          %292 = vst [vmem:[%s142 + $0x250] sm:$0xff] %v291
          %v293 = vld [vmem:[%s141 + $0x258] sm:$0xff]
          %294 = vst [vmem:[%s142 + $0x258] sm:$0xff] %v293
          %v295 = vld [vmem:[%s141 + $0x260] sm:$0xff]
          %296 = vst [vmem:[%s142 + $0x260] sm:$0xff] %v295
          %v297 = vld [vmem:[%s141 + $0x268] sm:$0xff]
          %298 = vst [vmem:[%s142 + $0x268] sm:$0xff] %v297
          %v299 = vld [vmem:[%s141 + $0x270] sm:$0xff]
          %300 = vst [vmem:[%s142 + $0x270] sm:$0xff] %v299
          %v301 = vld [vmem:[%s141 + $0x278] sm:$0xff]
          %302 = vst [vmem:[%s142 + $0x278] sm:$0xff] %v301
          %v303 = vld [vmem:[%s141 + $0x280] sm:$0xff]
          %304 = vst [vmem:[%s142 + $0x280] sm:$0xff] %v303
          %v305 = vld [vmem:[%s141 + $0x288] sm:$0xff]
          %306 = vst [vmem:[%s142 + $0x288] sm:$0xff] %v305
          %v307 = vld [vmem:[%s141 + $0x290] sm:$0xff]
          %308 = vst [vmem:[%s142 + $0x290] sm:$0xff] %v307
          %v309 = vld [vmem:[%s141 + $0x298] sm:$0xff]
          %310 = vst [vmem:[%s142 + $0x298] sm:$0xff] %v309
          %v311 = vld [vmem:[%s141 + $0x2a0] sm:$0xff]
          %312 = vst [vmem:[%s142 + $0x2a0] sm:$0xff] %v311
          %v313 = vld [vmem:[%s141 + $0x2a8] sm:$0xff]
          %314 = vst [vmem:[%s142 + $0x2a8] sm:$0xff] %v313
          %v315 = vld [vmem:[%s141 + $0x2b0] sm:$0xff]
          %316 = vst [vmem:[%s142 + $0x2b0] sm:$0xff] %v315
          %v317 = vld [vmem:[%s141 + $0x2b8] sm:$0xff]
          %318 = vst [vmem:[%s142 + $0x2b8] sm:$0xff] %v317
          %v319 = vld [vmem:[%s141 + $0x2c0] sm:$0xff]
          %320 = vst [vmem:[%s142 + $0x2c0] sm:$0xff] %v319
          %v321 = vld [vmem:[%s141 + $0x2c8] sm:$0xff]
          %322 = vst [vmem:[%s142 + $0x2c8] sm:$0xff] %v321
          %v323 = vld [vmem:[%s141 + $0x2d0] sm:$0xff]
          %324 = vst [vmem:[%s142 + $0x2d0] sm:$0xff] %v323
          %v325 = vld [vmem:[%s141 + $0x2d8] sm:$0xff]
          %326 = vst [vmem:[%s142 + $0x2d8] sm:$0xff] %v325
          %v327 = vld [vmem:[%s141 + $0x2e0] sm:$0xff]
          %328 = vst [vmem:[%s142 + $0x2e0] sm:$0xff] %v327
          %v329 = vld [vmem:[%s141 + $0x2e8] sm:$0xff]
          %330 = vst [vmem:[%s142 + $0x2e8] sm:$0xff] %v329
          %v331 = vld [vmem:[%s141 + $0x2f0] sm:$0xff]
          %332 = vst [vmem:[%s142 + $0x2f0] sm:$0xff] %v331
          %v333 = vld [vmem:[%s141 + $0x2f8] sm:$0xff]
          %334 = vst [vmem:[%s142 + $0x2f8] sm:$0xff] %v333
          %v335 = vld [vmem:[%s141 + $0x300] sm:$0xff]
          %336 = vst [vmem:[%s142 + $0x300] sm:$0xff] %v335
          %v337 = vld [vmem:[%s141 + $0x308] sm:$0xff]
          %338 = vst [vmem:[%s142 + $0x308] sm:$0xff] %v337
          %v339 = vld [vmem:[%s141 + $0x310] sm:$0xff]
          %340 = vst [vmem:[%s142 + $0x310] sm:$0xff] %v339
          %v341 = vld [vmem:[%s141 + $0x318] sm:$0xff]
          %342 = vst [vmem:[%s142 + $0x318] sm:$0xff] %v341
          %v343 = vld [vmem:[%s141 + $0x320] sm:$0xff]
          %344 = vst [vmem:[%s142 + $0x320] sm:$0xff] %v343
          %v345 = vld [vmem:[%s141 + $0x328] sm:$0xff]
          %346 = vst [vmem:[%s142 + $0x328] sm:$0xff] %v345
          %v347 = vld [vmem:[%s141 + $0x330] sm:$0xff]
          %348 = vst [vmem:[%s142 + $0x330] sm:$0xff] %v347
          %v349 = vld [vmem:[%s141 + $0x338] sm:$0xff]
          %350 = vst [vmem:[%s142 + $0x338] sm:$0xff] %v349
          %v351 = vld [vmem:[%s141 + $0x340] sm:$0xff]
          %352 = vst [vmem:[%s142 + $0x340] sm:$0xff] %v351
          %v353 = vld [vmem:[%s141 + $0x348] sm:$0xff]
          %354 = vst [vmem:[%s142 + $0x348] sm:$0xff] %v353
          %v355 = vld [vmem:[%s141 + $0x350] sm:$0xff]
          %356 = vst [vmem:[%s142 + $0x350] sm:$0xff] %v355
          %v357 = vld [vmem:[%s141 + $0x358] sm:$0xff]
          %358 = vst [vmem:[%s142 + $0x358] sm:$0xff] %v357
          %v359 = vld [vmem:[%s141 + $0x360] sm:$0xff]
          %360 = vst [vmem:[%s142 + $0x360] sm:$0xff] %v359
          %v361 = vld [vmem:[%s141 + $0x368] sm:$0xff]
          %362 = vst [vmem:[%s142 + $0x368] sm:$0xff] %v361
          %v363 = vld [vmem:[%s141 + $0x370] sm:$0xff]
          %364 = vst [vmem:[%s142 + $0x370] sm:$0xff] %v363
          %v365 = vld [vmem:[%s141 + $0x378] sm:$0xff]
          %366 = vst [vmem:[%s142 + $0x378] sm:$0xff] %v365
          %v367 = vld [vmem:[%s141 + $0x380] sm:$0xff]
          %368 = vst [vmem:[%s142 + $0x380] sm:$0xff] %v367
          %v369 = vld [vmem:[%s141 + $0x388] sm:$0xff]
          %370 = vst [vmem:[%s142 + $0x388] sm:$0xff] %v369
          %v371 = vld [vmem:[%s141 + $0x390] sm:$0xff]
          %372 = vst [vmem:[%s142 + $0x390] sm:$0xff] %v371
          %v373 = vld [vmem:[%s141 + $0x398] sm:$0xff]
          %374 = vst [vmem:[%s142 + $0x398] sm:$0xff] %v373
          %v375 = vld [vmem:[%s141 + $0x3a0] sm:$0xff]
          %376 = vst [vmem:[%s142 + $0x3a0] sm:$0xff] %v375
          %v377 = vld [vmem:[%s141 + $0x3a8] sm:$0xff]
          %378 = vst [vmem:[%s142 + $0x3a8] sm:$0xff] %v377
          %v379 = vld [vmem:[%s141 + $0x3b0] sm:$0xff]
          %380 = vst [vmem:[%s142 + $0x3b0] sm:$0xff] %v379
          %v381 = vld [vmem:[%s141 + $0x3b8] sm:$0xff]
          %382 = vst [vmem:[%s142 + $0x3b8] sm:$0xff] %v381
          %v383 = vld [vmem:[%s141 + $0x3c0] sm:$0xff]
          %384 = vst [vmem:[%s142 + $0x3c0] sm:$0xff] %v383
          %v385 = vld [vmem:[%s141 + $0x3c8] sm:$0xff]
          %386 = vst [vmem:[%s142 + $0x3c8] sm:$0xff] %v385
          %v387 = vld [vmem:[%s141 + $0x3d0] sm:$0xff]
          %388 = vst [vmem:[%s142 + $0x3d0] sm:$0xff] %v387
          %v389 = vld [vmem:[%s141 + $0x3d8] sm:$0xff]
          %390 = vst [vmem:[%s142 + $0x3d8] sm:$0xff] %v389
          %v391 = vld [vmem:[%s141 + $0x3e0] sm:$0xff]
          %392 = vst [vmem:[%s142 + $0x3e0] sm:$0xff] %v391
          %v393 = vld [vmem:[%s141 + $0x3e8] sm:$0xff]
          %394 = vst [vmem:[%s142 + $0x3e8] sm:$0xff] %v393
          %v395 = vld [vmem:[%s141 + $0x3f0] sm:$0xff]
          %396 = vst [vmem:[%s142 + $0x3f0] sm:$0xff] %v395
          %v397 = vld [vmem:[%s141 + $0x3f8] sm:$0xff]
          %398 = vst [vmem:[%s142 + $0x3f8] sm:$0xff] %v397
        $region57: #{tpu_custom_call.1} parent=51 // loop_footer
          %s140 = sadd.s32 1, %s136
        $region58: #{tpu_custom_call.1} parent=51 // loop_footer_branch
          %135 = sbr.rel target = $region54
        $region59: #{tpu_custom_call.1} parent=51 // loop_exit
          _
      $region52: #{tpu_custom_call.1} parent=36 // pred_fallthru
        _
      %p399 = pneg %p131
      // Predicated region
      $region60: #{tpu_custom_call.1} parent=36 // pred_check
        _
      $region61: #{tpu_custom_call.1} parent=36 // pred_check_branch
        %401 = sbr.rel (%p131) target = $region63
      $region62: #{tpu_custom_call.1} parent=36 // pred_region
        %s402 = sand.u32 1024, 7
      $region63: #{tpu_custom_call.1} parent=36 // pred_fallthru
        _
    $region37: #{tpu_custom_call.1} parent=1 // pred_fallthru
      _
    // Predicated region
    $region38: #{tpu_custom_call.1} parent=1 // pred_check
      %p115 = pneg %p111
    $region39: #{tpu_custom_call.1} parent=1 // pred_check_branch
      %117 = sbr.rel (%p115) target = $region41
    $region40: #{tpu_custom_call.1} parent=1 // pred_region
      %s118 = sshll.u32 1, 1024
      %s119 = ssub.s32 %s118, 1
      loop: start=0, step=1, limit=1
      $region42: #{tpu_custom_call.1} parent=40 // loop_pre_header
        _
      $region43: #{tpu_custom_call.1} parent=40 // loop_header
        %s121 = sphi 0, %s125
        %p122 = scmp.ge.s32.totalorder %s121, 1
        %s126 = sphi %s6, %s6
        %s127 = sphi [#allocation5], [#allocation5]
      $region44: #{tpu_custom_call.1} parent=40 // loop_header_branch
        %124 = sbr.rel (%p122) target = $region48
      $region45: #{tpu_custom_call.1} parent=40 // loop_body
        %v128 = vld [vmem:[%s126] sm:%s119]
        %129 = vst [vmem:[%s127] sm:%s119] %v128
      $region46: #{tpu_custom_call.1} parent=40 // loop_footer
        %s125 = sadd.s32 1, %s121
      $region47: #{tpu_custom_call.1} parent=40 // loop_footer_branch
        %120 = sbr.rel target = $region43
      $region48: #{tpu_custom_call.1} parent=40 // loop_exit
        _
    $region41: #{tpu_custom_call.1} parent=1 // pred_fallthru
      _
    // Predicated region
    $region64: #{tpu_custom_call.1} parent=1 // pred_check
      _
    $region65: #{tpu_custom_call.1} parent=1 // pred_check_branch
      %405 = sbr.rel (0) target = $region67
    $region66: #{tpu_custom_call.1} parent=1 // pred_region
      %406 = vsyncadd %s109, 16384
    $region67: #{tpu_custom_call.1} parent=1 // pred_fallthru
      _
    %v407 = vld [vmem:[#allocation7] sm:$0xff]
    %v408 = vld [vmem:[#allocation10] sm:$0xff]
    %v409 = vld [vmem:[#allocation10 + $0x8] sm:$0xff]
    %v410 = vld [vmem:[#allocation10 + $0x10] sm:$0xff]
    %v411 = vld [vmem:[#allocation10 + $0x18] sm:$0xff]
    %v412 = vld [vmem:[#allocation12] sm:$0x1]
    %v414 = vlaneseq
    %v415 = vshrl.u32 %v414, 7
    %v416 = vsub.s32 0, %v415
    %v417 = vrot.slane %v412, %v416
    %vm419 = vcmask 261120
    %v421 = vsel %vm419, %v407, 0
    %423 = vmatprep.subr.mxu0 0.0
    %424 = vmatpush1.msra.mxu0 0.0
    %425 = vmatprep.subr.mxu0 0.0
    %426 = vmatpush1.msra.mxu0 0.0
    %427 = vmatprep.subr.mxu0 0.0
    %428 = vmatpush1.msra.mxu0 0.0
    %429 = vmatprep.subr.mxu0 0.0
    %430 = vmatpush1.msra.mxu0 0.0
    %431 = vmatprep.subr.mxu0 0.0
    %432 = vmatpush1.msra.mxu0 0.0
    %433 = vmatprep.subr.mxu0 0.0
    %434 = vmatpush1.msra.mxu0 0.0
    %435 = vmatprep.subr.mxu0 0.0
    %436 = vmatpush1.msra.mxu0 0.0
    %437 = vmatprep.subr.mxu0 0.0
    %438 = vmatpush1.msra.mxu0 0.0
    %439 = vmatprep.subr.mxu0 0.0
    %440 = vmatpush1.msra.mxu0 0.0
    %441 = vmatprep.subr.mxu0 0.0
    %442 = vmatpush1.msra.mxu0 0.0
    %443 = vmatprep.subr.mxu0 0.0
    %444 = vmatpush1.msra.mxu0 0.0
    %445 = vmatprep.subr.mxu0 0.0
    %446 = vmatpush1.msra.mxu0 0.0
    %447 = vmatprep.subr.mxu0 0.0
    %448 = vmatpush1.msra.mxu0 %v411
    %449 = vmatprep.subr.mxu0 0.0
    %450 = vmatpush1.msra.mxu0 %v410
    %451 = vmatprep.subr.mxu0 0.0
    %452 = vmatpush1.msra.mxu0 %v409
    %453 = vmatprep.subr.mxu0 0.0
    %454 = vmatpush1.msra.mxu0 %v408
    %455 = vmatprep.subr.mxu0 0.0
    %456 = vmatpush2.msra.mxu0 0.0
    %457 = vmatprep.subr.mxu0 0.0
    %458 = vmatpush2.msra.mxu0 0.0
    %459 = vmatprep.subr.mxu0 0.0
    %460 = vmatpush2.msra.mxu0 0.0
    %461 = vmatprep.subr.mxu0 0.0
    %462 = vmatpush2.msra.mxu0 0.0
    %463 = vmatprep.subr.mxu0 0.0
    %464 = vmatpush2.msra.mxu0 0.0
    %465 = vmatprep.subr.mxu0 0.0
    %466 = vmatpush2.msra.mxu0 0.0
    %467 = vmatprep.subr.mxu0 0.0
    %468 = vmatpush2.msra.mxu0 0.0
    %469 = vmatprep.subr.mxu0 0.0
    %470 = vmatpush2.msra.mxu0 0.0
    %471 = vmatprep.subr.mxu0 0.0
    %472 = vmatpush2.msra.mxu0 0.0
    %473 = vmatprep.subr.mxu0 0.0
    %474 = vmatpush2.msra.mxu0 0.0
    %475 = vmatprep.subr.mxu0 0.0
    %476 = vmatpush2.msra.mxu0 0.0
    %477 = vmatprep.subr.mxu0 0.0
    %478 = vmatpush2.msra.mxu0 0.0
    %479 = vmatprep.subr.mxu0 0.0
    %480 = vmatpush2.msra.mxu0 0.0
    %481 = vmatprep.subr.mxu0 0.0
    %482 = vmatpush2.msra.mxu0 0.0
    %483 = vmatprep.subr.mxu0 0.0
    %484 = vmatpush2.msra.mxu0 0.0
    %485 = vmatprep.subr.mxu0 0.0
    %486 = vmatpush2.msra.mxu0 0.0
    %487 = vmatprep.mubr.f32.mxu0 0.0
    %488 = vmatmul.mubr.f32.gmra.mxu0 %v421
    %v489 = vpop.f32.mrf.mxu0
    %v490 = vadd.f32 %v417, %v489
    %v491 = vpop.f32.mrf.mxu0
    %492 = vdwg.mxu0
    %vm493 = vcmp.gt.f32.partialorder %v490, 0.0
    %v494 = vmul.f32 %v490, 0.2
    %v495 = vsel %vm493, %v490, %v494
    %s496 = smul.u32 8, 16
    %s497 = smul.u32 %s496, 2
    %s498 = sshll.u32 %s497, 4
    %499 = dma.done [#allocation6], %s498
    %v500 = vld [vmem:[#allocation2] sm:$0xff]
    %v501 = vld [vmem:[#allocation2 + $0x8] sm:$0xff]
    %v502 = vld [vmem:[#allocation2 + $0x10] sm:$0xff]
    %v503 = vld [vmem:[#allocation2 + $0x18] sm:$0xff]
    %v504 = vld [vmem:[#allocation2 + $0x20] sm:$0xff]
    %v505 = vld [vmem:[#allocation2 + $0x28] sm:$0xff]
    %v506 = vld [vmem:[#allocation2 + $0x30] sm:$0xff]
    %v507 = vld [vmem:[#allocation2 + $0x38] sm:$0xff]
    %v508 = vld [vmem:[#allocation2 + $0x40] sm:$0xff]
    %v509 = vld [vmem:[#allocation2 + $0x48] sm:$0xff]
    %v510 = vld [vmem:[#allocation2 + $0x50] sm:$0xff]
    %v511 = vld [vmem:[#allocation2 + $0x58] sm:$0xff]
    %v512 = vld [vmem:[#allocation2 + $0x60] sm:$0xff]
    %v513 = vld [vmem:[#allocation2 + $0x68] sm:$0xff]
    %v514 = vld [vmem:[#allocation2 + $0x70] sm:$0xff]
    %v515 = vld [vmem:[#allocation2 + $0x78] sm:$0xff]
    %v516 = vld [vmem:[#allocation2 + $0x80] sm:$0xff]
    %v517 = vld [vmem:[#allocation2 + $0x88] sm:$0xff]
    %v518 = vld [vmem:[#allocation2 + $0x90] sm:$0xff]
    %v519 = vld [vmem:[#allocation2 + $0x98] sm:$0xff]
    %v520 = vld [vmem:[#allocation2 + $0xa0] sm:$0xff]
    %v521 = vld [vmem:[#allocation2 + $0xa8] sm:$0xff]
    %v522 = vld [vmem:[#allocation2 + $0xb0] sm:$0xff]
    %v523 = vld [vmem:[#allocation2 + $0xb8] sm:$0xff]
    %v524 = vld [vmem:[#allocation2 + $0xc0] sm:$0xff]
    %v525 = vld [vmem:[#allocation2 + $0xc8] sm:$0xff]
    %v526 = vld [vmem:[#allocation2 + $0xd0] sm:$0xff]
    %v527 = vld [vmem:[#allocation2 + $0xd8] sm:$0xff]
    %v528 = vld [vmem:[#allocation2 + $0xe0] sm:$0xff]
    %v529 = vld [vmem:[#allocation2 + $0xe8] sm:$0xff]
    %v530 = vld [vmem:[#allocation2 + $0xf0] sm:$0xff]
    %v531 = vld [vmem:[#allocation2 + $0xf8] sm:$0xff]
    %532 = vmatprep.subr.mxu0 %v531
    %533 = vmatpush1.msra.mxu0 %v530
    %534 = vmatprep.subr.mxu0 %v529
    %535 = vmatpush1.msra.mxu0 %v528
    %536 = vmatprep.subr.mxu0 %v527
    %537 = vmatpush1.msra.mxu0 %v526
    %538 = vmatprep.subr.mxu0 %v525
    %539 = vmatpush1.msra.mxu0 %v524
    %540 = vmatprep.subr.mxu0 %v523
    %541 = vmatpush1.msra.mxu0 %v522
    %542 = vmatprep.subr.mxu0 %v521
    %543 = vmatpush1.msra.mxu0 %v520
    %544 = vmatprep.subr.mxu0 %v519
    %545 = vmatpush1.msra.mxu0 %v518
    %546 = vmatprep.subr.mxu0 %v517
    %547 = vmatpush1.msra.mxu0 %v516
    %548 = vmatprep.subr.mxu0 %v515
    %549 = vmatpush1.msra.mxu0 %v514
    %550 = vmatprep.subr.mxu0 %v513
    %551 = vmatpush1.msra.mxu0 %v512
    %552 = vmatprep.subr.mxu0 %v511
    %553 = vmatpush1.msra.mxu0 %v510
    %554 = vmatprep.subr.mxu0 %v509
    %555 = vmatpush1.msra.mxu0 %v508
    %556 = vmatprep.subr.mxu0 %v507
    %557 = vmatpush1.msra.mxu0 %v506
    %558 = vmatprep.subr.mxu0 %v505
    %559 = vmatpush1.msra.mxu0 %v504
    %560 = vmatprep.subr.mxu0 %v503
    %561 = vmatpush1.msra.mxu0 %v502
    %562 = vmatprep.subr.mxu0 %v501
    %563 = vmatpush1.msra.mxu0 %v500
    %564 = vmatprep.subr.mxu0 0.0
    %565 = vmatpush2.msra.mxu0 0.0
    %566 = vmatprep.subr.mxu0 0.0
    %567 = vmatpush2.msra.mxu0 0.0
    %568 = vmatprep.subr.mxu0 0.0
    %569 = vmatpush2.msra.mxu0 0.0
    %570 = vmatprep.subr.mxu0 0.0
    %571 = vmatpush2.msra.mxu0 0.0
    %572 = vmatprep.subr.mxu0 0.0
    %573 = vmatpush2.msra.mxu0 0.0
    %574 = vmatprep.subr.mxu0 0.0
    %575 = vmatpush2.msra.mxu0 0.0
    %576 = vmatprep.subr.mxu0 0.0
    %577 = vmatpush2.msra.mxu0 0.0
    %578 = vmatprep.subr.mxu0 0.0
    %579 = vmatpush2.msra.mxu0 0.0
    %580 = vmatprep.subr.mxu0 0.0
    %581 = vmatpush2.msra.mxu0 0.0
    %582 = vmatprep.subr.mxu0 0.0
    %583 = vmatpush2.msra.mxu0 0.0
    %584 = vmatprep.subr.mxu0 0.0
    %585 = vmatpush2.msra.mxu0 0.0
    %586 = vmatprep.subr.mxu0 0.0
    %587 = vmatpush2.msra.mxu0 0.0
    %588 = vmatprep.subr.mxu0 0.0
    %589 = vmatpush2.msra.mxu0 0.0
    %590 = vmatprep.subr.mxu0 0.0
    %591 = vmatpush2.msra.mxu0 0.0
    %592 = vmatprep.subr.mxu0 0.0
    %593 = vmatpush2.msra.mxu0 0.0
    %594 = vmatprep.subr.mxu0 0.0
    %595 = vmatpush2.msra.mxu0 0.0
    %596 = vmatprep.mubr.f32.mxu0 0.0
    %597 = vmatmul.mubr.f32.gmra.mxu0 %v495
    %v598 = vpop.f32.mrf.mxu0
    %v599 = vadd.f32 0.0, %v598
    %v600 = vpop.f32.mrf.mxu0
    %v601 = vadd.f32 0.0, %v600
    %602 = vdwg.mxu0
    %v603 = vld [vmem:[#allocation12 + $0x1] sm:$0x3]
    %v604 = vld [vmem:[#allocation12 + $0x3] sm:$0x3]
    %v605 = vrot.slane %v599, 4
    %v606 = vadd.f32 %v599, %v605
    %v607 = vrot.slane %v606, 2
    %v608 = vadd.f32 %v606, %v607
    %v609 = vrot.slane %v608, 1
    %v610 = vadd.f32 %v608, %v609
    %v611 = vrot.slane %v601, 4
    %v612 = vadd.f32 %v601, %v611
    %v613 = vrot.slane %v612, 2
    %v614 = vadd.f32 %v612, %v613
    %v615 = vrot.slane %v614, 1
    %v616 = vadd.f32 %v614, %v615
    %v617 = vrcp.pop 8.0
    %v618 = vmul.f32 %v610, %v617
    %v619 = vmul.f32 %v616, %v617
    %v620 = vsub.f32 %v599, %v618
    %v621 = vsub.f32 %v601, %v619
    %v622 = vmul.f32 %v620, %v620
    %v623 = vmul.f32 %v621, %v621
    %v624 = vrot.slane %v622, 4
    %v625 = vadd.f32 %v622, %v624
    %v626 = vrot.slane %v625, 2
    %v627 = vadd.f32 %v625, %v626
    %v628 = vrot.slane %v627, 1
    %v629 = vadd.f32 %v627, %v628
    %v630 = vrot.slane %v623, 4
    %v631 = vadd.f32 %v623, %v630
    %v632 = vrot.slane %v631, 2
    %v633 = vadd.f32 %v631, %v632
    %v634 = vrot.slane %v633, 1
    %v635 = vadd.f32 %v633, %v634
    %v636 = vmul.f32 %v629, %v617
    %v637 = vmul.f32 %v635, %v617
    %v638 = vadd.f32 %v636, 0.8
    %v639 = vadd.f32 %v637, 0.8
    %v640 = vrsqrt.pop %v638
    %v641 = vrsqrt.pop %v639
    %v642 = vmul.f32 %v620, %v640
    %v643 = vmul.f32 %v621, %v641
    %v645 = vlaneseq
    %v646 = vshrl.u32 %v645, 7
    %v647 = vsub.s32 0, %v646
    %v648 = vrot.slane %v603, %v647
    %v649 = vlaneseq
    %v650 = vshrl.u32 %v649, 7
    %v651 = vsub.s32 1, %v650
    %v652 = vrot.slane %v603, %v651
    %v655 = vmul.f32 %v642, %v648
    %v656 = vmul.f32 %v643, %v652
    %v658 = vlaneseq
    %v659 = vshrl.u32 %v658, 7
    %v660 = vsub.s32 0, %v659
    %v661 = vrot.slane %v604, %v660
    %v662 = vlaneseq
    %v663 = vshrl.u32 %v662, 7
    %v664 = vsub.s32 1, %v663
    %v665 = vrot.slane %v604, %v664
    %v668 = vadd.f32 %v655, %v661
    %v669 = vadd.f32 %v656, %v665
    %vm670 = vcmp.gt.f32.partialorder %v668, 0.0
    %vm671 = vcmp.gt.f32.partialorder %v669, 0.0
    %v672 = vmul.f32 %v668, 0.2
    %v673 = vmul.f32 %v669, 0.2
    %v674 = vsel %vm670, %v668, %v672
    %v675 = vsel %vm671, %v669, %v673
    %s676 = smul.u32 8, 32
    %s677 = smul.u32 %s676, 4
    %s678 = sshll.u32 %s677, 4
    %679 = dma.done %s67, %s678
    %v680 = vld [vmem:[#allocation3] sm:$0xff]
    %v681 = vld [vmem:[#allocation3 + $0x8] sm:$0xff]
    %v682 = vld [vmem:[#allocation3 + $0x10] sm:$0xff]
    %v683 = vld [vmem:[#allocation3 + $0x18] sm:$0xff]
    %v684 = vld [vmem:[#allocation3 + $0x20] sm:$0xff]
    %v685 = vld [vmem:[#allocation3 + $0x28] sm:$0xff]
    %v686 = vld [vmem:[#allocation3 + $0x30] sm:$0xff]
    %v687 = vld [vmem:[#allocation3 + $0x38] sm:$0xff]
    %v688 = vld [vmem:[#allocation3 + $0x40] sm:$0xff]
    %v689 = vld [vmem:[#allocation3 + $0x48] sm:$0xff]
    %v690 = vld [vmem:[#allocation3 + $0x50] sm:$0xff]
    %v691 = vld [vmem:[#allocation3 + $0x58] sm:$0xff]
    %v692 = vld [vmem:[#allocation3 + $0x60] sm:$0xff]
    %v693 = vld [vmem:[#allocation3 + $0x68] sm:$0xff]
    %v694 = vld [vmem:[#allocation3 + $0x70] sm:$0xff]
    %v695 = vld [vmem:[#allocation3 + $0x78] sm:$0xff]
    %v696 = vld [vmem:[#allocation3 + $0x80] sm:$0xff]
    %v697 = vld [vmem:[#allocation3 + $0x88] sm:$0xff]
    %v698 = vld [vmem:[#allocation3 + $0x90] sm:$0xff]
    %v699 = vld [vmem:[#allocation3 + $0x98] sm:$0xff]
    %v700 = vld [vmem:[#allocation3 + $0xa0] sm:$0xff]
    %v701 = vld [vmem:[#allocation3 + $0xa8] sm:$0xff]
    %v702 = vld [vmem:[#allocation3 + $0xb0] sm:$0xff]
    %v703 = vld [vmem:[#allocation3 + $0xb8] sm:$0xff]
    %v704 = vld [vmem:[#allocation3 + $0xc0] sm:$0xff]
    %v705 = vld [vmem:[#allocation3 + $0xc8] sm:$0xff]
    %v706 = vld [vmem:[#allocation3 + $0xd0] sm:$0xff]
    %v707 = vld [vmem:[#allocation3 + $0xd8] sm:$0xff]
    %v708 = vld [vmem:[#allocation3 + $0xe0] sm:$0xff]
    %v709 = vld [vmem:[#allocation3 + $0xe8] sm:$0xff]
    %v710 = vld [vmem:[#allocation3 + $0xf0] sm:$0xff]
    %v711 = vld [vmem:[#allocation3 + $0xf8] sm:$0xff]
    %v712 = vld [vmem:[#allocation3 + $0x100] sm:$0xff]
    %v713 = vld [vmem:[#allocation3 + $0x108] sm:$0xff]
    %v714 = vld [vmem:[#allocation3 + $0x110] sm:$0xff]
    %v715 = vld [vmem:[#allocation3 + $0x118] sm:$0xff]
    %v716 = vld [vmem:[#allocation3 + $0x120] sm:$0xff]
    %v717 = vld [vmem:[#allocation3 + $0x128] sm:$0xff]
    %v718 = vld [vmem:[#allocation3 + $0x130] sm:$0xff]
    %v719 = vld [vmem:[#allocation3 + $0x138] sm:$0xff]
    %v720 = vld [vmem:[#allocation3 + $0x140] sm:$0xff]
    %v721 = vld [vmem:[#allocation3 + $0x148] sm:$0xff]
    %v722 = vld [vmem:[#allocation3 + $0x150] sm:$0xff]
    %v723 = vld [vmem:[#allocation3 + $0x158] sm:$0xff]
    %v724 = vld [vmem:[#allocation3 + $0x160] sm:$0xff]
    %v725 = vld [vmem:[#allocation3 + $0x168] sm:$0xff]
    %v726 = vld [vmem:[#allocation3 + $0x170] sm:$0xff]
    %v727 = vld [vmem:[#allocation3 + $0x178] sm:$0xff]
    %v728 = vld [vmem:[#allocation3 + $0x180] sm:$0xff]
    %v729 = vld [vmem:[#allocation3 + $0x188] sm:$0xff]
    %v730 = vld [vmem:[#allocation3 + $0x190] sm:$0xff]
    %v731 = vld [vmem:[#allocation3 + $0x198] sm:$0xff]
    %v732 = vld [vmem:[#allocation3 + $0x1a0] sm:$0xff]
    %v733 = vld [vmem:[#allocation3 + $0x1a8] sm:$0xff]
    %v734 = vld [vmem:[#allocation3 + $0x1b0] sm:$0xff]
    %v735 = vld [vmem:[#allocation3 + $0x1b8] sm:$0xff]
    %v736 = vld [vmem:[#allocation3 + $0x1c0] sm:$0xff]
    %v737 = vld [vmem:[#allocation3 + $0x1c8] sm:$0xff]
    %v738 = vld [vmem:[#allocation3 + $0x1d0] sm:$0xff]
    %v739 = vld [vmem:[#allocation3 + $0x1d8] sm:$0xff]
    %v740 = vld [vmem:[#allocation3 + $0x1e0] sm:$0xff]
    %v741 = vld [vmem:[#allocation3 + $0x1e8] sm:$0xff]
    %v742 = vld [vmem:[#allocation3 + $0x1f0] sm:$0xff]
    %v743 = vld [vmem:[#allocation3 + $0x1f8] sm:$0xff]
    %v744 = vld [vmem:[#allocation3 + $0x200] sm:$0xff]
    %v745 = vld [vmem:[#allocation3 + $0x208] sm:$0xff]
    %v746 = vld [vmem:[#allocation3 + $0x210] sm:$0xff]
    %v747 = vld [vmem:[#allocation3 + $0x218] sm:$0xff]
    %v748 = vld [vmem:[#allocation3 + $0x220] sm:$0xff]
    %v749 = vld [vmem:[#allocation3 + $0x228] sm:$0xff]
    %v750 = vld [vmem:[#allocation3 + $0x230] sm:$0xff]
    %v751 = vld [vmem:[#allocation3 + $0x238] sm:$0xff]
    %v752 = vld [vmem:[#allocation3 + $0x240] sm:$0xff]
    %v753 = vld [vmem:[#allocation3 + $0x248] sm:$0xff]
    %v754 = vld [vmem:[#allocation3 + $0x250] sm:$0xff]
    %v755 = vld [vmem:[#allocation3 + $0x258] sm:$0xff]
    %v756 = vld [vmem:[#allocation3 + $0x260] sm:$0xff]
    %v757 = vld [vmem:[#allocation3 + $0x268] sm:$0xff]
    %v758 = vld [vmem:[#allocation3 + $0x270] sm:$0xff]
    %v759 = vld [vmem:[#allocation3 + $0x278] sm:$0xff]
    %v760 = vld [vmem:[#allocation3 + $0x280] sm:$0xff]
    %v761 = vld [vmem:[#allocation3 + $0x288] sm:$0xff]
    %v762 = vld [vmem:[#allocation3 + $0x290] sm:$0xff]
    %v763 = vld [vmem:[#allocation3 + $0x298] sm:$0xff]
    %v764 = vld [vmem:[#allocation3 + $0x2a0] sm:$0xff]
    %v765 = vld [vmem:[#allocation3 + $0x2a8] sm:$0xff]
    %v766 = vld [vmem:[#allocation3 + $0x2b0] sm:$0xff]
    %v767 = vld [vmem:[#allocation3 + $0x2b8] sm:$0xff]
    %v768 = vld [vmem:[#allocation3 + $0x2c0] sm:$0xff]
    %v769 = vld [vmem:[#allocation3 + $0x2c8] sm:$0xff]
    %v770 = vld [vmem:[#allocation3 + $0x2d0] sm:$0xff]
    %v771 = vld [vmem:[#allocation3 + $0x2d8] sm:$0xff]
    %v772 = vld [vmem:[#allocation3 + $0x2e0] sm:$0xff]
    %v773 = vld [vmem:[#allocation3 + $0x2e8] sm:$0xff]
    %v774 = vld [vmem:[#allocation3 + $0x2f0] sm:$0xff]
    %v775 = vld [vmem:[#allocation3 + $0x2f8] sm:$0xff]
    %v776 = vld [vmem:[#allocation3 + $0x300] sm:$0xff]
    %v777 = vld [vmem:[#allocation3 + $0x308] sm:$0xff]
    %v778 = vld [vmem:[#allocation3 + $0x310] sm:$0xff]
    %v779 = vld [vmem:[#allocation3 + $0x318] sm:$0xff]
    %v780 = vld [vmem:[#allocation3 + $0x320] sm:$0xff]
    %v781 = vld [vmem:[#allocation3 + $0x328] sm:$0xff]
    %v782 = vld [vmem:[#allocation3 + $0x330] sm:$0xff]
    %v783 = vld [vmem:[#allocation3 + $0x338] sm:$0xff]
    %v784 = vld [vmem:[#allocation3 + $0x340] sm:$0xff]
    %v785 = vld [vmem:[#allocation3 + $0x348] sm:$0xff]
    %v786 = vld [vmem:[#allocation3 + $0x350] sm:$0xff]
    %v787 = vld [vmem:[#allocation3 + $0x358] sm:$0xff]
    %v788 = vld [vmem:[#allocation3 + $0x360] sm:$0xff]
    %v789 = vld [vmem:[#allocation3 + $0x368] sm:$0xff]
    %v790 = vld [vmem:[#allocation3 + $0x370] sm:$0xff]
    %v791 = vld [vmem:[#allocation3 + $0x378] sm:$0xff]
    %v792 = vld [vmem:[#allocation3 + $0x380] sm:$0xff]
    %v793 = vld [vmem:[#allocation3 + $0x388] sm:$0xff]
    %v794 = vld [vmem:[#allocation3 + $0x390] sm:$0xff]
    %v795 = vld [vmem:[#allocation3 + $0x398] sm:$0xff]
    %v796 = vld [vmem:[#allocation3 + $0x3a0] sm:$0xff]
    %v797 = vld [vmem:[#allocation3 + $0x3a8] sm:$0xff]
    %v798 = vld [vmem:[#allocation3 + $0x3b0] sm:$0xff]
    %v799 = vld [vmem:[#allocation3 + $0x3b8] sm:$0xff]
    %v800 = vld [vmem:[#allocation3 + $0x3c0] sm:$0xff]
    %v801 = vld [vmem:[#allocation3 + $0x3c8] sm:$0xff]
    %v802 = vld [vmem:[#allocation3 + $0x3d0] sm:$0xff]
    %v803 = vld [vmem:[#allocation3 + $0x3d8] sm:$0xff]
    %v804 = vld [vmem:[#allocation3 + $0x3e0] sm:$0xff]
    %v805 = vld [vmem:[#allocation3 + $0x3e8] sm:$0xff]
    %v806 = vld [vmem:[#allocation3 + $0x3f0] sm:$0xff]
    %v807 = vld [vmem:[#allocation3 + $0x3f8] sm:$0xff]
    %808 = vmatprep.subr.mxu0 %v741
    %809 = vmatpush1.msra.mxu0 %v740
    %810 = vmatprep.subr.mxu0 %v737
    %811 = vmatpush1.msra.mxu0 %v736
    %812 = vmatprep.subr.mxu0 %v733
    %813 = vmatpush1.msra.mxu0 %v732
    %814 = vmatprep.subr.mxu0 %v729
    %815 = vmatpush1.msra.mxu0 %v728
    %816 = vmatprep.subr.mxu0 %v725
    %817 = vmatpush1.msra.mxu0 %v724
    %818 = vmatprep.subr.mxu0 %v721
    %819 = vmatpush1.msra.mxu0 %v720
    %820 = vmatprep.subr.mxu0 %v717
    %821 = vmatpush1.msra.mxu0 %v716
    %822 = vmatprep.subr.mxu0 %v713
    %823 = vmatpush1.msra.mxu0 %v712
    %824 = vmatprep.subr.mxu0 %v709
    %825 = vmatpush1.msra.mxu0 %v708
    %826 = vmatprep.subr.mxu0 %v705
    %827 = vmatpush1.msra.mxu0 %v704
    %828 = vmatprep.subr.mxu0 %v701
    %829 = vmatpush1.msra.mxu0 %v700
    %830 = vmatprep.subr.mxu0 %v697
    %831 = vmatpush1.msra.mxu0 %v696
    %832 = vmatprep.subr.mxu0 %v693
    %833 = vmatpush1.msra.mxu0 %v692
    %834 = vmatprep.subr.mxu0 %v689
    %835 = vmatpush1.msra.mxu0 %v688
    %836 = vmatprep.subr.mxu0 %v685
    %837 = vmatpush1.msra.mxu0 %v684
    %838 = vmatprep.subr.mxu0 %v681
    %839 = vmatpush1.msra.mxu0 %v680
    %840 = vmatprep.subr.mxu0 %v805
    %841 = vmatpush2.msra.mxu0 %v804
    %842 = vmatprep.subr.mxu0 %v801
    %843 = vmatpush2.msra.mxu0 %v800
    %844 = vmatprep.subr.mxu0 %v797
    %845 = vmatpush2.msra.mxu0 %v796
    %846 = vmatprep.subr.mxu0 %v793
    %847 = vmatpush2.msra.mxu0 %v792
    %848 = vmatprep.subr.mxu0 %v789
    %849 = vmatpush2.msra.mxu0 %v788
    %850 = vmatprep.subr.mxu0 %v785
    %851 = vmatpush2.msra.mxu0 %v784
    %852 = vmatprep.subr.mxu0 %v781
    %853 = vmatpush2.msra.mxu0 %v780
    %854 = vmatprep.subr.mxu0 %v777
    %855 = vmatpush2.msra.mxu0 %v776
    %856 = vmatprep.subr.mxu0 %v773
    %857 = vmatpush2.msra.mxu0 %v772
    %858 = vmatprep.subr.mxu0 %v769
    %859 = vmatpush2.msra.mxu0 %v768
    %860 = vmatprep.subr.mxu0 %v765
    %861 = vmatpush2.msra.mxu0 %v764
    %862 = vmatprep.subr.mxu0 %v761
    %863 = vmatpush2.msra.mxu0 %v760
    %864 = vmatprep.subr.mxu0 %v757
    %865 = vmatpush2.msra.mxu0 %v756
    %866 = vmatprep.subr.mxu0 %v753
    %867 = vmatpush2.msra.mxu0 %v752
    %868 = vmatprep.subr.mxu0 %v749
    %869 = vmatpush2.msra.mxu0 %v748
    %870 = vmatprep.subr.mxu0 %v745
    %871 = vmatpush2.msra.mxu0 %v744
    %872 = vmatprep.mubr.f32.mxu0 %v675
    %873 = vmatmul.mubr.f32.gmra.mxu0 %v674
    %v874 = vpop.f32.mrf.mxu0
    %v875 = vadd.f32 0.0, %v874
    %v876 = vpop.f32.mrf.mxu0
    %v877 = vadd.f32 0.0, %v876
    %878 = vdwg.mxu0
    %879 = vmatprep.subr.mxu0 %v743
    %880 = vmatpush1.msra.mxu0 %v742
    %881 = vmatprep.subr.mxu0 %v739
    %882 = vmatpush1.msra.mxu0 %v738
    %883 = vmatprep.subr.mxu0 %v735
    %884 = vmatpush1.msra.mxu0 %v734
    %885 = vmatprep.subr.mxu0 %v731
    %886 = vmatpush1.msra.mxu0 %v730
    %887 = vmatprep.subr.mxu0 %v727
    %888 = vmatpush1.msra.mxu0 %v726
    %889 = vmatprep.subr.mxu0 %v723
    %890 = vmatpush1.msra.mxu0 %v722
    %891 = vmatprep.subr.mxu0 %v719
    %892 = vmatpush1.msra.mxu0 %v718
    %893 = vmatprep.subr.mxu0 %v715
    %894 = vmatpush1.msra.mxu0 %v714
    %895 = vmatprep.subr.mxu0 %v711
    %896 = vmatpush1.msra.mxu0 %v710
    %897 = vmatprep.subr.mxu0 %v707
    %898 = vmatpush1.msra.mxu0 %v706
    %899 = vmatprep.subr.mxu0 %v703
    %900 = vmatpush1.msra.mxu0 %v702
    %901 = vmatprep.subr.mxu0 %v699
    %902 = vmatpush1.msra.mxu0 %v698
    %903 = vmatprep.subr.mxu0 %v695
    %904 = vmatpush1.msra.mxu0 %v694
    %905 = vmatprep.subr.mxu0 %v691
    %906 = vmatpush1.msra.mxu0 %v690
    %907 = vmatprep.subr.mxu0 %v687
    %908 = vmatpush1.msra.mxu0 %v686
    %909 = vmatprep.subr.mxu0 %v683
    %910 = vmatpush1.msra.mxu0 %v682
    %911 = vmatprep.subr.mxu0 %v807
    %912 = vmatpush2.msra.mxu0 %v806
    %913 = vmatprep.subr.mxu0 %v803
    %914 = vmatpush2.msra.mxu0 %v802
    %915 = vmatprep.subr.mxu0 %v799
    %916 = vmatpush2.msra.mxu0 %v798
    %917 = vmatprep.subr.mxu0 %v795
    %918 = vmatpush2.msra.mxu0 %v794
    %919 = vmatprep.subr.mxu0 %v791
    %920 = vmatpush2.msra.mxu0 %v790
    %921 = vmatprep.subr.mxu0 %v787
    %922 = vmatpush2.msra.mxu0 %v786
    %923 = vmatprep.subr.mxu0 %v783
    %924 = vmatpush2.msra.mxu0 %v782
    %925 = vmatprep.subr.mxu0 %v779
    %926 = vmatpush2.msra.mxu0 %v778
    %927 = vmatprep.subr.mxu0 %v775
    %928 = vmatpush2.msra.mxu0 %v774
    %929 = vmatprep.subr.mxu0 %v771
    %930 = vmatpush2.msra.mxu0 %v770
    %931 = vmatprep.subr.mxu0 %v767
    %932 = vmatpush2.msra.mxu0 %v766
    %933 = vmatprep.subr.mxu0 %v763
    %934 = vmatpush2.msra.mxu0 %v762
    %935 = vmatprep.subr.mxu0 %v759
    %936 = vmatpush2.msra.mxu0 %v758
    %937 = vmatprep.subr.mxu0 %v755
    %938 = vmatpush2.msra.mxu0 %v754
    %939 = vmatprep.subr.mxu0 %v751
    %940 = vmatpush2.msra.mxu0 %v750
    %941 = vmatprep.subr.mxu0 %v747
    %942 = vmatpush2.msra.mxu0 %v746
    %943 = vmatprep.mubr.f32.mxu0 %v675
    %944 = vmatmul.mubr.f32.gmra.mxu0 %v674
    %v945 = vpop.f32.mrf.mxu0
    %v946 = vadd.f32 0.0, %v945
    %v947 = vpop.f32.mrf.mxu0
    %v948 = vadd.f32 0.0, %v947
    %949 = vdwg.mxu0
    %v950 = vld [vmem:[#allocation12 + $0x5] sm:$0xf]
    %v951 = vld [vmem:[#allocation12 + $0x9] sm:$0xf]
    %v952 = vrot.slane %v875, 4
    %v953 = vadd.f32 %v875, %v952
    %v954 = vrot.slane %v953, 2
    %v955 = vadd.f32 %v953, %v954
    %v956 = vrot.slane %v955, 1
    %v957 = vadd.f32 %v955, %v956
    %v958 = vrot.slane %v877, 4
    %v959 = vadd.f32 %v877, %v958
    %v960 = vrot.slane %v959, 2
    %v961 = vadd.f32 %v959, %v960
    %v962 = vrot.slane %v961, 1
    %v963 = vadd.f32 %v961, %v962
    %v964 = vrot.slane %v946, 4
    %v965 = vadd.f32 %v946, %v964
    %v966 = vrot.slane %v965, 2
    %v967 = vadd.f32 %v965, %v966
    %v968 = vrot.slane %v967, 1
    %v969 = vadd.f32 %v967, %v968
    %v970 = vrot.slane %v948, 4
    %v971 = vadd.f32 %v948, %v970
    %v972 = vrot.slane %v971, 2
    %v973 = vadd.f32 %v971, %v972
    %v974 = vrot.slane %v973, 1
    %v975 = vadd.f32 %v973, %v974
    %v976 = vmul.f32 %v957, %v617
    %v977 = vmul.f32 %v963, %v617
    %v978 = vmul.f32 %v969, %v617
    %v979 = vmul.f32 %v975, %v617
    %v980 = vsub.f32 %v875, %v976
    %v981 = vsub.f32 %v877, %v977
    %v982 = vsub.f32 %v946, %v978
    %v983 = vsub.f32 %v948, %v979
    %v984 = vmul.f32 %v980, %v980
    %v985 = vmul.f32 %v981, %v981
    %v986 = vmul.f32 %v982, %v982
    %v987 = vmul.f32 %v983, %v983
    %v988 = vrot.slane %v984, 4
    %v989 = vadd.f32 %v984, %v988
    %v990 = vrot.slane %v989, 2
    %v991 = vadd.f32 %v989, %v990
    %v992 = vrot.slane %v991, 1
    %v993 = vadd.f32 %v991, %v992
    %v994 = vrot.slane %v985, 4
    %v995 = vadd.f32 %v985, %v994
    %v996 = vrot.slane %v995, 2
    %v997 = vadd.f32 %v995, %v996
    %v998 = vrot.slane %v997, 1
    %v999 = vadd.f32 %v997, %v998
    %v1000 = vrot.slane %v986, 4
    %v1001 = vadd.f32 %v986, %v1000
    %v1002 = vrot.slane %v1001, 2
    %v1003 = vadd.f32 %v1001, %v1002
    %v1004 = vrot.slane %v1003, 1
    %v1005 = vadd.f32 %v1003, %v1004
    %v1006 = vrot.slane %v987, 4
    %v1007 = vadd.f32 %v987, %v1006
    %v1008 = vrot.slane %v1007, 2
    %v1009 = vadd.f32 %v1007, %v1008
    %v1010 = vrot.slane %v1009, 1
    %v1011 = vadd.f32 %v1009, %v1010
    %v1012 = vmul.f32 %v993, %v617
    %v1013 = vmul.f32 %v999, %v617
    %v1014 = vmul.f32 %v1005, %v617
    %v1015 = vmul.f32 %v1011, %v617
    %v1016 = vadd.f32 %v1012, 0.8
    %v1017 = vadd.f32 %v1013, 0.8
    %v1018 = vadd.f32 %v1014, 0.8
    %v1019 = vadd.f32 %v1015, 0.8
    %v1020 = vrsqrt.pop %v1016
    %v1021 = vrsqrt.pop %v1017
    %v1022 = vrsqrt.pop %v1018
    %v1023 = vrsqrt.pop %v1019
    %v1024 = vmul.f32 %v980, %v1020
    %v1025 = vmul.f32 %v981, %v1021
    %v1026 = vmul.f32 %v982, %v1022
    %v1027 = vmul.f32 %v983, %v1023
    %v1029 = vlaneseq
    %v1030 = vshrl.u32 %v1029, 7
    %v1031 = vsub.s32 0, %v1030
    %v1032 = vrot.slane %v950, %v1031
    %v1033 = vlaneseq
    %v1034 = vshrl.u32 %v1033, 7
    %v1035 = vsub.s32 1, %v1034
    %v1036 = vrot.slane %v950, %v1035
    %v1037 = vlaneseq
    %v1038 = vshrl.u32 %v1037, 7
    %v1039 = vsub.s32 2, %v1038
    %v1040 = vrot.slane %v950, %v1039
    %v1041 = vlaneseq
    %v1042 = vshrl.u32 %v1041, 7
    %v1043 = vsub.s32 3, %v1042
    %v1044 = vrot.slane %v950, %v1043
    %v1049 = vmul.f32 %v1024, %v1032
    %v1050 = vmul.f32 %v1025, %v1036
    %v1051 = vmul.f32 %v1026, %v1040
    %v1052 = vmul.f32 %v1027, %v1044
    %v1054 = vlaneseq
    %v1055 = vshrl.u32 %v1054, 7
    %v1056 = vsub.s32 0, %v1055
    %v1057 = vrot.slane %v951, %v1056
    %v1058 = vlaneseq
    %v1059 = vshrl.u32 %v1058, 7
    %v1060 = vsub.s32 1, %v1059
    %v1061 = vrot.slane %v951, %v1060
    %v1062 = vlaneseq
    %v1063 = vshrl.u32 %v1062, 7
    %v1064 = vsub.s32 2, %v1063
    %v1065 = vrot.slane %v951, %v1064
    %v1066 = vlaneseq
    %v1067 = vshrl.u32 %v1066, 7
    %v1068 = vsub.s32 3, %v1067
    %v1069 = vrot.slane %v951, %v1068
    %v1074 = vadd.f32 %v1049, %v1057
    %v1075 = vadd.f32 %v1050, %v1061
    %v1076 = vadd.f32 %v1051, %v1065
    %v1077 = vadd.f32 %v1052, %v1069
    %vm1078 = vcmp.gt.f32.partialorder %v1074, 0.0
    %vm1079 = vcmp.gt.f32.partialorder %v1075, 0.0
    %vm1080 = vcmp.gt.f32.partialorder %v1076, 0.0
    %vm1081 = vcmp.gt.f32.partialorder %v1077, 0.0
    %v1082 = vmul.f32 %v1074, 0.2
    %v1083 = vmul.f32 %v1075, 0.2
    %v1084 = vmul.f32 %v1076, 0.2
    %v1085 = vmul.f32 %v1077, 0.2
    %v1086 = vsel %vm1078, %v1074, %v1082
    %v1087 = vsel %vm1079, %v1075, %v1083
    %v1088 = vsel %vm1080, %v1076, %v1084
    %v1089 = vsel %vm1081, %v1077, %v1085
    %s1090 = smul.u32 8, 64
    %s1091 = smul.u32 %s1090, 2
    %s1092 = sshll.u32 %s1091, 4
    %1093 = dma.done %s79, %s1092
    %v1094 = vld [vmem:[#allocation4] sm:$0xff]
    %v1095 = vld [vmem:[#allocation4 + $0x8] sm:$0xff]
    %v1096 = vld [vmem:[#allocation4 + $0x40] sm:$0xff]
    %v1097 = vld [vmem:[#allocation4 + $0x48] sm:$0xff]
    %v1098 = vld [vmem:[#allocation4 + $0x80] sm:$0xff]
    %v1099 = vld [vmem:[#allocation4 + $0x88] sm:$0xff]
    %v1100 = vld [vmem:[#allocation4 + $0xc0] sm:$0xff]
    %v1101 = vld [vmem:[#allocation4 + $0xc8] sm:$0xff]
    %v1102 = vld [vmem:[#allocation4 + $0x100] sm:$0xff]
    %v1103 = vld [vmem:[#allocation4 + $0x108] sm:$0xff]
    %v1104 = vld [vmem:[#allocation4 + $0x140] sm:$0xff]
    %v1105 = vld [vmem:[#allocation4 + $0x148] sm:$0xff]
    %v1106 = vld [vmem:[#allocation4 + $0x180] sm:$0xff]
    %v1107 = vld [vmem:[#allocation4 + $0x188] sm:$0xff]
    %v1108 = vld [vmem:[#allocation4 + $0x1c0] sm:$0xff]
    %v1109 = vld [vmem:[#allocation4 + $0x1c8] sm:$0xff]
    %v1110 = vld [vmem:[#allocation4 + $0x200] sm:$0xff]
    %v1111 = vld [vmem:[#allocation4 + $0x208] sm:$0xff]
    %v1112 = vld [vmem:[#allocation4 + $0x240] sm:$0xff]
    %v1113 = vld [vmem:[#allocation4 + $0x248] sm:$0xff]
    %v1114 = vld [vmem:[#allocation4 + $0x280] sm:$0xff]
    %v1115 = vld [vmem:[#allocation4 + $0x288] sm:$0xff]
    %v1116 = vld [vmem:[#allocation4 + $0x2c0] sm:$0xff]
    %v1117 = vld [vmem:[#allocation4 + $0x2c8] sm:$0xff]
    %v1118 = vld [vmem:[#allocation4 + $0x300] sm:$0xff]
    %v1119 = vld [vmem:[#allocation4 + $0x308] sm:$0xff]
    %v1120 = vld [vmem:[#allocation4 + $0x340] sm:$0xff]
    %v1121 = vld [vmem:[#allocation4 + $0x348] sm:$0xff]
    %v1122 = vld [vmem:[#allocation4 + $0x380] sm:$0xff]
    %v1123 = vld [vmem:[#allocation4 + $0x388] sm:$0xff]
    %v1124 = vld [vmem:[#allocation4 + $0x3c0] sm:$0xff]
    %v1125 = vld [vmem:[#allocation4 + $0x3c8] sm:$0xff]
    %v1126 = vld [vmem:[#allocation4 + $0x400] sm:$0xff]
    %v1127 = vld [vmem:[#allocation4 + $0x408] sm:$0xff]
    %v1128 = vld [vmem:[#allocation4 + $0x440] sm:$0xff]
    %v1129 = vld [vmem:[#allocation4 + $0x448] sm:$0xff]
    %v1130 = vld [vmem:[#allocation4 + $0x480] sm:$0xff]
    %v1131 = vld [vmem:[#allocation4 + $0x488] sm:$0xff]
    %v1132 = vld [vmem:[#allocation4 + $0x4c0] sm:$0xff]
    %v1133 = vld [vmem:[#allocation4 + $0x4c8] sm:$0xff]
    %v1134 = vld [vmem:[#allocation4 + $0x500] sm:$0xff]
    %v1135 = vld [vmem:[#allocation4 + $0x508] sm:$0xff]
    %v1136 = vld [vmem:[#allocation4 + $0x540] sm:$0xff]
    %v1137 = vld [vmem:[#allocation4 + $0x548] sm:$0xff]
    %v1138 = vld [vmem:[#allocation4 + $0x580] sm:$0xff]
    %v1139 = vld [vmem:[#allocation4 + $0x588] sm:$0xff]
    %v1140 = vld [vmem:[#allocation4 + $0x5c0] sm:$0xff]
    %v1141 = vld [vmem:[#allocation4 + $0x5c8] sm:$0xff]
    %v1142 = vld [vmem:[#allocation4 + $0x600] sm:$0xff]
    %v1143 = vld [vmem:[#allocation4 + $0x608] sm:$0xff]
    %v1144 = vld [vmem:[#allocation4 + $0x640] sm:$0xff]
    %v1145 = vld [vmem:[#allocation4 + $0x648] sm:$0xff]
    %v1146 = vld [vmem:[#allocation4 + $0x680] sm:$0xff]
    %v1147 = vld [vmem:[#allocation4 + $0x688] sm:$0xff]
    %v1148 = vld [vmem:[#allocation4 + $0x6c0] sm:$0xff]
    %v1149 = vld [vmem:[#allocation4 + $0x6c8] sm:$0xff]
    %v1150 = vld [vmem:[#allocation4 + $0x700] sm:$0xff]
    %v1151 = vld [vmem:[#allocation4 + $0x708] sm:$0xff]
    %v1152 = vld [vmem:[#allocation4 + $0x740] sm:$0xff]
    %v1153 = vld [vmem:[#allocation4 + $0x748] sm:$0xff]
    %v1154 = vld [vmem:[#allocation4 + $0x780] sm:$0xff]
    %v1155 = vld [vmem:[#allocation4 + $0x788] sm:$0xff]
    %v1156 = vld [vmem:[#allocation4 + $0x7c0] sm:$0xff]
    %v1157 = vld [vmem:[#allocation4 + $0x7c8] sm:$0xff]
    %v1158 = vld [vmem:[#allocation4 + $0x800] sm:$0xff]
    %v1159 = vld [vmem:[#allocation4 + $0x808] sm:$0xff]
    %v1160 = vld [vmem:[#allocation4 + $0x840] sm:$0xff]
    %v1161 = vld [vmem:[#allocation4 + $0x848] sm:$0xff]
    %v1162 = vld [vmem:[#allocation4 + $0x880] sm:$0xff]
    %v1163 = vld [vmem:[#allocation4 + $0x888] sm:$0xff]
    %v1164 = vld [vmem:[#allocation4 + $0x8c0] sm:$0xff]
    %v1165 = vld [vmem:[#allocation4 + $0x8c8] sm:$0xff]
    %v1166 = vld [vmem:[#allocation4 + $0x900] sm:$0xff]
    %v1167 = vld [vmem:[#allocation4 + $0x908] sm:$0xff]
    %v1168 = vld [vmem:[#allocation4 + $0x940] sm:$0xff]
    %v1169 = vld [vmem:[#allocation4 + $0x948] sm:$0xff]
    %v1170 = vld [vmem:[#allocation4 + $0x980] sm:$0xff]
    %v1171 = vld [vmem:[#allocation4 + $0x988] sm:$0xff]
    %v1172 = vld [vmem:[#allocation4 + $0x9c0] sm:$0xff]
    %v1173 = vld [vmem:[#allocation4 + $0x9c8] sm:$0xff]
    %v1174 = vld [vmem:[#allocation4 + $0xa00] sm:$0xff]
    %v1175 = vld [vmem:[#allocation4 + $0xa08] sm:$0xff]
    %v1176 = vld [vmem:[#allocation4 + $0xa40] sm:$0xff]
    %v1177 = vld [vmem:[#allocation4 + $0xa48] sm:$0xff]
    %v1178 = vld [vmem:[#allocation4 + $0xa80] sm:$0xff]
    %v1179 = vld [vmem:[#allocation4 + $0xa88] sm:$0xff]
    %v1180 = vld [vmem:[#allocation4 + $0xac0] sm:$0xff]
    %v1181 = vld [vmem:[#allocation4 + $0xac8] sm:$0xff]
    %v1182 = vld [vmem:[#allocation4 + $0xb00] sm:$0xff]
    %v1183 = vld [vmem:[#allocation4 + $0xb08] sm:$0xff]
    %v1184 = vld [vmem:[#allocation4 + $0xb40] sm:$0xff]
    %v1185 = vld [vmem:[#allocation4 + $0xb48] sm:$0xff]
    %v1186 = vld [vmem:[#allocation4 + $0xb80] sm:$0xff]
    %v1187 = vld [vmem:[#allocation4 + $0xb88] sm:$0xff]
    %v1188 = vld [vmem:[#allocation4 + $0xbc0] sm:$0xff]
    %v1189 = vld [vmem:[#allocation4 + $0xbc8] sm:$0xff]
    %v1190 = vld [vmem:[#allocation4 + $0xc00] sm:$0xff]
    %v1191 = vld [vmem:[#allocation4 + $0xc08] sm:$0xff]
    %v1192 = vld [vmem:[#allocation4 + $0xc40] sm:$0xff]
    %v1193 = vld [vmem:[#allocation4 + $0xc48] sm:$0xff]
    %v1194 = vld [vmem:[#allocation4 + $0xc80] sm:$0xff]
    %v1195 = vld [vmem:[#allocation4 + $0xc88] sm:$0xff]
    %v1196 = vld [vmem:[#allocation4 + $0xcc0] sm:$0xff]
    %v1197 = vld [vmem:[#allocation4 + $0xcc8] sm:$0xff]
    %v1198 = vld [vmem:[#allocation4 + $0xd00] sm:$0xff]
    %v1199 = vld [vmem:[#allocation4 + $0xd08] sm:$0xff]
    %v1200 = vld [vmem:[#allocation4 + $0xd40] sm:$0xff]
    %v1201 = vld [vmem:[#allocation4 + $0xd48] sm:$0xff]
    %v1202 = vld [vmem:[#allocation4 + $0xd80] sm:$0xff]
    %v1203 = vld [vmem:[#allocation4 + $0xd88] sm:$0xff]
    %v1204 = vld [vmem:[#allocation4 + $0xdc0] sm:$0xff]
    %v1205 = vld [vmem:[#allocation4 + $0xdc8] sm:$0xff]
    %v1206 = vld [vmem:[#allocation4 + $0xe00] sm:$0xff]
    %v1207 = vld [vmem:[#allocation4 + $0xe08] sm:$0xff]
    %v1208 = vld [vmem:[#allocation4 + $0xe40] sm:$0xff]
    %v1209 = vld [vmem:[#allocation4 + $0xe48] sm:$0xff]
    %v1210 = vld [vmem:[#allocation4 + $0xe80] sm:$0xff]
    %v1211 = vld [vmem:[#allocation4 + $0xe88] sm:$0xff]
    %v1212 = vld [vmem:[#allocation4 + $0xec0] sm:$0xff]
    %v1213 = vld [vmem:[#allocation4 + $0xec8] sm:$0xff]
    %v1214 = vld [vmem:[#allocation4 + $0xf00] sm:$0xff]
    %v1215 = vld [vmem:[#allocation4 + $0xf08] sm:$0xff]
    %v1216 = vld [vmem:[#allocation4 + $0xf40] sm:$0xff]
    %v1217 = vld [vmem:[#allocation4 + $0xf48] sm:$0xff]
    %v1218 = vld [vmem:[#allocation4 + $0xf80] sm:$0xff]
    %v1219 = vld [vmem:[#allocation4 + $0xf88] sm:$0xff]
    %v1220 = vld [vmem:[#allocation4 + $0xfc0] sm:$0xff]
    %v1221 = vld [vmem:[#allocation4 + $0xfc8] sm:$0xff]
    %1222 = vmatprep.subr.mxu0 %v1125
    %1223 = vmatpush1.msra.mxu0 %v1124
    %1224 = vmatprep.subr.mxu0 %v1123
    %1225 = vmatpush1.msra.mxu0 %v1122
    %1226 = vmatprep.subr.mxu0 %v1121
    %1227 = vmatpush1.msra.mxu0 %v1120
    %1228 = vmatprep.subr.mxu0 %v1119
    %1229 = vmatpush1.msra.mxu0 %v1118
    %1230 = vmatprep.subr.mxu0 %v1117
    %1231 = vmatpush1.msra.mxu0 %v1116
    %1232 = vmatprep.subr.mxu0 %v1115
    %1233 = vmatpush1.msra.mxu0 %v1114
    %1234 = vmatprep.subr.mxu0 %v1113
    %1235 = vmatpush1.msra.mxu0 %v1112
    %1236 = vmatprep.subr.mxu0 %v1111
    %1237 = vmatpush1.msra.mxu0 %v1110
    %1238 = vmatprep.subr.mxu0 %v1109
    %1239 = vmatpush1.msra.mxu0 %v1108
    %1240 = vmatprep.subr.mxu0 %v1107
    %1241 = vmatpush1.msra.mxu0 %v1106
    %1242 = vmatprep.subr.mxu0 %v1105
    %1243 = vmatpush1.msra.mxu0 %v1104
    %1244 = vmatprep.subr.mxu0 %v1103
    %1245 = vmatpush1.msra.mxu0 %v1102
    %1246 = vmatprep.subr.mxu0 %v1101
    %1247 = vmatpush1.msra.mxu0 %v1100
    %1248 = vmatprep.subr.mxu0 %v1099
    %1249 = vmatpush1.msra.mxu0 %v1098
    %1250 = vmatprep.subr.mxu0 %v1097
    %1251 = vmatpush1.msra.mxu0 %v1096
    %1252 = vmatprep.subr.mxu0 %v1095
    %1253 = vmatpush1.msra.mxu0 %v1094
    %1254 = vmatprep.subr.mxu0 %v1157
    %1255 = vmatpush2.msra.mxu0 %v1156
    %1256 = vmatprep.subr.mxu0 %v1155
    %1257 = vmatpush2.msra.mxu0 %v1154
    %1258 = vmatprep.subr.mxu0 %v1153
    %1259 = vmatpush2.msra.mxu0 %v1152
    %1260 = vmatprep.subr.mxu0 %v1151
    %1261 = vmatpush2.msra.mxu0 %v1150
    %1262 = vmatprep.subr.mxu0 %v1149
    %1263 = vmatpush2.msra.mxu0 %v1148
    %1264 = vmatprep.subr.mxu0 %v1147
    %1265 = vmatpush2.msra.mxu0 %v1146
    %1266 = vmatprep.subr.mxu0 %v1145
    %1267 = vmatpush2.msra.mxu0 %v1144
    %1268 = vmatprep.subr.mxu0 %v1143
    %1269 = vmatpush2.msra.mxu0 %v1142
    %1270 = vmatprep.subr.mxu0 %v1141
    %1271 = vmatpush2.msra.mxu0 %v1140
    %1272 = vmatprep.subr.mxu0 %v1139
    %1273 = vmatpush2.msra.mxu0 %v1138
    %1274 = vmatprep.subr.mxu0 %v1137
    %1275 = vmatpush2.msra.mxu0 %v1136
    %1276 = vmatprep.subr.mxu0 %v1135
    %1277 = vmatpush2.msra.mxu0 %v1134
    %1278 = vmatprep.subr.mxu0 %v1133
    %1279 = vmatpush2.msra.mxu0 %v1132
    %1280 = vmatprep.subr.mxu0 %v1131
    %1281 = vmatpush2.msra.mxu0 %v1130
    %1282 = vmatprep.subr.mxu0 %v1129
    %1283 = vmatpush2.msra.mxu0 %v1128
    %1284 = vmatprep.subr.mxu0 %v1127
    %1285 = vmatpush2.msra.mxu0 %v1126
    %1286 = vmatprep.mubr.f32.mxu0 %v1087
    %1287 = vmatmul.mubr.f32.gmra.mxu0 %v1086
    %v1288 = vpop.f32.mrf.mxu0
    %v1289 = vadd.f32 0.0, %v1288
    %v1290 = vpop.f32.mrf.mxu0
    %v1291 = vadd.f32 0.0, %v1290
    %1292 = vdwg.mxu0
    %1293 = vmatprep.subr.mxu0 %v1189
    %1294 = vmatpush1.msra.mxu0 %v1188
    %1295 = vmatprep.subr.mxu0 %v1187
    %1296 = vmatpush1.msra.mxu0 %v1186
    %1297 = vmatprep.subr.mxu0 %v1185
    %1298 = vmatpush1.msra.mxu0 %v1184
    %1299 = vmatprep.subr.mxu0 %v1183
    %1300 = vmatpush1.msra.mxu0 %v1182
    %1301 = vmatprep.subr.mxu0 %v1181
    %1302 = vmatpush1.msra.mxu0 %v1180
    %1303 = vmatprep.subr.mxu0 %v1179
    %1304 = vmatpush1.msra.mxu0 %v1178
    %1305 = vmatprep.subr.mxu0 %v1177
    %1306 = vmatpush1.msra.mxu0 %v1176
    %1307 = vmatprep.subr.mxu0 %v1175
    %1308 = vmatpush1.msra.mxu0 %v1174
    %1309 = vmatprep.subr.mxu0 %v1173
    %1310 = vmatpush1.msra.mxu0 %v1172
    %1311 = vmatprep.subr.mxu0 %v1171
    %1312 = vmatpush1.msra.mxu0 %v1170
    %1313 = vmatprep.subr.mxu0 %v1169
    %1314 = vmatpush1.msra.mxu0 %v1168
    %1315 = vmatprep.subr.mxu0 %v1167
    %1316 = vmatpush1.msra.mxu0 %v1166
    %1317 = vmatprep.subr.mxu0 %v1165
    %1318 = vmatpush1.msra.mxu0 %v1164
    %1319 = vmatprep.subr.mxu0 %v1163
    %1320 = vmatpush1.msra.mxu0 %v1162
    %1321 = vmatprep.subr.mxu0 %v1161
    %1322 = vmatpush1.msra.mxu0 %v1160
    %1323 = vmatprep.subr.mxu0 %v1159
    %1324 = vmatpush1.msra.mxu0 %v1158
    %1325 = vmatprep.subr.mxu0 %v1221
    %1326 = vmatpush2.msra.mxu0 %v1220
    %1327 = vmatprep.subr.mxu0 %v1219
    %1328 = vmatpush2.msra.mxu0 %v1218
    %1329 = vmatprep.subr.mxu0 %v1217
    %1330 = vmatpush2.msra.mxu0 %v1216
    %1331 = vmatprep.subr.mxu0 %v1215
    %1332 = vmatpush2.msra.mxu0 %v1214
    %1333 = vmatprep.subr.mxu0 %v1213
    %1334 = vmatpush2.msra.mxu0 %v1212
    %1335 = vmatprep.subr.mxu0 %v1211
    %1336 = vmatpush2.msra.mxu0 %v1210
    %1337 = vmatprep.subr.mxu0 %v1209
    %1338 = vmatpush2.msra.mxu0 %v1208
    %1339 = vmatprep.subr.mxu0 %v1207
    %1340 = vmatpush2.msra.mxu0 %v1206
    %1341 = vmatprep.subr.mxu0 %v1205
    %1342 = vmatpush2.msra.mxu0 %v1204
    %1343 = vmatprep.subr.mxu0 %v1203
    %1344 = vmatpush2.msra.mxu0 %v1202
    %1345 = vmatprep.subr.mxu0 %v1201
    %1346 = vmatpush2.msra.mxu0 %v1200
    %1347 = vmatprep.subr.mxu0 %v1199
    %1348 = vmatpush2.msra.mxu0 %v1198
    %1349 = vmatprep.subr.mxu0 %v1197
    %1350 = vmatpush2.msra.mxu0 %v1196
    %1351 = vmatprep.subr.mxu0 %v1195
    %1352 = vmatpush2.msra.mxu0 %v1194
    %1353 = vmatprep.subr.mxu0 %v1193
    %1354 = vmatpush2.msra.mxu0 %v1192
    %1355 = vmatprep.subr.mxu0 %v1191
    %1356 = vmatpush2.msra.mxu0 %v1190
    %1357 = vmatprep.mubr.f32.mxu0 %v1089
    %1358 = vmatmul.mubr.f32.gmra.mxu0 %v1088
    %v1359 = vpop.f32.mrf.mxu0
    %v1360 = vadd.f32 %v1289, %v1359
    %v1361 = vpop.f32.mrf.mxu0
    %v1362 = vadd.f32 %v1291, %v1361
    %1363 = vdwg.mxu0
    %s1364 = sshll.u32 %s1091, 4
    %1365 = dma.done %s87, %s1364
    %v1366 = vld [vmem:[#allocation4 + $0x10] sm:$0xff]
    %v1367 = vld [vmem:[#allocation4 + $0x18] sm:$0xff]
    %v1368 = vld [vmem:[#allocation4 + $0x50] sm:$0xff]
    %v1369 = vld [vmem:[#allocation4 + $0x58] sm:$0xff]
    %v1370 = vld [vmem:[#allocation4 + $0x90] sm:$0xff]
    %v1371 = vld [vmem:[#allocation4 + $0x98] sm:$0xff]
    %v1372 = vld [vmem:[#allocation4 + $0xd0] sm:$0xff]
    %v1373 = vld [vmem:[#allocation4 + $0xd8] sm:$0xff]
    %v1374 = vld [vmem:[#allocation4 + $0x110] sm:$0xff]
    %v1375 = vld [vmem:[#allocation4 + $0x118] sm:$0xff]
    %v1376 = vld [vmem:[#allocation4 + $0x150] sm:$0xff]
    %v1377 = vld [vmem:[#allocation4 + $0x158] sm:$0xff]
    %v1378 = vld [vmem:[#allocation4 + $0x190] sm:$0xff]
    %v1379 = vld [vmem:[#allocation4 + $0x198] sm:$0xff]
    %v1380 = vld [vmem:[#allocation4 + $0x1d0] sm:$0xff]
    %v1381 = vld [vmem:[#allocation4 + $0x1d8] sm:$0xff]
    %v1382 = vld [vmem:[#allocation4 + $0x210] sm:$0xff]
    %v1383 = vld [vmem:[#allocation4 + $0x218] sm:$0xff]
    %v1384 = vld [vmem:[#allocation4 + $0x250] sm:$0xff]
    %v1385 = vld [vmem:[#allocation4 + $0x258] sm:$0xff]
    %v1386 = vld [vmem:[#allocation4 + $0x290] sm:$0xff]
    %v1387 = vld [vmem:[#allocation4 + $0x298] sm:$0xff]
    %v1388 = vld [vmem:[#allocation4 + $0x2d0] sm:$0xff]
    %v1389 = vld [vmem:[#allocation4 + $0x2d8] sm:$0xff]
    %v1390 = vld [vmem:[#allocation4 + $0x310] sm:$0xff]
    %v1391 = vld [vmem:[#allocation4 + $0x318] sm:$0xff]
    %v1392 = vld [vmem:[#allocation4 + $0x350] sm:$0xff]
    %v1393 = vld [vmem:[#allocation4 + $0x358] sm:$0xff]
    %v1394 = vld [vmem:[#allocation4 + $0x390] sm:$0xff]
    %v1395 = vld [vmem:[#allocation4 + $0x398] sm:$0xff]
    %v1396 = vld [vmem:[#allocation4 + $0x3d0] sm:$0xff]
    %v1397 = vld [vmem:[#allocation4 + $0x3d8] sm:$0xff]
    %v1398 = vld [vmem:[#allocation4 + $0x410] sm:$0xff]
    %v1399 = vld [vmem:[#allocation4 + $0x418] sm:$0xff]
    %v1400 = vld [vmem:[#allocation4 + $0x450] sm:$0xff]
    %v1401 = vld [vmem:[#allocation4 + $0x458] sm:$0xff]
    %v1402 = vld [vmem:[#allocation4 + $0x490] sm:$0xff]
    %v1403 = vld [vmem:[#allocation4 + $0x498] sm:$0xff]
    %v1404 = vld [vmem:[#allocation4 + $0x4d0] sm:$0xff]
    %v1405 = vld [vmem:[#allocation4 + $0x4d8] sm:$0xff]
    %v1406 = vld [vmem:[#allocation4 + $0x510] sm:$0xff]
    %v1407 = vld [vmem:[#allocation4 + $0x518] sm:$0xff]
    %v1408 = vld [vmem:[#allocation4 + $0x550] sm:$0xff]
    %v1409 = vld [vmem:[#allocation4 + $0x558] sm:$0xff]
    %v1410 = vld [vmem:[#allocation4 + $0x590] sm:$0xff]
    %v1411 = vld [vmem:[#allocation4 + $0x598] sm:$0xff]
    %v1412 = vld [vmem:[#allocation4 + $0x5d0] sm:$0xff]
    %v1413 = vld [vmem:[#allocation4 + $0x5d8] sm:$0xff]
    %v1414 = vld [vmem:[#allocation4 + $0x610] sm:$0xff]
    %v1415 = vld [vmem:[#allocation4 + $0x618] sm:$0xff]
    %v1416 = vld [vmem:[#allocation4 + $0x650] sm:$0xff]
    %v1417 = vld [vmem:[#allocation4 + $0x658] sm:$0xff]
    %v1418 = vld [vmem:[#allocation4 + $0x690] sm:$0xff]
    %v1419 = vld [vmem:[#allocation4 + $0x698] sm:$0xff]
    %v1420 = vld [vmem:[#allocation4 + $0x6d0] sm:$0xff]
    %v1421 = vld [vmem:[#allocation4 + $0x6d8] sm:$0xff]
    %v1422 = vld [vmem:[#allocation4 + $0x710] sm:$0xff]
    %v1423 = vld [vmem:[#allocation4 + $0x718] sm:$0xff]
    %v1424 = vld [vmem:[#allocation4 + $0x750] sm:$0xff]
    %v1425 = vld [vmem:[#allocation4 + $0x758] sm:$0xff]
    %v1426 = vld [vmem:[#allocation4 + $0x790] sm:$0xff]
    %v1427 = vld [vmem:[#allocation4 + $0x798] sm:$0xff]
    %v1428 = vld [vmem:[#allocation4 + $0x7d0] sm:$0xff]
    %v1429 = vld [vmem:[#allocation4 + $0x7d8] sm:$0xff]
    %v1430 = vld [vmem:[#allocation4 + $0x810] sm:$0xff]
    %v1431 = vld [vmem:[#allocation4 + $0x818] sm:$0xff]
    %v1432 = vld [vmem:[#allocation4 + $0x850] sm:$0xff]
    %v1433 = vld [vmem:[#allocation4 + $0x858] sm:$0xff]
    %v1434 = vld [vmem:[#allocation4 + $0x890] sm:$0xff]
    %v1435 = vld [vmem:[#allocation4 + $0x898] sm:$0xff]
    %v1436 = vld [vmem:[#allocation4 + $0x8d0] sm:$0xff]
    %v1437 = vld [vmem:[#allocation4 + $0x8d8] sm:$0xff]
    %v1438 = vld [vmem:[#allocation4 + $0x910] sm:$0xff]
    %v1439 = vld [vmem:[#allocation4 + $0x918] sm:$0xff]
    %v1440 = vld [vmem:[#allocation4 + $0x950] sm:$0xff]
    %v1441 = vld [vmem:[#allocation4 + $0x958] sm:$0xff]
    %v1442 = vld [vmem:[#allocation4 + $0x990] sm:$0xff]
    %v1443 = vld [vmem:[#allocation4 + $0x998] sm:$0xff]
    %v1444 = vld [vmem:[#allocation4 + $0x9d0] sm:$0xff]
    %v1445 = vld [vmem:[#allocation4 + $0x9d8] sm:$0xff]
    %v1446 = vld [vmem:[#allocation4 + $0xa10] sm:$0xff]
    %v1447 = vld [vmem:[#allocation4 + $0xa18] sm:$0xff]
    %v1448 = vld [vmem:[#allocation4 + $0xa50] sm:$0xff]
    %v1449 = vld [vmem:[#allocation4 + $0xa58] sm:$0xff]
    %v1450 = vld [vmem:[#allocation4 + $0xa90] sm:$0xff]
    %v1451 = vld [vmem:[#allocation4 + $0xa98] sm:$0xff]
    %v1452 = vld [vmem:[#allocation4 + $0xad0] sm:$0xff]
    %v1453 = vld [vmem:[#allocation4 + $0xad8] sm:$0xff]
    %v1454 = vld [vmem:[#allocation4 + $0xb10] sm:$0xff]
    %v1455 = vld [vmem:[#allocation4 + $0xb18] sm:$0xff]
    %v1456 = vld [vmem:[#allocation4 + $0xb50] sm:$0xff]
    %v1457 = vld [vmem:[#allocation4 + $0xb58] sm:$0xff]
    %v1458 = vld [vmem:[#allocation4 + $0xb90] sm:$0xff]
    %v1459 = vld [vmem:[#allocation4 + $0xb98] sm:$0xff]
    %v1460 = vld [vmem:[#allocation4 + $0xbd0] sm:$0xff]
    %v1461 = vld [vmem:[#allocation4 + $0xbd8] sm:$0xff]
    %v1462 = vld [vmem:[#allocation4 + $0xc10] sm:$0xff]
    %v1463 = vld [vmem:[#allocation4 + $0xc18] sm:$0xff]
    %v1464 = vld [vmem:[#allocation4 + $0xc50] sm:$0xff]
    %v1465 = vld [vmem:[#allocation4 + $0xc58] sm:$0xff]
    %v1466 = vld [vmem:[#allocation4 + $0xc90] sm:$0xff]
    %v1467 = vld [vmem:[#allocation4 + $0xc98] sm:$0xff]
    %v1468 = vld [vmem:[#allocation4 + $0xcd0] sm:$0xff]
    %v1469 = vld [vmem:[#allocation4 + $0xcd8] sm:$0xff]
    %v1470 = vld [vmem:[#allocation4 + $0xd10] sm:$0xff]
    %v1471 = vld [vmem:[#allocation4 + $0xd18] sm:$0xff]
    %v1472 = vld [vmem:[#allocation4 + $0xd50] sm:$0xff]
    %v1473 = vld [vmem:[#allocation4 + $0xd58] sm:$0xff]
    %v1474 = vld [vmem:[#allocation4 + $0xd90] sm:$0xff]
    %v1475 = vld [vmem:[#allocation4 + $0xd98] sm:$0xff]
    %v1476 = vld [vmem:[#allocation4 + $0xdd0] sm:$0xff]
    %v1477 = vld [vmem:[#allocation4 + $0xdd8] sm:$0xff]
    %v1478 = vld [vmem:[#allocation4 + $0xe10] sm:$0xff]
    %v1479 = vld [vmem:[#allocation4 + $0xe18] sm:$0xff]
    %v1480 = vld [vmem:[#allocation4 + $0xe50] sm:$0xff]
    %v1481 = vld [vmem:[#allocation4 + $0xe58] sm:$0xff]
    %v1482 = vld [vmem:[#allocation4 + $0xe90] sm:$0xff]
    %v1483 = vld [vmem:[#allocation4 + $0xe98] sm:$0xff]
    %v1484 = vld [vmem:[#allocation4 + $0xed0] sm:$0xff]
    %v1485 = vld [vmem:[#allocation4 + $0xed8] sm:$0xff]
    %v1486 = vld [vmem:[#allocation4 + $0xf10] sm:$0xff]
    %v1487 = vld [vmem:[#allocation4 + $0xf18] sm:$0xff]
    %v1488 = vld [vmem:[#allocation4 + $0xf50] sm:$0xff]
    %v1489 = vld [vmem:[#allocation4 + $0xf58] sm:$0xff]
    %v1490 = vld [vmem:[#allocation4 + $0xf90] sm:$0xff]
    %v1491 = vld [vmem:[#allocation4 + $0xf98] sm:$0xff]
    %v1492 = vld [vmem:[#allocation4 + $0xfd0] sm:$0xff]
    %v1493 = vld [vmem:[#allocation4 + $0xfd8] sm:$0xff]
    %1494 = vmatprep.subr.mxu0 %v1397
    %1495 = vmatpush1.msra.mxu0 %v1396
    %1496 = vmatprep.subr.mxu0 %v1395
    %1497 = vmatpush1.msra.mxu0 %v1394
    %1498 = vmatprep.subr.mxu0 %v1393
    %1499 = vmatpush1.msra.mxu0 %v1392
    %1500 = vmatprep.subr.mxu0 %v1391
    %1501 = vmatpush1.msra.mxu0 %v1390
    %1502 = vmatprep.subr.mxu0 %v1389
    %1503 = vmatpush1.msra.mxu0 %v1388
    %1504 = vmatprep.subr.mxu0 %v1387
    %1505 = vmatpush1.msra.mxu0 %v1386
    %1506 = vmatprep.subr.mxu0 %v1385
    %1507 = vmatpush1.msra.mxu0 %v1384
    %1508 = vmatprep.subr.mxu0 %v1383
    %1509 = vmatpush1.msra.mxu0 %v1382
    %1510 = vmatprep.subr.mxu0 %v1381
    %1511 = vmatpush1.msra.mxu0 %v1380
    %1512 = vmatprep.subr.mxu0 %v1379
    %1513 = vmatpush1.msra.mxu0 %v1378
    %1514 = vmatprep.subr.mxu0 %v1377
    %1515 = vmatpush1.msra.mxu0 %v1376
    %1516 = vmatprep.subr.mxu0 %v1375
    %1517 = vmatpush1.msra.mxu0 %v1374
    %1518 = vmatprep.subr.mxu0 %v1373
    %1519 = vmatpush1.msra.mxu0 %v1372
    %1520 = vmatprep.subr.mxu0 %v1371
    %1521 = vmatpush1.msra.mxu0 %v1370
    %1522 = vmatprep.subr.mxu0 %v1369
    %1523 = vmatpush1.msra.mxu0 %v1368
    %1524 = vmatprep.subr.mxu0 %v1367
    %1525 = vmatpush1.msra.mxu0 %v1366
    %1526 = vmatprep.subr.mxu0 %v1429
    %1527 = vmatpush2.msra.mxu0 %v1428
    %1528 = vmatprep.subr.mxu0 %v1427
    %1529 = vmatpush2.msra.mxu0 %v1426
    %1530 = vmatprep.subr.mxu0 %v1425
    %1531 = vmatpush2.msra.mxu0 %v1424
    %1532 = vmatprep.subr.mxu0 %v1423
    %1533 = vmatpush2.msra.mxu0 %v1422
    %1534 = vmatprep.subr.mxu0 %v1421
    %1535 = vmatpush2.msra.mxu0 %v1420
    %1536 = vmatprep.subr.mxu0 %v1419
    %1537 = vmatpush2.msra.mxu0 %v1418
    %1538 = vmatprep.subr.mxu0 %v1417
    %1539 = vmatpush2.msra.mxu0 %v1416
    %1540 = vmatprep.subr.mxu0 %v1415
    %1541 = vmatpush2.msra.mxu0 %v1414
    %1542 = vmatprep.subr.mxu0 %v1413
    %1543 = vmatpush2.msra.mxu0 %v1412
    %1544 = vmatprep.subr.mxu0 %v1411
    %1545 = vmatpush2.msra.mxu0 %v1410
    %1546 = vmatprep.subr.mxu0 %v1409
    %1547 = vmatpush2.msra.mxu0 %v1408
    %1548 = vmatprep.subr.mxu0 %v1407
    %1549 = vmatpush2.msra.mxu0 %v1406
    %1550 = vmatprep.subr.mxu0 %v1405
    %1551 = vmatpush2.msra.mxu0 %v1404
    %1552 = vmatprep.subr.mxu0 %v1403
    %1553 = vmatpush2.msra.mxu0 %v1402
    %1554 = vmatprep.subr.mxu0 %v1401
    %1555 = vmatpush2.msra.mxu0 %v1400
    %1556 = vmatprep.subr.mxu0 %v1399
    %1557 = vmatpush2.msra.mxu0 %v1398
    %1558 = vmatprep.mubr.f32.mxu0 %v1087
    %1559 = vmatmul.mubr.f32.gmra.mxu0 %v1086
    %v1560 = vpop.f32.mrf.mxu0
    %v1561 = vadd.f32 0.0, %v1560
    %v1562 = vpop.f32.mrf.mxu0
    %v1563 = vadd.f32 0.0, %v1562
    %1564 = vdwg.mxu0
    %1565 = vmatprep.subr.mxu0 %v1461
    %1566 = vmatpush1.msra.mxu0 %v1460
    %1567 = vmatprep.subr.mxu0 %v1459
    %1568 = vmatpush1.msra.mxu0 %v1458
    %1569 = vmatprep.subr.mxu0 %v1457
    %1570 = vmatpush1.msra.mxu0 %v1456
    %1571 = vmatprep.subr.mxu0 %v1455
    %1572 = vmatpush1.msra.mxu0 %v1454
    %1573 = vmatprep.subr.mxu0 %v1453
    %1574 = vmatpush1.msra.mxu0 %v1452
    %1575 = vmatprep.subr.mxu0 %v1451
    %1576 = vmatpush1.msra.mxu0 %v1450
    %1577 = vmatprep.subr.mxu0 %v1449
    %1578 = vmatpush1.msra.mxu0 %v1448
    %1579 = vmatprep.subr.mxu0 %v1447
    %1580 = vmatpush1.msra.mxu0 %v1446
    %1581 = vmatprep.subr.mxu0 %v1445
    %1582 = vmatpush1.msra.mxu0 %v1444
    %1583 = vmatprep.subr.mxu0 %v1443
    %1584 = vmatpush1.msra.mxu0 %v1442
    %1585 = vmatprep.subr.mxu0 %v1441
    %1586 = vmatpush1.msra.mxu0 %v1440
    %1587 = vmatprep.subr.mxu0 %v1439
    %1588 = vmatpush1.msra.mxu0 %v1438
    %1589 = vmatprep.subr.mxu0 %v1437
    %1590 = vmatpush1.msra.mxu0 %v1436
    %1591 = vmatprep.subr.mxu0 %v1435
    %1592 = vmatpush1.msra.mxu0 %v1434
    %1593 = vmatprep.subr.mxu0 %v1433
    %1594 = vmatpush1.msra.mxu0 %v1432
    %1595 = vmatprep.subr.mxu0 %v1431
    %1596 = vmatpush1.msra.mxu0 %v1430
    %1597 = vmatprep.subr.mxu0 %v1493
    %1598 = vmatpush2.msra.mxu0 %v1492
    %1599 = vmatprep.subr.mxu0 %v1491
    %1600 = vmatpush2.msra.mxu0 %v1490
    %1601 = vmatprep.subr.mxu0 %v1489
    %1602 = vmatpush2.msra.mxu0 %v1488
    %1603 = vmatprep.subr.mxu0 %v1487
    %1604 = vmatpush2.msra.mxu0 %v1486
    %1605 = vmatprep.subr.mxu0 %v1485
    %1606 = vmatpush2.msra.mxu0 %v1484
    %1607 = vmatprep.subr.mxu0 %v1483
    %1608 = vmatpush2.msra.mxu0 %v1482
    %1609 = vmatprep.subr.mxu0 %v1481
    %1610 = vmatpush2.msra.mxu0 %v1480
    %1611 = vmatprep.subr.mxu0 %v1479
    %1612 = vmatpush2.msra.mxu0 %v1478
    %1613 = vmatprep.subr.mxu0 %v1477
    %1614 = vmatpush2.msra.mxu0 %v1476
    %1615 = vmatprep.subr.mxu0 %v1475
    %1616 = vmatpush2.msra.mxu0 %v1474
    %1617 = vmatprep.subr.mxu0 %v1473
    %1618 = vmatpush2.msra.mxu0 %v1472
    %1619 = vmatprep.subr.mxu0 %v1471
    %1620 = vmatpush2.msra.mxu0 %v1470
    %1621 = vmatprep.subr.mxu0 %v1469
    %1622 = vmatpush2.msra.mxu0 %v1468
    %1623 = vmatprep.subr.mxu0 %v1467
    %1624 = vmatpush2.msra.mxu0 %v1466
    %1625 = vmatprep.subr.mxu0 %v1465
    %1626 = vmatpush2.msra.mxu0 %v1464
    %1627 = vmatprep.subr.mxu0 %v1463
    %1628 = vmatpush2.msra.mxu0 %v1462
    %1629 = vmatprep.mubr.f32.mxu0 %v1089
    %1630 = vmatmul.mubr.f32.gmra.mxu0 %v1088
    %v1631 = vpop.f32.mrf.mxu0
    %v1632 = vadd.f32 %v1561, %v1631
    %v1633 = vpop.f32.mrf.mxu0
    %v1634 = vadd.f32 %v1563, %v1633
    %1635 = vdwg.mxu0
    %s1636 = sshll.u32 %s1091, 4
    %1637 = dma.done %s95, %s1636
    %v1638 = vld [vmem:[#allocation4 + $0x20] sm:$0xff]
    %v1639 = vld [vmem:[#allocation4 + $0x28] sm:$0xff]
    %v1640 = vld [vmem:[#allocation4 + $0x60] sm:$0xff]
    %v1641 = vld [vmem:[#allocation4 + $0x68] sm:$0xff]
    %v1642 = vld [vmem:[#allocation4 + $0xa0] sm:$0xff]
    %v1643 = vld [vmem:[#allocation4 + $0xa8] sm:$0xff]
    %v1644 = vld [vmem:[#allocation4 + $0xe0] sm:$0xff]
    %v1645 = vld [vmem:[#allocation4 + $0xe8] sm:$0xff]
    %v1646 = vld [vmem:[#allocation4 + $0x120] sm:$0xff]
    %v1647 = vld [vmem:[#allocation4 + $0x128] sm:$0xff]
    %v1648 = vld [vmem:[#allocation4 + $0x160] sm:$0xff]
    %v1649 = vld [vmem:[#allocation4 + $0x168] sm:$0xff]
    %v1650 = vld [vmem:[#allocation4 + $0x1a0] sm:$0xff]
    %v1651 = vld [vmem:[#allocation4 + $0x1a8] sm:$0xff]
    %v1652 = vld [vmem:[#allocation4 + $0x1e0] sm:$0xff]
    %v1653 = vld [vmem:[#allocation4 + $0x1e8] sm:$0xff]
    %v1654 = vld [vmem:[#allocation4 + $0x220] sm:$0xff]
    %v1655 = vld [vmem:[#allocation4 + $0x228] sm:$0xff]
    %v1656 = vld [vmem:[#allocation4 + $0x260] sm:$0xff]
    %v1657 = vld [vmem:[#allocation4 + $0x268] sm:$0xff]
    %v1658 = vld [vmem:[#allocation4 + $0x2a0] sm:$0xff]
    %v1659 = vld [vmem:[#allocation4 + $0x2a8] sm:$0xff]
    %v1660 = vld [vmem:[#allocation4 + $0x2e0] sm:$0xff]
    %v1661 = vld [vmem:[#allocation4 + $0x2e8] sm:$0xff]
    %v1662 = vld [vmem:[#allocation4 + $0x320] sm:$0xff]
    %v1663 = vld [vmem:[#allocation4 + $0x328] sm:$0xff]
    %v1664 = vld [vmem:[#allocation4 + $0x360] sm:$0xff]
    %v1665 = vld [vmem:[#allocation4 + $0x368] sm:$0xff]
    %v1666 = vld [vmem:[#allocation4 + $0x3a0] sm:$0xff]
    %v1667 = vld [vmem:[#allocation4 + $0x3a8] sm:$0xff]
    %v1668 = vld [vmem:[#allocation4 + $0x3e0] sm:$0xff]
    %v1669 = vld [vmem:[#allocation4 + $0x3e8] sm:$0xff]
    %v1670 = vld [vmem:[#allocation4 + $0x420] sm:$0xff]
    %v1671 = vld [vmem:[#allocation4 + $0x428] sm:$0xff]
    %v1672 = vld [vmem:[#allocation4 + $0x460] sm:$0xff]
    %v1673 = vld [vmem:[#allocation4 + $0x468] sm:$0xff]
    %v1674 = vld [vmem:[#allocation4 + $0x4a0] sm:$0xff]
    %v1675 = vld [vmem:[#allocation4 + $0x4a8] sm:$0xff]
    %v1676 = vld [vmem:[#allocation4 + $0x4e0] sm:$0xff]
    %v1677 = vld [vmem:[#allocation4 + $0x4e8] sm:$0xff]
    %v1678 = vld [vmem:[#allocation4 + $0x520] sm:$0xff]
    %v1679 = vld [vmem:[#allocation4 + $0x528] sm:$0xff]
    %v1680 = vld [vmem:[#allocation4 + $0x560] sm:$0xff]
    %v1681 = vld [vmem:[#allocation4 + $0x568] sm:$0xff]
    %v1682 = vld [vmem:[#allocation4 + $0x5a0] sm:$0xff]
    %v1683 = vld [vmem:[#allocation4 + $0x5a8] sm:$0xff]
    %v1684 = vld [vmem:[#allocation4 + $0x5e0] sm:$0xff]
    %v1685 = vld [vmem:[#allocation4 + $0x5e8] sm:$0xff]
    %v1686 = vld [vmem:[#allocation4 + $0x620] sm:$0xff]
    %v1687 = vld [vmem:[#allocation4 + $0x628] sm:$0xff]
    %v1688 = vld [vmem:[#allocation4 + $0x660] sm:$0xff]
    %v1689 = vld [vmem:[#allocation4 + $0x668] sm:$0xff]
    %v1690 = vld [vmem:[#allocation4 + $0x6a0] sm:$0xff]
    %v1691 = vld [vmem:[#allocation4 + $0x6a8] sm:$0xff]
    %v1692 = vld [vmem:[#allocation4 + $0x6e0] sm:$0xff]
    %v1693 = vld [vmem:[#allocation4 + $0x6e8] sm:$0xff]
    %v1694 = vld [vmem:[#allocation4 + $0x720] sm:$0xff]
    %v1695 = vld [vmem:[#allocation4 + $0x728] sm:$0xff]
    %v1696 = vld [vmem:[#allocation4 + $0x760] sm:$0xff]
    %v1697 = vld [vmem:[#allocation4 + $0x768] sm:$0xff]
    %v1698 = vld [vmem:[#allocation4 + $0x7a0] sm:$0xff]
    %v1699 = vld [vmem:[#allocation4 + $0x7a8] sm:$0xff]
    %v1700 = vld [vmem:[#allocation4 + $0x7e0] sm:$0xff]
    %v1701 = vld [vmem:[#allocation4 + $0x7e8] sm:$0xff]
    %v1702 = vld [vmem:[#allocation4 + $0x820] sm:$0xff]
    %v1703 = vld [vmem:[#allocation4 + $0x828] sm:$0xff]
    %v1704 = vld [vmem:[#allocation4 + $0x860] sm:$0xff]
    %v1705 = vld [vmem:[#allocation4 + $0x868] sm:$0xff]
    %v1706 = vld [vmem:[#allocation4 + $0x8a0] sm:$0xff]
    %v1707 = vld [vmem:[#allocation4 + $0x8a8] sm:$0xff]
    %v1708 = vld [vmem:[#allocation4 + $0x8e0] sm:$0xff]
    %v1709 = vld [vmem:[#allocation4 + $0x8e8] sm:$0xff]
    %v1710 = vld [vmem:[#allocation4 + $0x920] sm:$0xff]
    %v1711 = vld [vmem:[#allocation4 + $0x928] sm:$0xff]
    %v1712 = vld [vmem:[#allocation4 + $0x960] sm:$0xff]
    %v1713 = vld [vmem:[#allocation4 + $0x968] sm:$0xff]
    %v1714 = vld [vmem:[#allocation4 + $0x9a0] sm:$0xff]
    %v1715 = vld [vmem:[#allocation4 + $0x9a8] sm:$0xff]
    %v1716 = vld [vmem:[#allocation4 + $0x9e0] sm:$0xff]
    %v1717 = vld [vmem:[#allocation4 + $0x9e8] sm:$0xff]
    %v1718 = vld [vmem:[#allocation4 + $0xa20] sm:$0xff]
    %v1719 = vld [vmem:[#allocation4 + $0xa28] sm:$0xff]
    %v1720 = vld [vmem:[#allocation4 + $0xa60] sm:$0xff]
    %v1721 = vld [vmem:[#allocation4 + $0xa68] sm:$0xff]
    %v1722 = vld [vmem:[#allocation4 + $0xaa0] sm:$0xff]
    %v1723 = vld [vmem:[#allocation4 + $0xaa8] sm:$0xff]
    %v1724 = vld [vmem:[#allocation4 + $0xae0] sm:$0xff]
    %v1725 = vld [vmem:[#allocation4 + $0xae8] sm:$0xff]
    %v1726 = vld [vmem:[#allocation4 + $0xb20] sm:$0xff]
    %v1727 = vld [vmem:[#allocation4 + $0xb28] sm:$0xff]
    %v1728 = vld [vmem:[#allocation4 + $0xb60] sm:$0xff]
    %v1729 = vld [vmem:[#allocation4 + $0xb68] sm:$0xff]
    %v1730 = vld [vmem:[#allocation4 + $0xba0] sm:$0xff]
    %v1731 = vld [vmem:[#allocation4 + $0xba8] sm:$0xff]
    %v1732 = vld [vmem:[#allocation4 + $0xbe0] sm:$0xff]
    %v1733 = vld [vmem:[#allocation4 + $0xbe8] sm:$0xff]
    %v1734 = vld [vmem:[#allocation4 + $0xc20] sm:$0xff]
    %v1735 = vld [vmem:[#allocation4 + $0xc28] sm:$0xff]
    %v1736 = vld [vmem:[#allocation4 + $0xc60] sm:$0xff]
    %v1737 = vld [vmem:[#allocation4 + $0xc68] sm:$0xff]
    %v1738 = vld [vmem:[#allocation4 + $0xca0] sm:$0xff]
    %v1739 = vld [vmem:[#allocation4 + $0xca8] sm:$0xff]
    %v1740 = vld [vmem:[#allocation4 + $0xce0] sm:$0xff]
    %v1741 = vld [vmem:[#allocation4 + $0xce8] sm:$0xff]
    %v1742 = vld [vmem:[#allocation4 + $0xd20] sm:$0xff]
    %v1743 = vld [vmem:[#allocation4 + $0xd28] sm:$0xff]
    %v1744 = vld [vmem:[#allocation4 + $0xd60] sm:$0xff]
    %v1745 = vld [vmem:[#allocation4 + $0xd68] sm:$0xff]
    %v1746 = vld [vmem:[#allocation4 + $0xda0] sm:$0xff]
    %v1747 = vld [vmem:[#allocation4 + $0xda8] sm:$0xff]
    %v1748 = vld [vmem:[#allocation4 + $0xde0] sm:$0xff]
    %v1749 = vld [vmem:[#allocation4 + $0xde8] sm:$0xff]
    %v1750 = vld [vmem:[#allocation4 + $0xe20] sm:$0xff]
    %v1751 = vld [vmem:[#allocation4 + $0xe28] sm:$0xff]
    %v1752 = vld [vmem:[#allocation4 + $0xe60] sm:$0xff]
    %v1753 = vld [vmem:[#allocation4 + $0xe68] sm:$0xff]
    %v1754 = vld [vmem:[#allocation4 + $0xea0] sm:$0xff]
    %v1755 = vld [vmem:[#allocation4 + $0xea8] sm:$0xff]
    %v1756 = vld [vmem:[#allocation4 + $0xee0] sm:$0xff]
    %v1757 = vld [vmem:[#allocation4 + $0xee8] sm:$0xff]
    %v1758 = vld [vmem:[#allocation4 + $0xf20] sm:$0xff]
    %v1759 = vld [vmem:[#allocation4 + $0xf28] sm:$0xff]
    %v1760 = vld [vmem:[#allocation4 + $0xf60] sm:$0xff]
    %v1761 = vld [vmem:[#allocation4 + $0xf68] sm:$0xff]
    %v1762 = vld [vmem:[#allocation4 + $0xfa0] sm:$0xff]
    %v1763 = vld [vmem:[#allocation4 + $0xfa8] sm:$0xff]
    %v1764 = vld [vmem:[#allocation4 + $0xfe0] sm:$0xff]
    %v1765 = vld [vmem:[#allocation4 + $0xfe8] sm:$0xff]
    %1766 = vmatprep.subr.mxu0 %v1669
    %1767 = vmatpush1.msra.mxu0 %v1668
    %1768 = vmatprep.subr.mxu0 %v1667
    %1769 = vmatpush1.msra.mxu0 %v1666
    %1770 = vmatprep.subr.mxu0 %v1665
    %1771 = vmatpush1.msra.mxu0 %v1664
    %1772 = vmatprep.subr.mxu0 %v1663
    %1773 = vmatpush1.msra.mxu0 %v1662
    %1774 = vmatprep.subr.mxu0 %v1661
    %1775 = vmatpush1.msra.mxu0 %v1660
    %1776 = vmatprep.subr.mxu0 %v1659
    %1777 = vmatpush1.msra.mxu0 %v1658
    %1778 = vmatprep.subr.mxu0 %v1657
    %1779 = vmatpush1.msra.mxu0 %v1656
    %1780 = vmatprep.subr.mxu0 %v1655
    %1781 = vmatpush1.msra.mxu0 %v1654
    %1782 = vmatprep.subr.mxu0 %v1653
    %1783 = vmatpush1.msra.mxu0 %v1652
    %1784 = vmatprep.subr.mxu0 %v1651
    %1785 = vmatpush1.msra.mxu0 %v1650
    %1786 = vmatprep.subr.mxu0 %v1649
    %1787 = vmatpush1.msra.mxu0 %v1648
    %1788 = vmatprep.subr.mxu0 %v1647
    %1789 = vmatpush1.msra.mxu0 %v1646
    %1790 = vmatprep.subr.mxu0 %v1645
    %1791 = vmatpush1.msra.mxu0 %v1644
    %1792 = vmatprep.subr.mxu0 %v1643
    %1793 = vmatpush1.msra.mxu0 %v1642
    %1794 = vmatprep.subr.mxu0 %v1641
    %1795 = vmatpush1.msra.mxu0 %v1640
    %1796 = vmatprep.subr.mxu0 %v1639
    %1797 = vmatpush1.msra.mxu0 %v1638
    %1798 = vmatprep.subr.mxu0 %v1701
    %1799 = vmatpush2.msra.mxu0 %v1700
    %1800 = vmatprep.subr.mxu0 %v1699
    %1801 = vmatpush2.msra.mxu0 %v1698
    %1802 = vmatprep.subr.mxu0 %v1697
    %1803 = vmatpush2.msra.mxu0 %v1696
    %1804 = vmatprep.subr.mxu0 %v1695
    %1805 = vmatpush2.msra.mxu0 %v1694
    %1806 = vmatprep.subr.mxu0 %v1693
    %1807 = vmatpush2.msra.mxu0 %v1692
    %1808 = vmatprep.subr.mxu0 %v1691
    %1809 = vmatpush2.msra.mxu0 %v1690
    %1810 = vmatprep.subr.mxu0 %v1689
    %1811 = vmatpush2.msra.mxu0 %v1688
    %1812 = vmatprep.subr.mxu0 %v1687
    %1813 = vmatpush2.msra.mxu0 %v1686
    %1814 = vmatprep.subr.mxu0 %v1685
    %1815 = vmatpush2.msra.mxu0 %v1684
    %1816 = vmatprep.subr.mxu0 %v1683
    %1817 = vmatpush2.msra.mxu0 %v1682
    %1818 = vmatprep.subr.mxu0 %v1681
    %1819 = vmatpush2.msra.mxu0 %v1680
    %1820 = vmatprep.subr.mxu0 %v1679
    %1821 = vmatpush2.msra.mxu0 %v1678
    %1822 = vmatprep.subr.mxu0 %v1677
    %1823 = vmatpush2.msra.mxu0 %v1676
    %1824 = vmatprep.subr.mxu0 %v1675
    %1825 = vmatpush2.msra.mxu0 %v1674
    %1826 = vmatprep.subr.mxu0 %v1673
    %1827 = vmatpush2.msra.mxu0 %v1672
    %1828 = vmatprep.subr.mxu0 %v1671
    %1829 = vmatpush2.msra.mxu0 %v1670
    %1830 = vmatprep.mubr.f32.mxu0 %v1087
    %1831 = vmatmul.mubr.f32.gmra.mxu0 %v1086
    %v1832 = vpop.f32.mrf.mxu0
    %v1833 = vadd.f32 0.0, %v1832
    %v1834 = vpop.f32.mrf.mxu0
    %v1835 = vadd.f32 0.0, %v1834
    %1836 = vdwg.mxu0
    %1837 = vmatprep.subr.mxu0 %v1733
    %1838 = vmatpush1.msra.mxu0 %v1732
    %1839 = vmatprep.subr.mxu0 %v1731
    %1840 = vmatpush1.msra.mxu0 %v1730
    %1841 = vmatprep.subr.mxu0 %v1729
    %1842 = vmatpush1.msra.mxu0 %v1728
    %1843 = vmatprep.subr.mxu0 %v1727
    %1844 = vmatpush1.msra.mxu0 %v1726
    %1845 = vmatprep.subr.mxu0 %v1725
    %1846 = vmatpush1.msra.mxu0 %v1724
    %1847 = vmatprep.subr.mxu0 %v1723
    %1848 = vmatpush1.msra.mxu0 %v1722
    %1849 = vmatprep.subr.mxu0 %v1721
    %1850 = vmatpush1.msra.mxu0 %v1720
    %1851 = vmatprep.subr.mxu0 %v1719
    %1852 = vmatpush1.msra.mxu0 %v1718
    %1853 = vmatprep.subr.mxu0 %v1717
    %1854 = vmatpush1.msra.mxu0 %v1716
    %1855 = vmatprep.subr.mxu0 %v1715
    %1856 = vmatpush1.msra.mxu0 %v1714
    %1857 = vmatprep.subr.mxu0 %v1713
    %1858 = vmatpush1.msra.mxu0 %v1712
    %1859 = vmatprep.subr.mxu0 %v1711
    %1860 = vmatpush1.msra.mxu0 %v1710
    %1861 = vmatprep.subr.mxu0 %v1709
    %1862 = vmatpush1.msra.mxu0 %v1708
    %1863 = vmatprep.subr.mxu0 %v1707
    %1864 = vmatpush1.msra.mxu0 %v1706
    %1865 = vmatprep.subr.mxu0 %v1705
    %1866 = vmatpush1.msra.mxu0 %v1704
    %1867 = vmatprep.subr.mxu0 %v1703
    %1868 = vmatpush1.msra.mxu0 %v1702
    %1869 = vmatprep.subr.mxu0 %v1765
    %1870 = vmatpush2.msra.mxu0 %v1764
    %1871 = vmatprep.subr.mxu0 %v1763
    %1872 = vmatpush2.msra.mxu0 %v1762
    %1873 = vmatprep.subr.mxu0 %v1761
    %1874 = vmatpush2.msra.mxu0 %v1760
    %1875 = vmatprep.subr.mxu0 %v1759
    %1876 = vmatpush2.msra.mxu0 %v1758
    %1877 = vmatprep.subr.mxu0 %v1757
    %1878 = vmatpush2.msra.mxu0 %v1756
    %1879 = vmatprep.subr.mxu0 %v1755
    %1880 = vmatpush2.msra.mxu0 %v1754
    %1881 = vmatprep.subr.mxu0 %v1753
    %1882 = vmatpush2.msra.mxu0 %v1752
    %1883 = vmatprep.subr.mxu0 %v1751
    %1884 = vmatpush2.msra.mxu0 %v1750
    %1885 = vmatprep.subr.mxu0 %v1749
    %1886 = vmatpush2.msra.mxu0 %v1748
    %1887 = vmatprep.subr.mxu0 %v1747
    %1888 = vmatpush2.msra.mxu0 %v1746
    %1889 = vmatprep.subr.mxu0 %v1745
    %1890 = vmatpush2.msra.mxu0 %v1744
    %1891 = vmatprep.subr.mxu0 %v1743
    %1892 = vmatpush2.msra.mxu0 %v1742
    %1893 = vmatprep.subr.mxu0 %v1741
    %1894 = vmatpush2.msra.mxu0 %v1740
    %1895 = vmatprep.subr.mxu0 %v1739
    %1896 = vmatpush2.msra.mxu0 %v1738
    %1897 = vmatprep.subr.mxu0 %v1737
    %1898 = vmatpush2.msra.mxu0 %v1736
    %1899 = vmatprep.subr.mxu0 %v1735
    %1900 = vmatpush2.msra.mxu0 %v1734
    %1901 = vmatprep.mubr.f32.mxu0 %v1089
    %1902 = vmatmul.mubr.f32.gmra.mxu0 %v1088
    %v1903 = vpop.f32.mrf.mxu0
    %v1904 = vadd.f32 %v1833, %v1903
    %v1905 = vpop.f32.mrf.mxu0
    %v1906 = vadd.f32 %v1835, %v1905
    %1907 = vdwg.mxu0
    %s1908 = sshll.u32 %s1091, 4
    %1909 = dma.done %s103, %s1908
    %v1910 = vld [vmem:[#allocation4 + $0x30] sm:$0xff]
    %v1911 = vld [vmem:[#allocation4 + $0x38] sm:$0xff]
    %v1912 = vld [vmem:[#allocation4 + $0x70] sm:$0xff]
    %v1913 = vld [vmem:[#allocation4 + $0x78] sm:$0xff]
    %v1914 = vld [vmem:[#allocation4 + $0xb0] sm:$0xff]
    %v1915 = vld [vmem:[#allocation4 + $0xb8] sm:$0xff]
    %v1916 = vld [vmem:[#allocation4 + $0xf0] sm:$0xff]
    %v1917 = vld [vmem:[#allocation4 + $0xf8] sm:$0xff]
    %v1918 = vld [vmem:[#allocation4 + $0x130] sm:$0xff]
    %v1919 = vld [vmem:[#allocation4 + $0x138] sm:$0xff]
    %v1920 = vld [vmem:[#allocation4 + $0x170] sm:$0xff]
    %v1921 = vld [vmem:[#allocation4 + $0x178] sm:$0xff]
    %v1922 = vld [vmem:[#allocation4 + $0x1b0] sm:$0xff]
    %v1923 = vld [vmem:[#allocation4 + $0x1b8] sm:$0xff]
    %v1924 = vld [vmem:[#allocation4 + $0x1f0] sm:$0xff]
    %v1925 = vld [vmem:[#allocation4 + $0x1f8] sm:$0xff]
    %v1926 = vld [vmem:[#allocation4 + $0x230] sm:$0xff]
    %v1927 = vld [vmem:[#allocation4 + $0x238] sm:$0xff]
    %v1928 = vld [vmem:[#allocation4 + $0x270] sm:$0xff]
    %v1929 = vld [vmem:[#allocation4 + $0x278] sm:$0xff]
    %v1930 = vld [vmem:[#allocation4 + $0x2b0] sm:$0xff]
    %v1931 = vld [vmem:[#allocation4 + $0x2b8] sm:$0xff]
    %v1932 = vld [vmem:[#allocation4 + $0x2f0] sm:$0xff]
    %v1933 = vld [vmem:[#allocation4 + $0x2f8] sm:$0xff]
    %v1934 = vld [vmem:[#allocation4 + $0x330] sm:$0xff]
    %v1935 = vld [vmem:[#allocation4 + $0x338] sm:$0xff]
    %v1936 = vld [vmem:[#allocation4 + $0x370] sm:$0xff]
    %v1937 = vld [vmem:[#allocation4 + $0x378] sm:$0xff]
    %v1938 = vld [vmem:[#allocation4 + $0x3b0] sm:$0xff]
    %v1939 = vld [vmem:[#allocation4 + $0x3b8] sm:$0xff]
    %v1940 = vld [vmem:[#allocation4 + $0x3f0] sm:$0xff]
    %v1941 = vld [vmem:[#allocation4 + $0x3f8] sm:$0xff]
    %v1942 = vld [vmem:[#allocation4 + $0x430] sm:$0xff]
    %v1943 = vld [vmem:[#allocation4 + $0x438] sm:$0xff]
    %v1944 = vld [vmem:[#allocation4 + $0x470] sm:$0xff]
    %v1945 = vld [vmem:[#allocation4 + $0x478] sm:$0xff]
    %v1946 = vld [vmem:[#allocation4 + $0x4b0] sm:$0xff]
    %v1947 = vld [vmem:[#allocation4 + $0x4b8] sm:$0xff]
    %v1948 = vld [vmem:[#allocation4 + $0x4f0] sm:$0xff]
    %v1949 = vld [vmem:[#allocation4 + $0x4f8] sm:$0xff]
    %v1950 = vld [vmem:[#allocation4 + $0x530] sm:$0xff]
    %v1951 = vld [vmem:[#allocation4 + $0x538] sm:$0xff]
    %v1952 = vld [vmem:[#allocation4 + $0x570] sm:$0xff]
    %v1953 = vld [vmem:[#allocation4 + $0x578] sm:$0xff]
    %v1954 = vld [vmem:[#allocation4 + $0x5b0] sm:$0xff]
    %v1955 = vld [vmem:[#allocation4 + $0x5b8] sm:$0xff]
    %v1956 = vld [vmem:[#allocation4 + $0x5f0] sm:$0xff]
    %v1957 = vld [vmem:[#allocation4 + $0x5f8] sm:$0xff]
    %v1958 = vld [vmem:[#allocation4 + $0x630] sm:$0xff]
    %v1959 = vld [vmem:[#allocation4 + $0x638] sm:$0xff]
    %v1960 = vld [vmem:[#allocation4 + $0x670] sm:$0xff]
    %v1961 = vld [vmem:[#allocation4 + $0x678] sm:$0xff]
    %v1962 = vld [vmem:[#allocation4 + $0x6b0] sm:$0xff]
    %v1963 = vld [vmem:[#allocation4 + $0x6b8] sm:$0xff]
    %v1964 = vld [vmem:[#allocation4 + $0x6f0] sm:$0xff]
    %v1965 = vld [vmem:[#allocation4 + $0x6f8] sm:$0xff]
    %v1966 = vld [vmem:[#allocation4 + $0x730] sm:$0xff]
    %v1967 = vld [vmem:[#allocation4 + $0x738] sm:$0xff]
    %v1968 = vld [vmem:[#allocation4 + $0x770] sm:$0xff]
    %v1969 = vld [vmem:[#allocation4 + $0x778] sm:$0xff]
    %v1970 = vld [vmem:[#allocation4 + $0x7b0] sm:$0xff]
    %v1971 = vld [vmem:[#allocation4 + $0x7b8] sm:$0xff]
    %v1972 = vld [vmem:[#allocation4 + $0x7f0] sm:$0xff]
    %v1973 = vld [vmem:[#allocation4 + $0x7f8] sm:$0xff]
    %v1974 = vld [vmem:[#allocation4 + $0x830] sm:$0xff]
    %v1975 = vld [vmem:[#allocation4 + $0x838] sm:$0xff]
    %v1976 = vld [vmem:[#allocation4 + $0x870] sm:$0xff]
    %v1977 = vld [vmem:[#allocation4 + $0x878] sm:$0xff]
    %v1978 = vld [vmem:[#allocation4 + $0x8b0] sm:$0xff]
    %v1979 = vld [vmem:[#allocation4 + $0x8b8] sm:$0xff]
    %v1980 = vld [vmem:[#allocation4 + $0x8f0] sm:$0xff]
    %v1981 = vld [vmem:[#allocation4 + $0x8f8] sm:$0xff]
    %v1982 = vld [vmem:[#allocation4 + $0x930] sm:$0xff]
    %v1983 = vld [vmem:[#allocation4 + $0x938] sm:$0xff]
    %v1984 = vld [vmem:[#allocation4 + $0x970] sm:$0xff]
    %v1985 = vld [vmem:[#allocation4 + $0x978] sm:$0xff]
    %v1986 = vld [vmem:[#allocation4 + $0x9b0] sm:$0xff]
    %v1987 = vld [vmem:[#allocation4 + $0x9b8] sm:$0xff]
    %v1988 = vld [vmem:[#allocation4 + $0x9f0] sm:$0xff]
    %v1989 = vld [vmem:[#allocation4 + $0x9f8] sm:$0xff]
    %v1990 = vld [vmem:[#allocation4 + $0xa30] sm:$0xff]
    %v1991 = vld [vmem:[#allocation4 + $0xa38] sm:$0xff]
    %v1992 = vld [vmem:[#allocation4 + $0xa70] sm:$0xff]
    %v1993 = vld [vmem:[#allocation4 + $0xa78] sm:$0xff]
    %v1994 = vld [vmem:[#allocation4 + $0xab0] sm:$0xff]
    %v1995 = vld [vmem:[#allocation4 + $0xab8] sm:$0xff]
    %v1996 = vld [vmem:[#allocation4 + $0xaf0] sm:$0xff]
    %v1997 = vld [vmem:[#allocation4 + $0xaf8] sm:$0xff]
    %v1998 = vld [vmem:[#allocation4 + $0xb30] sm:$0xff]
    %v1999 = vld [vmem:[#allocation4 + $0xb38] sm:$0xff]
    %v2000 = vld [vmem:[#allocation4 + $0xb70] sm:$0xff]
    %v2001 = vld [vmem:[#allocation4 + $0xb78] sm:$0xff]
    %v2002 = vld [vmem:[#allocation4 + $0xbb0] sm:$0xff]
    %v2003 = vld [vmem:[#allocation4 + $0xbb8] sm:$0xff]
    %v2004 = vld [vmem:[#allocation4 + $0xbf0] sm:$0xff]
    %v2005 = vld [vmem:[#allocation4 + $0xbf8] sm:$0xff]
    %v2006 = vld [vmem:[#allocation4 + $0xc30] sm:$0xff]
    %v2007 = vld [vmem:[#allocation4 + $0xc38] sm:$0xff]
    %v2008 = vld [vmem:[#allocation4 + $0xc70] sm:$0xff]
    %v2009 = vld [vmem:[#allocation4 + $0xc78] sm:$0xff]
    %v2010 = vld [vmem:[#allocation4 + $0xcb0] sm:$0xff]
    %v2011 = vld [vmem:[#allocation4 + $0xcb8] sm:$0xff]
    %v2012 = vld [vmem:[#allocation4 + $0xcf0] sm:$0xff]
    %v2013 = vld [vmem:[#allocation4 + $0xcf8] sm:$0xff]
    %v2014 = vld [vmem:[#allocation4 + $0xd30] sm:$0xff]
    %v2015 = vld [vmem:[#allocation4 + $0xd38] sm:$0xff]
    %v2016 = vld [vmem:[#allocation4 + $0xd70] sm:$0xff]
    %v2017 = vld [vmem:[#allocation4 + $0xd78] sm:$0xff]
    %v2018 = vld [vmem:[#allocation4 + $0xdb0] sm:$0xff]
    %v2019 = vld [vmem:[#allocation4 + $0xdb8] sm:$0xff]
    %v2020 = vld [vmem:[#allocation4 + $0xdf0] sm:$0xff]
    %v2021 = vld [vmem:[#allocation4 + $0xdf8] sm:$0xff]
    %v2022 = vld [vmem:[#allocation4 + $0xe30] sm:$0xff]
    %v2023 = vld [vmem:[#allocation4 + $0xe38] sm:$0xff]
    %v2024 = vld [vmem:[#allocation4 + $0xe70] sm:$0xff]
    %v2025 = vld [vmem:[#allocation4 + $0xe78] sm:$0xff]
    %v2026 = vld [vmem:[#allocation4 + $0xeb0] sm:$0xff]
    %v2027 = vld [vmem:[#allocation4 + $0xeb8] sm:$0xff]
    %v2028 = vld [vmem:[#allocation4 + $0xef0] sm:$0xff]
    %v2029 = vld [vmem:[#allocation4 + $0xef8] sm:$0xff]
    %v2030 = vld [vmem:[#allocation4 + $0xf30] sm:$0xff]
    %v2031 = vld [vmem:[#allocation4 + $0xf38] sm:$0xff]
    %v2032 = vld [vmem:[#allocation4 + $0xf70] sm:$0xff]
    %v2033 = vld [vmem:[#allocation4 + $0xf78] sm:$0xff]
    %v2034 = vld [vmem:[#allocation4 + $0xfb0] sm:$0xff]
    %v2035 = vld [vmem:[#allocation4 + $0xfb8] sm:$0xff]
    %v2036 = vld [vmem:[#allocation4 + $0xff0] sm:$0xff]
    %v2037 = vld [vmem:[#allocation4 + $0xff8] sm:$0xff]
    %2038 = vmatprep.subr.mxu0 %v1941
    %2039 = vmatpush1.msra.mxu0 %v1940
    %2040 = vmatprep.subr.mxu0 %v1939
    %2041 = vmatpush1.msra.mxu0 %v1938
    %2042 = vmatprep.subr.mxu0 %v1937
    %2043 = vmatpush1.msra.mxu0 %v1936
    %2044 = vmatprep.subr.mxu0 %v1935
    %2045 = vmatpush1.msra.mxu0 %v1934
    %2046 = vmatprep.subr.mxu0 %v1933
    %2047 = vmatpush1.msra.mxu0 %v1932
    %2048 = vmatprep.subr.mxu0 %v1931
    %2049 = vmatpush1.msra.mxu0 %v1930
    %2050 = vmatprep.subr.mxu0 %v1929
    %2051 = vmatpush1.msra.mxu0 %v1928
    %2052 = vmatprep.subr.mxu0 %v1927
    %2053 = vmatpush1.msra.mxu0 %v1926
    %2054 = vmatprep.subr.mxu0 %v1925
    %2055 = vmatpush1.msra.mxu0 %v1924
    %2056 = vmatprep.subr.mxu0 %v1923
    %2057 = vmatpush1.msra.mxu0 %v1922
    %2058 = vmatprep.subr.mxu0 %v1921
    %2059 = vmatpush1.msra.mxu0 %v1920
    %2060 = vmatprep.subr.mxu0 %v1919
    %2061 = vmatpush1.msra.mxu0 %v1918
    %2062 = vmatprep.subr.mxu0 %v1917
    %2063 = vmatpush1.msra.mxu0 %v1916
    %2064 = vmatprep.subr.mxu0 %v1915
    %2065 = vmatpush1.msra.mxu0 %v1914
    %2066 = vmatprep.subr.mxu0 %v1913
    %2067 = vmatpush1.msra.mxu0 %v1912
    %2068 = vmatprep.subr.mxu0 %v1911
    %2069 = vmatpush1.msra.mxu0 %v1910
    %2070 = vmatprep.subr.mxu0 %v1973
    %2071 = vmatpush2.msra.mxu0 %v1972
    %2072 = vmatprep.subr.mxu0 %v1971
    %2073 = vmatpush2.msra.mxu0 %v1970
    %2074 = vmatprep.subr.mxu0 %v1969
    %2075 = vmatpush2.msra.mxu0 %v1968
    %2076 = vmatprep.subr.mxu0 %v1967
    %2077 = vmatpush2.msra.mxu0 %v1966
    %2078 = vmatprep.subr.mxu0 %v1965
    %2079 = vmatpush2.msra.mxu0 %v1964
    %2080 = vmatprep.subr.mxu0 %v1963
    %2081 = vmatpush2.msra.mxu0 %v1962
    %2082 = vmatprep.subr.mxu0 %v1961
    %2083 = vmatpush2.msra.mxu0 %v1960
    %2084 = vmatprep.subr.mxu0 %v1959
    %2085 = vmatpush2.msra.mxu0 %v1958
    %2086 = vmatprep.subr.mxu0 %v1957
    %2087 = vmatpush2.msra.mxu0 %v1956
    %2088 = vmatprep.subr.mxu0 %v1955
    %2089 = vmatpush2.msra.mxu0 %v1954
    %2090 = vmatprep.subr.mxu0 %v1953
    %2091 = vmatpush2.msra.mxu0 %v1952
    %2092 = vmatprep.subr.mxu0 %v1951
    %2093 = vmatpush2.msra.mxu0 %v1950
    %2094 = vmatprep.subr.mxu0 %v1949
    %2095 = vmatpush2.msra.mxu0 %v1948
    %2096 = vmatprep.subr.mxu0 %v1947
    %2097 = vmatpush2.msra.mxu0 %v1946
    %2098 = vmatprep.subr.mxu0 %v1945
    %2099 = vmatpush2.msra.mxu0 %v1944
    %2100 = vmatprep.subr.mxu0 %v1943
    %2101 = vmatpush2.msra.mxu0 %v1942
    %2102 = vmatprep.mubr.f32.mxu0 %v1087
    %2103 = vmatmul.mubr.f32.gmra.mxu0 %v1086
    %v2104 = vpop.f32.mrf.mxu0
    %v2105 = vadd.f32 0.0, %v2104
    %v2106 = vpop.f32.mrf.mxu0
    %v2107 = vadd.f32 0.0, %v2106
    %2108 = vdwg.mxu0
    %2109 = vmatprep.subr.mxu0 %v2005
    %2110 = vmatpush1.msra.mxu0 %v2004
    %2111 = vmatprep.subr.mxu0 %v2003
    %2112 = vmatpush1.msra.mxu0 %v2002
    %2113 = vmatprep.subr.mxu0 %v2001
    %2114 = vmatpush1.msra.mxu0 %v2000
    %2115 = vmatprep.subr.mxu0 %v1999
    %2116 = vmatpush1.msra.mxu0 %v1998
    %2117 = vmatprep.subr.mxu0 %v1997
    %2118 = vmatpush1.msra.mxu0 %v1996
    %2119 = vmatprep.subr.mxu0 %v1995
    %2120 = vmatpush1.msra.mxu0 %v1994
    %2121 = vmatprep.subr.mxu0 %v1993
    %2122 = vmatpush1.msra.mxu0 %v1992
    %2123 = vmatprep.subr.mxu0 %v1991
    %2124 = vmatpush1.msra.mxu0 %v1990
    %2125 = vmatprep.subr.mxu0 %v1989
    %2126 = vmatpush1.msra.mxu0 %v1988
    %2127 = vmatprep.subr.mxu0 %v1987
    %2128 = vmatpush1.msra.mxu0 %v1986
    %2129 = vmatprep.subr.mxu0 %v1985
    %2130 = vmatpush1.msra.mxu0 %v1984
    %2131 = vmatprep.subr.mxu0 %v1983
    %2132 = vmatpush1.msra.mxu0 %v1982
    %2133 = vmatprep.subr.mxu0 %v1981
    %2134 = vmatpush1.msra.mxu0 %v1980
    %2135 = vmatprep.subr.mxu0 %v1979
    %2136 = vmatpush1.msra.mxu0 %v1978
    %2137 = vmatprep.subr.mxu0 %v1977
    %2138 = vmatpush1.msra.mxu0 %v1976
    %2139 = vmatprep.subr.mxu0 %v1975
    %2140 = vmatpush1.msra.mxu0 %v1974
    %2141 = vmatprep.subr.mxu0 %v2037
    %2142 = vmatpush2.msra.mxu0 %v2036
    %2143 = vmatprep.subr.mxu0 %v2035
    %2144 = vmatpush2.msra.mxu0 %v2034
    %2145 = vmatprep.subr.mxu0 %v2033
    %2146 = vmatpush2.msra.mxu0 %v2032
    %2147 = vmatprep.subr.mxu0 %v2031
    %2148 = vmatpush2.msra.mxu0 %v2030
    %2149 = vmatprep.subr.mxu0 %v2029
    %2150 = vmatpush2.msra.mxu0 %v2028
    %2151 = vmatprep.subr.mxu0 %v2027
    %2152 = vmatpush2.msra.mxu0 %v2026
    %2153 = vmatprep.subr.mxu0 %v2025
    %2154 = vmatpush2.msra.mxu0 %v2024
    %2155 = vmatprep.subr.mxu0 %v2023
    %2156 = vmatpush2.msra.mxu0 %v2022
    %2157 = vmatprep.subr.mxu0 %v2021
    %2158 = vmatpush2.msra.mxu0 %v2020
    %2159 = vmatprep.subr.mxu0 %v2019
    %2160 = vmatpush2.msra.mxu0 %v2018
    %2161 = vmatprep.subr.mxu0 %v2017
    %2162 = vmatpush2.msra.mxu0 %v2016
    %2163 = vmatprep.subr.mxu0 %v2015
    %2164 = vmatpush2.msra.mxu0 %v2014
    %2165 = vmatprep.subr.mxu0 %v2013
    %2166 = vmatpush2.msra.mxu0 %v2012
    %2167 = vmatprep.subr.mxu0 %v2011
    %2168 = vmatpush2.msra.mxu0 %v2010
    %2169 = vmatprep.subr.mxu0 %v2009
    %2170 = vmatpush2.msra.mxu0 %v2008
    %2171 = vmatprep.subr.mxu0 %v2007
    %2172 = vmatpush2.msra.mxu0 %v2006
    %2173 = vmatprep.mubr.f32.mxu0 %v1089
    %2174 = vmatmul.mubr.f32.gmra.mxu0 %v1088
    %v2175 = vpop.f32.mrf.mxu0
    %v2176 = vadd.f32 %v2105, %v2175
    %v2177 = vpop.f32.mrf.mxu0
    %v2178 = vadd.f32 %v2107, %v2177
    %2179 = vdwg.mxu0
    %v2180 = vld [vmem:[#allocation12 + $0xd] sm:$0xff]
    %v2181 = vld [vmem:[#allocation12 + $0x15] sm:$0xff]
    %v2182 = vrot.slane %v1360, 4
    %v2183 = vadd.f32 %v1360, %v2182
    %v2184 = vrot.slane %v2183, 2
    %v2185 = vadd.f32 %v2183, %v2184
    %v2186 = vrot.slane %v2185, 1
    %v2187 = vadd.f32 %v2185, %v2186
    %v2188 = vrot.slane %v1362, 4
    %v2189 = vadd.f32 %v1362, %v2188
    %v2190 = vrot.slane %v2189, 2
    %v2191 = vadd.f32 %v2189, %v2190
    %v2192 = vrot.slane %v2191, 1
    %v2193 = vadd.f32 %v2191, %v2192
    %v2194 = vrot.slane %v1632, 4
    %v2195 = vadd.f32 %v1632, %v2194
    %v2196 = vrot.slane %v2195, 2
    %v2197 = vadd.f32 %v2195, %v2196
    %v2198 = vrot.slane %v2197, 1
    %v2199 = vadd.f32 %v2197, %v2198
    %v2200 = vrot.slane %v1634, 4
    %v2201 = vadd.f32 %v1634, %v2200
    %v2202 = vrot.slane %v2201, 2
    %v2203 = vadd.f32 %v2201, %v2202
    %v2204 = vrot.slane %v2203, 1
    %v2205 = vadd.f32 %v2203, %v2204
    %v2206 = vrot.slane %v1904, 4
    %v2207 = vadd.f32 %v1904, %v2206
    %v2208 = vrot.slane %v2207, 2
    %v2209 = vadd.f32 %v2207, %v2208
    %v2210 = vrot.slane %v2209, 1
    %v2211 = vadd.f32 %v2209, %v2210
    %v2212 = vrot.slane %v1906, 4
    %v2213 = vadd.f32 %v1906, %v2212
    %v2214 = vrot.slane %v2213, 2
    %v2215 = vadd.f32 %v2213, %v2214
    %v2216 = vrot.slane %v2215, 1
    %v2217 = vadd.f32 %v2215, %v2216
    %v2218 = vrot.slane %v2176, 4
    %v2219 = vadd.f32 %v2176, %v2218
    %v2220 = vrot.slane %v2219, 2
    %v2221 = vadd.f32 %v2219, %v2220
    %v2222 = vrot.slane %v2221, 1
    %v2223 = vadd.f32 %v2221, %v2222
    %v2224 = vrot.slane %v2178, 4
    %v2225 = vadd.f32 %v2178, %v2224
    %v2226 = vrot.slane %v2225, 2
    %v2227 = vadd.f32 %v2225, %v2226
    %v2228 = vrot.slane %v2227, 1
    %v2229 = vadd.f32 %v2227, %v2228
    %v2230 = vmul.f32 %v2187, %v617
    %v2231 = vmul.f32 %v2193, %v617
    %v2232 = vmul.f32 %v2199, %v617
    %v2233 = vmul.f32 %v2205, %v617
    %v2234 = vmul.f32 %v2211, %v617
    %v2235 = vmul.f32 %v2217, %v617
    %v2236 = vmul.f32 %v2223, %v617
    %v2237 = vmul.f32 %v2229, %v617
    %v2238 = vsub.f32 %v1360, %v2230
    %v2239 = vsub.f32 %v1362, %v2231
    %v2240 = vsub.f32 %v1632, %v2232
    %v2241 = vsub.f32 %v1634, %v2233
    %v2242 = vsub.f32 %v1904, %v2234
    %v2243 = vsub.f32 %v1906, %v2235
    %v2244 = vsub.f32 %v2176, %v2236
    %v2245 = vsub.f32 %v2178, %v2237
    %v2246 = vmul.f32 %v2238, %v2238
    %v2247 = vmul.f32 %v2239, %v2239
    %v2248 = vmul.f32 %v2240, %v2240
    %v2249 = vmul.f32 %v2241, %v2241
    %v2250 = vmul.f32 %v2242, %v2242
    %v2251 = vmul.f32 %v2243, %v2243
    %v2252 = vmul.f32 %v2244, %v2244
    %v2253 = vmul.f32 %v2245, %v2245
    %v2254 = vrot.slane %v2246, 4
    %v2255 = vadd.f32 %v2246, %v2254
    %v2256 = vrot.slane %v2255, 2
    %v2257 = vadd.f32 %v2255, %v2256
    %v2258 = vrot.slane %v2257, 1
    %v2259 = vadd.f32 %v2257, %v2258
    %v2260 = vrot.slane %v2247, 4
    %v2261 = vadd.f32 %v2247, %v2260
    %v2262 = vrot.slane %v2261, 2
    %v2263 = vadd.f32 %v2261, %v2262
    %v2264 = vrot.slane %v2263, 1
    %v2265 = vadd.f32 %v2263, %v2264
    %v2266 = vrot.slane %v2248, 4
    %v2267 = vadd.f32 %v2248, %v2266
    %v2268 = vrot.slane %v2267, 2
    %v2269 = vadd.f32 %v2267, %v2268
    %v2270 = vrot.slane %v2269, 1
    %v2271 = vadd.f32 %v2269, %v2270
    %v2272 = vrot.slane %v2249, 4
    %v2273 = vadd.f32 %v2249, %v2272
    %v2274 = vrot.slane %v2273, 2
    %v2275 = vadd.f32 %v2273, %v2274
    %v2276 = vrot.slane %v2275, 1
    %v2277 = vadd.f32 %v2275, %v2276
    %v2278 = vrot.slane %v2250, 4
    %v2279 = vadd.f32 %v2250, %v2278
    %v2280 = vrot.slane %v2279, 2
    %v2281 = vadd.f32 %v2279, %v2280
    %v2282 = vrot.slane %v2281, 1
    %v2283 = vadd.f32 %v2281, %v2282
    %v2284 = vrot.slane %v2251, 4
    %v2285 = vadd.f32 %v2251, %v2284
    %v2286 = vrot.slane %v2285, 2
    %v2287 = vadd.f32 %v2285, %v2286
    %v2288 = vrot.slane %v2287, 1
    %v2289 = vadd.f32 %v2287, %v2288
    %v2290 = vrot.slane %v2252, 4
    %v2291 = vadd.f32 %v2252, %v2290
    %v2292 = vrot.slane %v2291, 2
    %v2293 = vadd.f32 %v2291, %v2292
    %v2294 = vrot.slane %v2293, 1
    %v2295 = vadd.f32 %v2293, %v2294
    %v2296 = vrot.slane %v2253, 4
    %v2297 = vadd.f32 %v2253, %v2296
    %v2298 = vrot.slane %v2297, 2
    %v2299 = vadd.f32 %v2297, %v2298
    %v2300 = vrot.slane %v2299, 1
    %v2301 = vadd.f32 %v2299, %v2300
    %v2302 = vmul.f32 %v2259, %v617
    %v2303 = vmul.f32 %v2265, %v617
    %v2304 = vmul.f32 %v2271, %v617
    %v2305 = vmul.f32 %v2277, %v617
    %v2306 = vmul.f32 %v2283, %v617
    %v2307 = vmul.f32 %v2289, %v617
    %v2308 = vmul.f32 %v2295, %v617
    %v2309 = vmul.f32 %v2301, %v617
    %v2310 = vadd.f32 %v2302, 0.8
    %v2311 = vadd.f32 %v2303, 0.8
    %v2312 = vadd.f32 %v2304, 0.8
    %v2313 = vadd.f32 %v2305, 0.8
    %v2314 = vadd.f32 %v2306, 0.8
    %v2315 = vadd.f32 %v2307, 0.8
    %v2316 = vadd.f32 %v2308, 0.8
    %v2317 = vadd.f32 %v2309, 0.8
    %v2318 = vrsqrt.pop %v2310
    %v2319 = vrsqrt.pop %v2311
    %v2320 = vrsqrt.pop %v2312
    %v2321 = vrsqrt.pop %v2313
    %v2322 = vrsqrt.pop %v2314
    %v2323 = vrsqrt.pop %v2315
    %v2324 = vrsqrt.pop %v2316
    %v2325 = vrsqrt.pop %v2317
    %v2326 = vmul.f32 %v2238, %v2318
    %v2327 = vmul.f32 %v2239, %v2319
    %v2328 = vmul.f32 %v2240, %v2320
    %v2329 = vmul.f32 %v2241, %v2321
    %v2330 = vmul.f32 %v2242, %v2322
    %v2331 = vmul.f32 %v2243, %v2323
    %v2332 = vmul.f32 %v2244, %v2324
    %v2333 = vmul.f32 %v2245, %v2325
    %v2335 = vlaneseq
    %v2336 = vshrl.u32 %v2335, 7
    %v2337 = vsub.s32 0, %v2336
    %v2338 = vrot.slane %v2180, %v2337
    %v2339 = vlaneseq
    %v2340 = vshrl.u32 %v2339, 7
    %v2341 = vsub.s32 1, %v2340
    %v2342 = vrot.slane %v2180, %v2341
    %v2343 = vlaneseq
    %v2344 = vshrl.u32 %v2343, 7
    %v2345 = vsub.s32 2, %v2344
    %v2346 = vrot.slane %v2180, %v2345
    %v2347 = vlaneseq
    %v2348 = vshrl.u32 %v2347, 7
    %v2349 = vsub.s32 3, %v2348
    %v2350 = vrot.slane %v2180, %v2349
    %v2351 = vlaneseq
    %v2352 = vshrl.u32 %v2351, 7
    %v2353 = vsub.s32 4, %v2352
    %v2354 = vrot.slane %v2180, %v2353
    %v2355 = vlaneseq
    %v2356 = vshrl.u32 %v2355, 7
    %v2357 = vsub.s32 5, %v2356
    %v2358 = vrot.slane %v2180, %v2357
    %v2359 = vlaneseq
    %v2360 = vshrl.u32 %v2359, 7
    %v2361 = vsub.s32 6, %v2360
    %v2362 = vrot.slane %v2180, %v2361
    %v2363 = vlaneseq
    %v2364 = vshrl.u32 %v2363, 7
    %v2365 = vsub.s32 7, %v2364
    %v2366 = vrot.slane %v2180, %v2365
    %v2375 = vmul.f32 %v2326, %v2338
    %v2376 = vmul.f32 %v2327, %v2342
    %v2377 = vmul.f32 %v2328, %v2346
    %v2378 = vmul.f32 %v2329, %v2350
    %v2379 = vmul.f32 %v2330, %v2354
    %v2380 = vmul.f32 %v2331, %v2358
    %v2381 = vmul.f32 %v2332, %v2362
    %v2382 = vmul.f32 %v2333, %v2366
    %v2384 = vlaneseq
    %v2385 = vshrl.u32 %v2384, 7
    %v2386 = vsub.s32 0, %v2385
    %v2387 = vrot.slane %v2181, %v2386
    %v2388 = vlaneseq
    %v2389 = vshrl.u32 %v2388, 7
    %v2390 = vsub.s32 1, %v2389
    %v2391 = vrot.slane %v2181, %v2390
    %v2392 = vlaneseq
    %v2393 = vshrl.u32 %v2392, 7
    %v2394 = vsub.s32 2, %v2393
    %v2395 = vrot.slane %v2181, %v2394
    %v2396 = vlaneseq
    %v2397 = vshrl.u32 %v2396, 7
    %v2398 = vsub.s32 3, %v2397
    %v2399 = vrot.slane %v2181, %v2398
    %v2400 = vlaneseq
    %v2401 = vshrl.u32 %v2400, 7
    %v2402 = vsub.s32 4, %v2401
    %v2403 = vrot.slane %v2181, %v2402
    %v2404 = vlaneseq
    %v2405 = vshrl.u32 %v2404, 7
    %v2406 = vsub.s32 5, %v2405
    %v2407 = vrot.slane %v2181, %v2406
    %v2408 = vlaneseq
    %v2409 = vshrl.u32 %v2408, 7
    %v2410 = vsub.s32 6, %v2409
    %v2411 = vrot.slane %v2181, %v2410
    %v2412 = vlaneseq
    %v2413 = vshrl.u32 %v2412, 7
    %v2414 = vsub.s32 7, %v2413
    %v2415 = vrot.slane %v2181, %v2414
    %v2424 = vadd.f32 %v2375, %v2387
    %v2425 = vadd.f32 %v2376, %v2391
    %v2426 = vadd.f32 %v2377, %v2395
    %v2427 = vadd.f32 %v2378, %v2399
    %v2428 = vadd.f32 %v2379, %v2403
    %v2429 = vadd.f32 %v2380, %v2407
    %v2430 = vadd.f32 %v2381, %v2411
    %v2431 = vadd.f32 %v2382, %v2415
    %vm2432 = vcmp.gt.f32.partialorder %v2424, 0.0
    %vm2433 = vcmp.gt.f32.partialorder %v2425, 0.0
    %vm2434 = vcmp.gt.f32.partialorder %v2426, 0.0
    %vm2435 = vcmp.gt.f32.partialorder %v2427, 0.0
    %vm2436 = vcmp.gt.f32.partialorder %v2428, 0.0
    %vm2437 = vcmp.gt.f32.partialorder %v2429, 0.0
    %vm2438 = vcmp.gt.f32.partialorder %v2430, 0.0
    %vm2439 = vcmp.gt.f32.partialorder %v2431, 0.0
    %v2440 = vmul.f32 %v2424, 0.2
    %v2441 = vmul.f32 %v2425, 0.2
    %v2442 = vmul.f32 %v2426, 0.2
    %v2443 = vmul.f32 %v2427, 0.2
    %v2444 = vmul.f32 %v2428, 0.2
    %v2445 = vmul.f32 %v2429, 0.2
    %v2446 = vmul.f32 %v2430, 0.2
    %v2447 = vmul.f32 %v2431, 0.2
    %v2448 = vsel %vm2432, %v2424, %v2440
    %v2449 = vsel %vm2433, %v2425, %v2441
    %v2450 = vsel %vm2434, %v2426, %v2442
    %v2451 = vsel %vm2435, %v2427, %v2443
    %v2452 = vsel %vm2436, %v2428, %v2444
    %v2453 = vsel %vm2437, %v2429, %v2445
    %v2454 = vsel %vm2438, %v2430, %v2446
    %v2455 = vsel %vm2439, %v2431, %v2447
    %s2456 = smul.u32 1024, 1
    %s2457 = sshll.u32 %s2456, 4
    %2458 = dma.done %s109, %s2457
    %v2459 = vld [vmem:[#allocation5] sm:$0xff]
    %v2460 = vld [vmem:[#allocation5 + $0x8] sm:$0xff]
    %v2461 = vld [vmem:[#allocation5 + $0x10] sm:$0xff]
    %v2462 = vld [vmem:[#allocation5 + $0x18] sm:$0xff]
    %v2463 = vld [vmem:[#allocation5 + $0x20] sm:$0xff]
    %v2464 = vld [vmem:[#allocation5 + $0x28] sm:$0xff]
    %v2465 = vld [vmem:[#allocation5 + $0x30] sm:$0xff]
    %v2466 = vld [vmem:[#allocation5 + $0x38] sm:$0xff]
    %v2467 = vld [vmem:[#allocation5 + $0x40] sm:$0xff]
    %v2468 = vld [vmem:[#allocation5 + $0x48] sm:$0xff]
    %v2469 = vld [vmem:[#allocation5 + $0x50] sm:$0xff]
    %v2470 = vld [vmem:[#allocation5 + $0x58] sm:$0xff]
    %v2471 = vld [vmem:[#allocation5 + $0x60] sm:$0xff]
    %v2472 = vld [vmem:[#allocation5 + $0x68] sm:$0xff]
    %v2473 = vld [vmem:[#allocation5 + $0x70] sm:$0xff]
    %v2474 = vld [vmem:[#allocation5 + $0x78] sm:$0xff]
    %v2475 = vld [vmem:[#allocation5 + $0x80] sm:$0xff]
    %v2476 = vld [vmem:[#allocation5 + $0x88] sm:$0xff]
    %v2477 = vld [vmem:[#allocation5 + $0x90] sm:$0xff]
    %v2478 = vld [vmem:[#allocation5 + $0x98] sm:$0xff]
    %v2479 = vld [vmem:[#allocation5 + $0xa0] sm:$0xff]
    %v2480 = vld [vmem:[#allocation5 + $0xa8] sm:$0xff]
    %v2481 = vld [vmem:[#allocation5 + $0xb0] sm:$0xff]
    %v2482 = vld [vmem:[#allocation5 + $0xb8] sm:$0xff]
    %v2483 = vld [vmem:[#allocation5 + $0xc0] sm:$0xff]
    %v2484 = vld [vmem:[#allocation5 + $0xc8] sm:$0xff]
    %v2485 = vld [vmem:[#allocation5 + $0xd0] sm:$0xff]
    %v2486 = vld [vmem:[#allocation5 + $0xd8] sm:$0xff]
    %v2487 = vld [vmem:[#allocation5 + $0xe0] sm:$0xff]
    %v2488 = vld [vmem:[#allocation5 + $0xe8] sm:$0xff]
    %v2489 = vld [vmem:[#allocation5 + $0xf0] sm:$0xff]
    %v2490 = vld [vmem:[#allocation5 + $0xf8] sm:$0xff]
    %v2491 = vld [vmem:[#allocation5 + $0x100] sm:$0xff]
    %v2492 = vld [vmem:[#allocation5 + $0x108] sm:$0xff]
    %v2493 = vld [vmem:[#allocation5 + $0x110] sm:$0xff]
    %v2494 = vld [vmem:[#allocation5 + $0x118] sm:$0xff]
    %v2495 = vld [vmem:[#allocation5 + $0x120] sm:$0xff]
    %v2496 = vld [vmem:[#allocation5 + $0x128] sm:$0xff]
    %v2497 = vld [vmem:[#allocation5 + $0x130] sm:$0xff]
    %v2498 = vld [vmem:[#allocation5 + $0x138] sm:$0xff]
    %v2499 = vld [vmem:[#allocation5 + $0x140] sm:$0xff]
    %v2500 = vld [vmem:[#allocation5 + $0x148] sm:$0xff]
    %v2501 = vld [vmem:[#allocation5 + $0x150] sm:$0xff]
    %v2502 = vld [vmem:[#allocation5 + $0x158] sm:$0xff]
    %v2503 = vld [vmem:[#allocation5 + $0x160] sm:$0xff]
    %v2504 = vld [vmem:[#allocation5 + $0x168] sm:$0xff]
    %v2505 = vld [vmem:[#allocation5 + $0x170] sm:$0xff]
    %v2506 = vld [vmem:[#allocation5 + $0x178] sm:$0xff]
    %v2507 = vld [vmem:[#allocation5 + $0x180] sm:$0xff]
    %v2508 = vld [vmem:[#allocation5 + $0x188] sm:$0xff]
    %v2509 = vld [vmem:[#allocation5 + $0x190] sm:$0xff]
    %v2510 = vld [vmem:[#allocation5 + $0x198] sm:$0xff]
    %v2511 = vld [vmem:[#allocation5 + $0x1a0] sm:$0xff]
    %v2512 = vld [vmem:[#allocation5 + $0x1a8] sm:$0xff]
    %v2513 = vld [vmem:[#allocation5 + $0x1b0] sm:$0xff]
    %v2514 = vld [vmem:[#allocation5 + $0x1b8] sm:$0xff]
    %v2515 = vld [vmem:[#allocation5 + $0x1c0] sm:$0xff]
    %v2516 = vld [vmem:[#allocation5 + $0x1c8] sm:$0xff]
    %v2517 = vld [vmem:[#allocation5 + $0x1d0] sm:$0xff]
    %v2518 = vld [vmem:[#allocation5 + $0x1d8] sm:$0xff]
    %v2519 = vld [vmem:[#allocation5 + $0x1e0] sm:$0xff]
    %v2520 = vld [vmem:[#allocation5 + $0x1e8] sm:$0xff]
    %v2521 = vld [vmem:[#allocation5 + $0x1f0] sm:$0xff]
    %v2522 = vld [vmem:[#allocation5 + $0x1f8] sm:$0xff]
    %v2523 = vld [vmem:[#allocation5 + $0x200] sm:$0xff]
    %v2524 = vld [vmem:[#allocation5 + $0x208] sm:$0xff]
    %v2525 = vld [vmem:[#allocation5 + $0x210] sm:$0xff]
    %v2526 = vld [vmem:[#allocation5 + $0x218] sm:$0xff]
    %v2527 = vld [vmem:[#allocation5 + $0x220] sm:$0xff]
    %v2528 = vld [vmem:[#allocation5 + $0x228] sm:$0xff]
    %v2529 = vld [vmem:[#allocation5 + $0x230] sm:$0xff]
    %v2530 = vld [vmem:[#allocation5 + $0x238] sm:$0xff]
    %v2531 = vld [vmem:[#allocation5 + $0x240] sm:$0xff]
    %v2532 = vld [vmem:[#allocation5 + $0x248] sm:$0xff]
    %v2533 = vld [vmem:[#allocation5 + $0x250] sm:$0xff]
    %v2534 = vld [vmem:[#allocation5 + $0x258] sm:$0xff]
    %v2535 = vld [vmem:[#allocation5 + $0x260] sm:$0xff]
    %v2536 = vld [vmem:[#allocation5 + $0x268] sm:$0xff]
    %v2537 = vld [vmem:[#allocation5 + $0x270] sm:$0xff]
    %v2538 = vld [vmem:[#allocation5 + $0x278] sm:$0xff]
    %v2539 = vld [vmem:[#allocation5 + $0x280] sm:$0xff]
    %v2540 = vld [vmem:[#allocation5 + $0x288] sm:$0xff]
    %v2541 = vld [vmem:[#allocation5 + $0x290] sm:$0xff]
    %v2542 = vld [vmem:[#allocation5 + $0x298] sm:$0xff]
    %v2543 = vld [vmem:[#allocation5 + $0x2a0] sm:$0xff]
    %v2544 = vld [vmem:[#allocation5 + $0x2a8] sm:$0xff]
    %v2545 = vld [vmem:[#allocation5 + $0x2b0] sm:$0xff]
    %v2546 = vld [vmem:[#allocation5 + $0x2b8] sm:$0xff]
    %v2547 = vld [vmem:[#allocation5 + $0x2c0] sm:$0xff]
    %v2548 = vld [vmem:[#allocation5 + $0x2c8] sm:$0xff]
    %v2549 = vld [vmem:[#allocation5 + $0x2d0] sm:$0xff]
    %v2550 = vld [vmem:[#allocation5 + $0x2d8] sm:$0xff]
    %v2551 = vld [vmem:[#allocation5 + $0x2e0] sm:$0xff]
    %v2552 = vld [vmem:[#allocation5 + $0x2e8] sm:$0xff]
    %v2553 = vld [vmem:[#allocation5 + $0x2f0] sm:$0xff]
    %v2554 = vld [vmem:[#allocation5 + $0x2f8] sm:$0xff]
    %v2555 = vld [vmem:[#allocation5 + $0x300] sm:$0xff]
    %v2556 = vld [vmem:[#allocation5 + $0x308] sm:$0xff]
    %v2557 = vld [vmem:[#allocation5 + $0x310] sm:$0xff]
    %v2558 = vld [vmem:[#allocation5 + $0x318] sm:$0xff]
    %v2559 = vld [vmem:[#allocation5 + $0x320] sm:$0xff]
    %v2560 = vld [vmem:[#allocation5 + $0x328] sm:$0xff]
    %v2561 = vld [vmem:[#allocation5 + $0x330] sm:$0xff]
    %v2562 = vld [vmem:[#allocation5 + $0x338] sm:$0xff]
    %v2563 = vld [vmem:[#allocation5 + $0x340] sm:$0xff]
    %v2564 = vld [vmem:[#allocation5 + $0x348] sm:$0xff]
    %v2565 = vld [vmem:[#allocation5 + $0x350] sm:$0xff]
    %v2566 = vld [vmem:[#allocation5 + $0x358] sm:$0xff]
    %v2567 = vld [vmem:[#allocation5 + $0x360] sm:$0xff]
    %v2568 = vld [vmem:[#allocation5 + $0x368] sm:$0xff]
    %v2569 = vld [vmem:[#allocation5 + $0x370] sm:$0xff]
    %v2570 = vld [vmem:[#allocation5 + $0x378] sm:$0xff]
    %v2571 = vld [vmem:[#allocation5 + $0x380] sm:$0xff]
    %v2572 = vld [vmem:[#allocation5 + $0x388] sm:$0xff]
    %v2573 = vld [vmem:[#allocation5 + $0x390] sm:$0xff]
    %v2574 = vld [vmem:[#allocation5 + $0x398] sm:$0xff]
    %v2575 = vld [vmem:[#allocation5 + $0x3a0] sm:$0xff]
    %v2576 = vld [vmem:[#allocation5 + $0x3a8] sm:$0xff]
    %v2577 = vld [vmem:[#allocation5 + $0x3b0] sm:$0xff]
    %v2578 = vld [vmem:[#allocation5 + $0x3b8] sm:$0xff]
    %v2579 = vld [vmem:[#allocation5 + $0x3c0] sm:$0xff]
    %v2580 = vld [vmem:[#allocation5 + $0x3c8] sm:$0xff]
    %v2581 = vld [vmem:[#allocation5 + $0x3d0] sm:$0xff]
    %v2582 = vld [vmem:[#allocation5 + $0x3d8] sm:$0xff]
    %v2583 = vld [vmem:[#allocation5 + $0x3e0] sm:$0xff]
    %v2584 = vld [vmem:[#allocation5 + $0x3e8] sm:$0xff]
    %v2585 = vld [vmem:[#allocation5 + $0x3f0] sm:$0xff]
    %v2586 = vld [vmem:[#allocation5 + $0x3f8] sm:$0xff]
    %v2587 = vld [vmem:[#allocation12 + $0x1d] sm:$0x1]
    %v2589 = vlaneseq
    %v2590 = vshrl.u32 %v2589, 7
    %v2591 = vsub.s32 0, %v2590
    %v2592 = vrot.slane %v2587, %v2591
    %2594 = vmatprep.subr.mxu0 0.0
    %2595 = vmatpush1.msra.mxu0 %v2474
    %2596 = vmatprep.subr.mxu0 0.0
    %2597 = vmatpush1.msra.mxu0 %v2473
    %2598 = vmatprep.subr.mxu0 0.0
    %2599 = vmatpush1.msra.mxu0 %v2472
    %2600 = vmatprep.subr.mxu0 0.0
    %2601 = vmatpush1.msra.mxu0 %v2471
    %2602 = vmatprep.subr.mxu0 0.0
    %2603 = vmatpush1.msra.mxu0 %v2470
    %2604 = vmatprep.subr.mxu0 0.0
    %2605 = vmatpush1.msra.mxu0 %v2469
    %2606 = vmatprep.subr.mxu0 0.0
    %2607 = vmatpush1.msra.mxu0 %v2468
    %2608 = vmatprep.subr.mxu0 0.0
    %2609 = vmatpush1.msra.mxu0 %v2467
    %2610 = vmatprep.subr.mxu0 0.0
    %2611 = vmatpush1.msra.mxu0 %v2466
    %2612 = vmatprep.subr.mxu0 0.0
    %2613 = vmatpush1.msra.mxu0 %v2465
    %2614 = vmatprep.subr.mxu0 0.0
    %2615 = vmatpush1.msra.mxu0 %v2464
    %2616 = vmatprep.subr.mxu0 0.0
    %2617 = vmatpush1.msra.mxu0 %v2463
    %2618 = vmatprep.subr.mxu0 0.0
    %2619 = vmatpush1.msra.mxu0 %v2462
    %2620 = vmatprep.subr.mxu0 0.0
    %2621 = vmatpush1.msra.mxu0 %v2461
    %2622 = vmatprep.subr.mxu0 0.0
    %2623 = vmatpush1.msra.mxu0 %v2460
    %2624 = vmatprep.subr.mxu0 0.0
    %2625 = vmatpush1.msra.mxu0 %v2459
    %2626 = vmatprep.subr.mxu0 0.0
    %2627 = vmatpush2.msra.mxu0 %v2490
    %2628 = vmatprep.subr.mxu0 0.0
    %2629 = vmatpush2.msra.mxu0 %v2489
    %2630 = vmatprep.subr.mxu0 0.0
    %2631 = vmatpush2.msra.mxu0 %v2488
    %2632 = vmatprep.subr.mxu0 0.0
    %2633 = vmatpush2.msra.mxu0 %v2487
    %2634 = vmatprep.subr.mxu0 0.0
    %2635 = vmatpush2.msra.mxu0 %v2486
    %2636 = vmatprep.subr.mxu0 0.0
    %2637 = vmatpush2.msra.mxu0 %v2485
    %2638 = vmatprep.subr.mxu0 0.0
    %2639 = vmatpush2.msra.mxu0 %v2484
    %2640 = vmatprep.subr.mxu0 0.0
    %2641 = vmatpush2.msra.mxu0 %v2483
    %2642 = vmatprep.subr.mxu0 0.0
    %2643 = vmatpush2.msra.mxu0 %v2482
    %2644 = vmatprep.subr.mxu0 0.0
    %2645 = vmatpush2.msra.mxu0 %v2481
    %2646 = vmatprep.subr.mxu0 0.0
    %2647 = vmatpush2.msra.mxu0 %v2480
    %2648 = vmatprep.subr.mxu0 0.0
    %2649 = vmatpush2.msra.mxu0 %v2479
    %2650 = vmatprep.subr.mxu0 0.0
    %2651 = vmatpush2.msra.mxu0 %v2478
    %2652 = vmatprep.subr.mxu0 0.0
    %2653 = vmatpush2.msra.mxu0 %v2477
    %2654 = vmatprep.subr.mxu0 0.0
    %2655 = vmatpush2.msra.mxu0 %v2476
    %2656 = vmatprep.subr.mxu0 0.0
    %2657 = vmatpush2.msra.mxu0 %v2475
    %2658 = vmatprep.mubr.f32.mxu0 %v2449
    %2659 = vmatmul.mubr.f32.gmra.mxu0 %v2448
    %v2660 = vpop.f32.mrf.mxu0
    %v2661 = vadd.f32 %v2592, %v2660
    %v2662 = vpop.f32.mrf.mxu0
    %2663 = vdwg.mxu0
    %2664 = vmatprep.subr.mxu0 0.0
    %2665 = vmatpush1.msra.mxu0 %v2506
    %2666 = vmatprep.subr.mxu0 0.0
    %2667 = vmatpush1.msra.mxu0 %v2505
    %2668 = vmatprep.subr.mxu0 0.0
    %2669 = vmatpush1.msra.mxu0 %v2504
    %2670 = vmatprep.subr.mxu0 0.0
    %2671 = vmatpush1.msra.mxu0 %v2503
    %2672 = vmatprep.subr.mxu0 0.0
    %2673 = vmatpush1.msra.mxu0 %v2502
    %2674 = vmatprep.subr.mxu0 0.0
    %2675 = vmatpush1.msra.mxu0 %v2501
    %2676 = vmatprep.subr.mxu0 0.0
    %2677 = vmatpush1.msra.mxu0 %v2500
    %2678 = vmatprep.subr.mxu0 0.0
    %2679 = vmatpush1.msra.mxu0 %v2499
    %2680 = vmatprep.subr.mxu0 0.0
    %2681 = vmatpush1.msra.mxu0 %v2498
    %2682 = vmatprep.subr.mxu0 0.0
    %2683 = vmatpush1.msra.mxu0 %v2497
    %2684 = vmatprep.subr.mxu0 0.0
    %2685 = vmatpush1.msra.mxu0 %v2496
    %2686 = vmatprep.subr.mxu0 0.0
    %2687 = vmatpush1.msra.mxu0 %v2495
    %2688 = vmatprep.subr.mxu0 0.0
    %2689 = vmatpush1.msra.mxu0 %v2494
    %2690 = vmatprep.subr.mxu0 0.0
    %2691 = vmatpush1.msra.mxu0 %v2493
    %2692 = vmatprep.subr.mxu0 0.0
    %2693 = vmatpush1.msra.mxu0 %v2492
    %2694 = vmatprep.subr.mxu0 0.0
    %2695 = vmatpush1.msra.mxu0 %v2491
    %2696 = vmatprep.subr.mxu0 0.0
    %2697 = vmatpush2.msra.mxu0 %v2522
    %2698 = vmatprep.subr.mxu0 0.0
    %2699 = vmatpush2.msra.mxu0 %v2521
    %2700 = vmatprep.subr.mxu0 0.0
    %2701 = vmatpush2.msra.mxu0 %v2520
    %2702 = vmatprep.subr.mxu0 0.0
    %2703 = vmatpush2.msra.mxu0 %v2519
    %2704 = vmatprep.subr.mxu0 0.0
    %2705 = vmatpush2.msra.mxu0 %v2518
    %2706 = vmatprep.subr.mxu0 0.0
    %2707 = vmatpush2.msra.mxu0 %v2517
    %2708 = vmatprep.subr.mxu0 0.0
    %2709 = vmatpush2.msra.mxu0 %v2516
    %2710 = vmatprep.subr.mxu0 0.0
    %2711 = vmatpush2.msra.mxu0 %v2515
    %2712 = vmatprep.subr.mxu0 0.0
    %2713 = vmatpush2.msra.mxu0 %v2514
    %2714 = vmatprep.subr.mxu0 0.0
    %2715 = vmatpush2.msra.mxu0 %v2513
    %2716 = vmatprep.subr.mxu0 0.0
    %2717 = vmatpush2.msra.mxu0 %v2512
    %2718 = vmatprep.subr.mxu0 0.0
    %2719 = vmatpush2.msra.mxu0 %v2511
    %2720 = vmatprep.subr.mxu0 0.0
    %2721 = vmatpush2.msra.mxu0 %v2510
    %2722 = vmatprep.subr.mxu0 0.0
    %2723 = vmatpush2.msra.mxu0 %v2509
    %2724 = vmatprep.subr.mxu0 0.0
    %2725 = vmatpush2.msra.mxu0 %v2508
    %2726 = vmatprep.subr.mxu0 0.0
    %2727 = vmatpush2.msra.mxu0 %v2507
    %2728 = vmatprep.mubr.f32.mxu0 %v2451
    %2729 = vmatmul.mubr.f32.gmra.mxu0 %v2450
    %v2730 = vpop.f32.mrf.mxu0
    %v2731 = vadd.f32 %v2661, %v2730
    %v2732 = vpop.f32.mrf.mxu0
    %2733 = vdwg.mxu0
    %2734 = vmatprep.subr.mxu0 0.0
    %2735 = vmatpush1.msra.mxu0 %v2538
    %2736 = vmatprep.subr.mxu0 0.0
    %2737 = vmatpush1.msra.mxu0 %v2537
    %2738 = vmatprep.subr.mxu0 0.0
    %2739 = vmatpush1.msra.mxu0 %v2536
    %2740 = vmatprep.subr.mxu0 0.0
    %2741 = vmatpush1.msra.mxu0 %v2535
    %2742 = vmatprep.subr.mxu0 0.0
    %2743 = vmatpush1.msra.mxu0 %v2534
    %2744 = vmatprep.subr.mxu0 0.0
    %2745 = vmatpush1.msra.mxu0 %v2533
    %2746 = vmatprep.subr.mxu0 0.0
    %2747 = vmatpush1.msra.mxu0 %v2532
    %2748 = vmatprep.subr.mxu0 0.0
    %2749 = vmatpush1.msra.mxu0 %v2531
    %2750 = vmatprep.subr.mxu0 0.0
    %2751 = vmatpush1.msra.mxu0 %v2530
    %2752 = vmatprep.subr.mxu0 0.0
    %2753 = vmatpush1.msra.mxu0 %v2529
    %2754 = vmatprep.subr.mxu0 0.0
    %2755 = vmatpush1.msra.mxu0 %v2528
    %2756 = vmatprep.subr.mxu0 0.0
    %2757 = vmatpush1.msra.mxu0 %v2527
    %2758 = vmatprep.subr.mxu0 0.0
    %2759 = vmatpush1.msra.mxu0 %v2526
    %2760 = vmatprep.subr.mxu0 0.0
    %2761 = vmatpush1.msra.mxu0 %v2525
    %2762 = vmatprep.subr.mxu0 0.0
    %2763 = vmatpush1.msra.mxu0 %v2524
    %2764 = vmatprep.subr.mxu0 0.0
    %2765 = vmatpush1.msra.mxu0 %v2523
    %2766 = vmatprep.subr.mxu0 0.0
    %2767 = vmatpush2.msra.mxu0 %v2554
    %2768 = vmatprep.subr.mxu0 0.0
    %2769 = vmatpush2.msra.mxu0 %v2553
    %2770 = vmatprep.subr.mxu0 0.0
    %2771 = vmatpush2.msra.mxu0 %v2552
    %2772 = vmatprep.subr.mxu0 0.0
    %2773 = vmatpush2.msra.mxu0 %v2551
    %2774 = vmatprep.subr.mxu0 0.0
    %2775 = vmatpush2.msra.mxu0 %v2550
    %2776 = vmatprep.subr.mxu0 0.0
    %2777 = vmatpush2.msra.mxu0 %v2549
    %2778 = vmatprep.subr.mxu0 0.0
    %2779 = vmatpush2.msra.mxu0 %v2548
    %2780 = vmatprep.subr.mxu0 0.0
    %2781 = vmatpush2.msra.mxu0 %v2547
    %2782 = vmatprep.subr.mxu0 0.0
    %2783 = vmatpush2.msra.mxu0 %v2546
    %2784 = vmatprep.subr.mxu0 0.0
    %2785 = vmatpush2.msra.mxu0 %v2545
    %2786 = vmatprep.subr.mxu0 0.0
    %2787 = vmatpush2.msra.mxu0 %v2544
    %2788 = vmatprep.subr.mxu0 0.0
    %2789 = vmatpush2.msra.mxu0 %v2543
    %2790 = vmatprep.subr.mxu0 0.0
    %2791 = vmatpush2.msra.mxu0 %v2542
    %2792 = vmatprep.subr.mxu0 0.0
    %2793 = vmatpush2.msra.mxu0 %v2541
    %2794 = vmatprep.subr.mxu0 0.0
    %2795 = vmatpush2.msra.mxu0 %v2540
    %2796 = vmatprep.subr.mxu0 0.0
    %2797 = vmatpush2.msra.mxu0 %v2539
    %2798 = vmatprep.mubr.f32.mxu0 %v2453
    %2799 = vmatmul.mubr.f32.gmra.mxu0 %v2452
    %v2800 = vpop.f32.mrf.mxu0
    %v2801 = vadd.f32 %v2731, %v2800
    %v2802 = vpop.f32.mrf.mxu0
    %2803 = vdwg.mxu0
    %2804 = vmatprep.subr.mxu0 0.0
    %2805 = vmatpush1.msra.mxu0 %v2570
    %2806 = vmatprep.subr.mxu0 0.0
    %2807 = vmatpush1.msra.mxu0 %v2569
    %2808 = vmatprep.subr.mxu0 0.0
    %2809 = vmatpush1.msra.mxu0 %v2568
    %2810 = vmatprep.subr.mxu0 0.0
    %2811 = vmatpush1.msra.mxu0 %v2567
    %2812 = vmatprep.subr.mxu0 0.0
    %2813 = vmatpush1.msra.mxu0 %v2566
    %2814 = vmatprep.subr.mxu0 0.0
    %2815 = vmatpush1.msra.mxu0 %v2565
    %2816 = vmatprep.subr.mxu0 0.0
    %2817 = vmatpush1.msra.mxu0 %v2564
    %2818 = vmatprep.subr.mxu0 0.0
    %2819 = vmatpush1.msra.mxu0 %v2563
    %2820 = vmatprep.subr.mxu0 0.0
    %2821 = vmatpush1.msra.mxu0 %v2562
    %2822 = vmatprep.subr.mxu0 0.0
    %2823 = vmatpush1.msra.mxu0 %v2561
    %2824 = vmatprep.subr.mxu0 0.0
    %2825 = vmatpush1.msra.mxu0 %v2560
    %2826 = vmatprep.subr.mxu0 0.0
    %2827 = vmatpush1.msra.mxu0 %v2559
    %2828 = vmatprep.subr.mxu0 0.0
    %2829 = vmatpush1.msra.mxu0 %v2558
    %2830 = vmatprep.subr.mxu0 0.0
    %2831 = vmatpush1.msra.mxu0 %v2557
    %2832 = vmatprep.subr.mxu0 0.0
    %2833 = vmatpush1.msra.mxu0 %v2556
    %2834 = vmatprep.subr.mxu0 0.0
    %2835 = vmatpush1.msra.mxu0 %v2555
    %2836 = vmatprep.subr.mxu0 0.0
    %2837 = vmatpush2.msra.mxu0 %v2586
    %2838 = vmatprep.subr.mxu0 0.0
    %2839 = vmatpush2.msra.mxu0 %v2585
    %2840 = vmatprep.subr.mxu0 0.0
    %2841 = vmatpush2.msra.mxu0 %v2584
    %2842 = vmatprep.subr.mxu0 0.0
    %2843 = vmatpush2.msra.mxu0 %v2583
    %2844 = vmatprep.subr.mxu0 0.0
    %2845 = vmatpush2.msra.mxu0 %v2582
    %2846 = vmatprep.subr.mxu0 0.0
    %2847 = vmatpush2.msra.mxu0 %v2581
    %2848 = vmatprep.subr.mxu0 0.0
    %2849 = vmatpush2.msra.mxu0 %v2580
    %2850 = vmatprep.subr.mxu0 0.0
    %2851 = vmatpush2.msra.mxu0 %v2579
    %2852 = vmatprep.subr.mxu0 0.0
    %2853 = vmatpush2.msra.mxu0 %v2578
    %2854 = vmatprep.subr.mxu0 0.0
    %2855 = vmatpush2.msra.mxu0 %v2577
    %2856 = vmatprep.subr.mxu0 0.0
    %2857 = vmatpush2.msra.mxu0 %v2576
    %2858 = vmatprep.subr.mxu0 0.0
    %2859 = vmatpush2.msra.mxu0 %v2575
    %2860 = vmatprep.subr.mxu0 0.0
    %2861 = vmatpush2.msra.mxu0 %v2574
    %2862 = vmatprep.subr.mxu0 0.0
    %2863 = vmatpush2.msra.mxu0 %v2573
    %2864 = vmatprep.subr.mxu0 0.0
    %2865 = vmatpush2.msra.mxu0 %v2572
    %2866 = vmatprep.subr.mxu0 0.0
    %2867 = vmatpush2.msra.mxu0 %v2571
    %2868 = vmatprep.mubr.f32.mxu0 %v2455
    %2869 = vmatmul.mubr.f32.gmra.mxu0 %v2454
    %v2870 = vpop.f32.mrf.mxu0
    %v2871 = vadd.f32 %v2801, %v2870
    %v2872 = vpop.f32.mrf.mxu0
    %2873 = vdwg.mxu0
    %v2874 = vtanh.pop %v2871
    %vm2875 = vcmask 523264
    %2876 = vst.msk [vmem:[#allocation13] sm:$0xff] %vm2875, %v2874
    // Predicated region
    $region68: #{tpu_custom_call.1} parent=1 // pred_check
      _
    $region69: #{tpu_custom_call.1} parent=1 // pred_check_branch
      %2878 = sbr.rel (0) target = $region71
    $region70: #{tpu_custom_call.1} parent=1 // pred_region
      %s2880 = ssub.s32 128, 128
      %2881 = vsyncadd [#allocation9], %s2880
      %s2883 = sshll.u32 [#allocation13], 4
      %s2884 = int_to_ptr.vmem [resolvable:$true] %s2883
      %2886 = dma.vmem_to_hbm [thread:$0]  %s2884, 128, %s7, [#allocation9]
    $region71: #{tpu_custom_call.1} parent=1 // pred_fallthru
      _
    // Predicated region
    $region72: #{tpu_custom_call.1} parent=1 // pred_check
      _
    $region73: #{tpu_custom_call.1} parent=1 // pred_check_branch
      %2888 = sbr.rel (0) target = $region75
    $region74: #{tpu_custom_call.1} parent=1 // pred_region
      %2889 = dma.done [#allocation9], 128
    $region75: #{tpu_custom_call.1} parent=1 // pred_fallthru
      _
    %2890 = vsyncpa [#allocation8], 1
    %2891 = vsyncpa [#allocation11], 1
    %2892 = vsyncpa [#allocation9], 1
  %2893 = vsyncmov [#allocation6]
  %s2894 = vpop.sfrf %2893
  %p2895 = scmp.eq.s32.totalorder %s2894, 0
  %p2896 = pneg %p2895
  %2898 = shalt.err (%p2896)
  %s2899 = scalar_lea.sflag [#allocation6], 1
  %2900 = vsyncmov %s2899
  %s2901 = vpop.sfrf %2900
  %p2902 = scmp.eq.s32.totalorder %s2901, 0
  %p2903 = pneg %p2902
  %2905 = shalt.err (%p2903)
  %s2906 = scalar_lea.sflag [#allocation6], 2
  %2907 = vsyncmov %s2906
  %s2908 = vpop.sfrf %2907
  %p2909 = scmp.eq.s32.totalorder %s2908, 0
  %p2910 = pneg %p2909
  %2912 = shalt.err (%p2910)
  %s2913 = scalar_lea.sflag [#allocation6], 3
  %2914 = vsyncmov %s2913
  %s2915 = vpop.sfrf %2914
  %p2916 = scmp.eq.s32.totalorder %s2915, 0
  %p2917 = pneg %p2916
  %2919 = shalt.err (%p2917)
  %s2920 = scalar_lea.sflag [#allocation6], 4
  %2921 = vsyncmov %s2920
  %s2922 = vpop.sfrf %2921
  %p2923 = scmp.eq.s32.totalorder %s2922, 0
  %p2924 = pneg %p2923
  %2926 = shalt.err (%p2924)
  %s2927 = scalar_lea.sflag [#allocation6], 5
  %2928 = vsyncmov %s2927
  %s2929 = vpop.sfrf %2928
  %p2930 = scmp.eq.s32.totalorder %s2929, 0
  %p2931 = pneg %p2930
  %2933 = shalt.err (%p2931)
  %s2934 = scalar_lea.sflag [#allocation6], 6
  %2935 = vsyncmov %s2934
  %s2936 = vpop.sfrf %2935
  %p2937 = scmp.eq.s32.totalorder %s2936, 0
  %p2938 = pneg %p2937
  %2940 = shalt.err (%p2938)

</llo_original>
